<compile_context>
chip_gen: v6e
topology: v6e:2x2x1
jax: 0.10.0
libtpu: 0.0.40
codegen_flags: <defaults>
</compile_context>

<pallas_src>
import jax
import jax.numpy as jnp
from jax import lax
from jax.experimental import pallas as pl
from jax.experimental.pallas import tpu as pltpu


def lm_kernel(x_ref, wih_ref, whh_ref, bg_ref, wc_ref, bc_ref,
              out_ref, gx_ref, hs_ref, h_ref, c_ref):
    """Single program: batched LSTM recurrence + classify + softmax.

    Layouts (time-major, batch folded into rows; row = t*B + b):
      x_ref  : (T*B, D)  bf16   embedded tokens
      wih_ref: (4, D, D) bf16   per-gate W_ih^T (PyTorch gate order i, f, g, o)
      whh_ref: (4, D, D) bf16   per-gate W_hh^T
      bg_ref : (4, 1, D) f32    fused b_ih + b_hh, per gate
      wc_ref : (D, Vp)   bf16   classify weight, transposed, vocab padded to 128
      bc_ref : (1, Vp)   f32    classify bias (padding lanes = -1e30)
      out_ref: (T*B, Vp) f32    softmax probabilities
    """
    TB, D = hs_ref.shape
    B = h_ref.shape[0]
    T = TB // B

    # ---- Input projection: one large (T*B, D) @ (D, D) matmul per gate (lane-aligned). ----
    x = x_ref[...]                                           # (T*B, D) bf16
    for g in range(4):
        gx_ref[g] = (jnp.dot(x, wih_ref[g], preferred_element_type=jnp.float32)
                     + bg_ref[g])                            # (T*B, D) f32

    # ---- Batched LSTM recurrence over time. ----
    h_ref[...] = jnp.zeros_like(h_ref)
    c_ref[...] = jnp.zeros_like(c_ref)
    whh = [whh_ref[g] for g in range(4)]     # hoisted once: no per-step reload/transpose

    # Fully unrolled time loop (static T): static slices only, no dynamic indexing.
    for t in range(T):
        row = t * B
        h_b = h_ref[...].astype(x.dtype)                     # bf16 MXU operand
        pre = [gx_ref[g, row:row + B, :] +
               jnp.dot(h_b, whh[g], preferred_element_type=jnp.float32)
               for g in range(4)]                            # 4 x (B, D) f32, lane offset 0
        i_g = jax.nn.sigmoid(pre[0])
        f_g = jax.nn.sigmoid(pre[1])
        g_g = jnp.tanh(pre[2])
        o_g = jax.nn.sigmoid(pre[3])
        c_new = f_g * c_ref[...] + i_g * g_g                 # f32 cell state
        h_new = o_g * jnp.tanh(c_new)
        c_ref[...] = c_new
        h_ref[...] = h_new
        hs_ref[row:row + B, :] = h_new.astype(hs_ref.dtype)  # bf16 for the classify matmul

    # ---- Classify + softmax over (padded) vocab; lane-dense output store. ----
    logits = jnp.dot(hs_ref[...], wc_ref[...],
                     preferred_element_type=jnp.float32) + bc_ref[...]   # (T*B, Vp) f32
    m = jnp.max(logits, axis=-1, keepdims=True)
    e = jnp.exp(logits - m)
    s = jnp.sum(e, axis=-1, keepdims=True)
    out_ref[...] = e * pl.reciprocal(s, approx=True)


def language_model_forward(x_ids, params):
    """x_ids: (B, T) int32 token ids. Returns softmax probs (B, T, V) float32."""
    emb = params["embedding"][x_ids]                          # (B, T, D) gather (JAX glue)
    B, T, D = emb.shape
    V = params["classify_w"].shape[0]
    V_pad = ((V + 127) // 128) * 128

    # Time-major, batch-flattened activations: row index = t*B + b.
    x_tm = jnp.transpose(emb, (1, 0, 2)).reshape(T * B, D).astype(jnp.bfloat16)

    # Pre-transposed, per-gate weights (PyTorch gate order i, f, g, o); fused bias.
    wih_T = jnp.transpose(params["w_ih"].reshape(4, D, D), (0, 2, 1)).astype(jnp.bfloat16)
    whh_T = jnp.transpose(params["w_hh"].reshape(4, D, D), (0, 2, 1)).astype(jnp.bfloat16)
    b_g = (params["b_ih"] + params["b_hh"]).reshape(4, 1, D).astype(jnp.float32)

    # Classify weights, transposed; pad vocab to a multiple of 128 (lane-dense logits).
    wc_T = params["classify_w"].T.astype(jnp.bfloat16)        # (D, V)
    bc = params["classify_b"].astype(jnp.float32)             # (V,)
    if V_pad != V:
        wc_T = jnp.pad(wc_T, ((0, 0), (0, V_pad - V)))
        bc = jnp.pad(bc, (0, V_pad - V), constant_values=jnp.float32(-1e30))
    bc = bc[None, :]                                          # (1, V_pad)

    probs_tm = pl.pallas_call(
        lm_kernel,
        out_shape=jax.ShapeDtypeStruct((T * B, V_pad), jnp.float32),
        grid_spec=pltpu.PrefetchScalarGridSpec(
            num_scalar_prefetch=0,
            grid=(1,),                                        # batch lives inside the kernel
            in_specs=[
                pl.BlockSpec((T * B, D), lambda i: (0, 0)),        # x (time-major)
                pl.BlockSpec((4, D, D), lambda i: (0, 0, 0)),      # W_ih^T per gate
                pl.BlockSpec((4, D, D), lambda i: (0, 0, 0)),      # W_hh^T per gate
                pl.BlockSpec((4, 1, D), lambda i: (0, 0, 0)),      # fused bias per gate
                pl.BlockSpec((D, V_pad), lambda i: (0, 0)),        # classify W^T
                pl.BlockSpec((1, V_pad), lambda i: (0, 0)),        # classify b
            ],
            out_specs=pl.BlockSpec((T * B, V_pad), lambda i: (0, 0)),
            scratch_shapes=[
                pltpu.VMEM((4, T * B, D), jnp.float32),   # gx: per-gate input pre-activations
                pltpu.VMEM((T * B, D), jnp.bfloat16),     # hs: hidden states for all t
                pltpu.VMEM((B, D), jnp.float32),          # h
                pltpu.VMEM((B, D), jnp.float32),          # c
            ],
        ),
        compiler_params=pltpu.CompilerParams(dimension_semantics=("arbitrary",)),
    )(x_tm, wih_T, whh_T, b_g, wc_T, bc)

    # Back to batch-major and strip vocab padding.
    return probs_tm.reshape(T, B, V_pad).transpose(1, 0, 2)[:, :, :V]


def make_params(key, vocab_size, input_dim):
    """Deterministic parameter init mimicking PyTorch default inits."""
    D, V = input_dim, vocab_size
    k = 1.0 / jnp.sqrt(jnp.float32(D))
    keys = jax.random.split(key, 7)
    return {
        "embedding":  jax.random.normal(keys[0], (V, D), jnp.float32),
        "w_ih":       jax.random.uniform(keys[1], (4 * D, D), jnp.float32, -k, k),
        "w_hh":       jax.random.uniform(keys[2], (4 * D, D), jnp.float32, -k, k),
        "b_ih":       jax.random.uniform(keys[3], (4 * D,), jnp.float32, -k, k),
        "b_hh":       jax.random.uniform(keys[4], (4 * D,), jnp.float32, -k, k),
        "classify_w": jax.random.uniform(keys[5], (V, D), jnp.float32, -k, k),
        "classify_b": jax.random.uniform(keys[6], (V,), jnp.float32, -k, k),
    }


def reference_forward(x_ids, params):
    """Pure-JAX f32 reference (PyTorch math) for a sanity check."""
    emb = params["embedding"][x_ids]
    B, T, D = emb.shape

    def cell(carry, x_t):
        h, c = carry
        gates = (x_t @ params["w_ih"].T + params["b_ih"]
                 + h @ params["w_hh"].T + params["b_hh"])
        i = jax.nn.sigmoid(gates[:, 0 * D:1 * D])
        f = jax.nn.sigmoid(gates[:, 1 * D:2 * D])
        g = jnp.tanh(gates[:, 2 * D:3 * D])
        o = jax.nn.sigmoid(gates[:, 3 * D:4 * D])
        c = f * c + i * g
        h = o * jnp.tanh(c)
        return (h, c), h

    h0 = jnp.zeros((B, D), jnp.float32)
    c0 = jnp.zeros((B, D), jnp.float32)
    _, hs = lax.scan(cell, (h0, c0), jnp.swapaxes(emb, 0, 1))
    hs = jnp.swapaxes(hs, 0, 1)                      # (B, T, D)
    logits = hs @ params["classify_w"].T + params["classify_b"]
    return jax.nn.softmax(logits, axis=-1)


if __name__ == "__main__":
    # TODO(synk): training (cross_entropy) branch and BERT encoder branch not implemented;
    #             this covers the lstm inference path (y=None). Dropout is unused in forward.
    B, T, D, V = 2, 8, 32, 128   # batch, seq, input_dim (hidden), vocab size

    key = jax.random.PRNGKey(0)
    k_par, k_x = jax.random.split(key)
    params = make_params(k_par, V, D)
    x_ids = jax.random.randint(k_x, (B, T), 0, V, dtype=jnp.int32)

    probs = jax.block_until_ready(language_model_forward(x_ids, params))
    ref = jax.block_until_ready(reference_forward(x_ids, params))

    assert probs.shape == (B, T, V)
    assert bool(jnp.all(jnp.isfinite(probs)))
    # probabilities sum to ~1 along vocab (approx reciprocal in the softmax divide)
    assert bool(jnp.allclose(jnp.sum(probs, axis=-1), 1.0, atol=5e-3))
    # matches pure-f32 JAX reference (loose tol: kernel uses bf16 matmul operands)
    assert bool(jnp.allclose(probs, ref, atol=2e-3, rtol=1e-1))

    print("KERNEL_OK")
</pallas_src>

<mosaic_0001>
module attributes {stable_mosaic.version = 11 : i64} {
  func.func @lm_kernel(%arg0: i32, %arg1: memref<16x32xbf16, #tpu.memory_space<vmem>>, %arg2: memref<4x32x32xbf16, #tpu.memory_space<vmem>>, %arg3: memref<4x32x32xbf16, #tpu.memory_space<vmem>>, %arg4: memref<4x1x32xf32, #tpu.memory_space<vmem>>, %arg5: memref<32x128xbf16, #tpu.memory_space<vmem>>, %arg6: memref<1x128xf32, #tpu.memory_space<vmem>>, %arg7: memref<16x128xf32, #tpu.memory_space<vmem>>, %arg8: memref<4x16x32xf32, #tpu.memory_space<vmem>>, %arg9: memref<16x32xbf16, #tpu.memory_space<vmem>>, %arg10: memref<2x32xf32, #tpu.memory_space<vmem>>, %arg11: memref<2x32xf32, #tpu.memory_space<vmem>>) attributes {dimension_semantics = [#tpu.dimension_semantics<arbitrary>], iteration_bounds = array<i64: 1>, scalar_prefetch = 0 : i64, scratch_operands = 4 : i64, tpu.core_type = #tpu.core_type<tc>, window_params = [{pipeline_mode = #tpu.pipeline_mode<synchronous>, transform_indices = @transform_0, window_bounds = array<i64: 16, 32>}, {pipeline_mode = #tpu.pipeline_mode<synchronous>, transform_indices = @transform_1, window_bounds = array<i64: 4, 32, 32>}, {pipeline_mode = #tpu.pipeline_mode<synchronous>, transform_indices = @transform_2, window_bounds = array<i64: 4, 32, 32>}, {pipeline_mode = #tpu.pipeline_mode<synchronous>, transform_indices = @transform_3, window_bounds = array<i64: 4, 1, 32>}, {pipeline_mode = #tpu.pipeline_mode<synchronous>, transform_indices = @transform_4, window_bounds = array<i64: 32, 128>}, {pipeline_mode = #tpu.pipeline_mode<synchronous>, transform_indices = @transform_5, window_bounds = array<i64: 1, 128>}, {pipeline_mode = #tpu.pipeline_mode<synchronous>, transform_indices = @transform_6, window_bounds = array<i64: 16, 128>}]} {
    %c0 = arith.constant 0 : index
    %c0_0 = arith.constant 0 : index
    %0 = vector.load %arg1[%c0, %c0_0] : memref<16x32xbf16, #tpu.memory_space<vmem>>, vector<16x32xbf16>
    %c0_1 = arith.constant 0 : index
    %c0_2 = arith.constant 0 : index
    %c0_3 = arith.constant 0 : index
    %1 = vector.load %arg2[%c0_1, %c0_2, %c0_3] : memref<4x32x32xbf16, #tpu.memory_space<vmem>>, vector<1x32x32xbf16>
    %2 = vector.shape_cast %1 : vector<1x32x32xbf16> to vector<32x32xbf16>
    %cst = arith.constant dense<0.000000e+00> : vector<16x32xf32>
    %3 = tpu.matmul %0, %2, %cst {dimension_numbers = #tpu.dot_dimension_numbers<[1], [0], [0], [1], [0, 0, 1, 1], [], []>} : vector<16x32xbf16>, vector<32x32xbf16>, vector<16x32xf32> -> vector<16x32xf32>
    %c0_4 = arith.constant 0 : index
    %c0_5 = arith.constant 0 : index
    %c0_6 = arith.constant 0 : index
    %4 = vector.load %arg4[%c0_4, %c0_5, %c0_6] : memref<4x1x32xf32, #tpu.memory_space<vmem>>, vector<1x1x32xf32>
    %5 = vector.shape_cast %4 : vector<1x1x32xf32> to vector<1x32xf32>
    %6 = vector.broadcast %5 : vector<1x32xf32> to vector<16x32xf32>
    %7 = arith.addf %3, %6 : vector<16x32xf32>
    %c0_7 = arith.constant 0 : index
    %c0_8 = arith.constant 0 : index
    %c0_9 = arith.constant 0 : index
    %8 = vector.load %arg8[%c0_7, %c0_8, %c0_9] : memref<4x16x32xf32, #tpu.memory_space<vmem>>, vector<1x16x32xf32>
    %9 = vector.shape_cast %8 : vector<1x16x32xf32> to vector<16x32xf32>
    %10 = vector.shape_cast %7 : vector<16x32xf32> to vector<1x16x32xf32>
    tpu.vector_store %arg8[%c0_7, %c0_8, %c0_9], %10 {strides = array<i32>} : memref<4x16x32xf32, #tpu.memory_space<vmem>>, vector<1x16x32xf32>,
    %c1 = arith.constant 1 : index
    %c0_10 = arith.constant 0 : index
    %c0_11 = arith.constant 0 : index
    %11 = vector.load %arg2[%c1, %c0_10, %c0_11] : memref<4x32x32xbf16, #tpu.memory_space<vmem>>, vector<1x32x32xbf16>
    %12 = vector.shape_cast %11 : vector<1x32x32xbf16> to vector<32x32xbf16>
    %cst_12 = arith.constant dense<0.000000e+00> : vector<16x32xf32>
    %13 = tpu.matmul %0, %12, %cst_12 {dimension_numbers = #tpu.dot_dimension_numbers<[1], [0], [0], [1], [0, 0, 1, 1], [], []>} : vector<16x32xbf16>, vector<32x32xbf16>, vector<16x32xf32> -> vector<16x32xf32>
    %c1_13 = arith.constant 1 : index
    %c0_14 = arith.constant 0 : index
    %c0_15 = arith.constant 0 : index
    %14 = vector.load %arg4[%c1_13, %c0_14, %c0_15] : memref<4x1x32xf32, #tpu.memory_space<vmem>>, vector<1x1x32xf32>
    %15 = vector.shape_cast %14 : vector<1x1x32xf32> to vector<1x32xf32>
    %16 = vector.broadcast %15 : vector<1x32xf32> to vector<16x32xf32>
    %17 = arith.addf %13, %16 : vector<16x32xf32>
    %c1_16 = arith.constant 1 : index
    %c0_17 = arith.constant 0 : index
    %c0_18 = arith.constant 0 : index
    %18 = vector.load %arg8[%c1_16, %c0_17, %c0_18] : memref<4x16x32xf32, #tpu.memory_space<vmem>>, vector<1x16x32xf32>
    %19 = vector.shape_cast %18 : vector<1x16x32xf32> to vector<16x32xf32>
    %20 = vector.shape_cast %17 : vector<16x32xf32> to vector<1x16x32xf32>
    tpu.vector_store %arg8[%c1_16, %c0_17, %c0_18], %20 {strides = array<i32>} : memref<4x16x32xf32, #tpu.memory_space<vmem>>, vector<1x16x32xf32>,
    %c2 = arith.constant 2 : index
    %c0_19 = arith.constant 0 : index
    %c0_20 = arith.constant 0 : index
    %21 = vector.load %arg2[%c2, %c0_19, %c0_20] : memref<4x32x32xbf16, #tpu.memory_space<vmem>>, vector<1x32x32xbf16>
    %22 = vector.shape_cast %21 : vector<1x32x32xbf16> to vector<32x32xbf16>
    %cst_21 = arith.constant dense<0.000000e+00> : vector<16x32xf32>
    %23 = tpu.matmul %0, %22, %cst_21 {dimension_numbers = #tpu.dot_dimension_numbers<[1], [0], [0], [1], [0, 0, 1, 1], [], []>} : vector<16x32xbf16>, vector<32x32xbf16>, vector<16x32xf32> -> vector<16x32xf32>
    %c2_22 = arith.constant 2 : index
    %c0_23 = arith.constant 0 : index
    %c0_24 = arith.constant 0 : index
    %24 = vector.load %arg4[%c2_22, %c0_23, %c0_24] : memref<4x1x32xf32, #tpu.memory_space<vmem>>, vector<1x1x32xf32>
    %25 = vector.shape_cast %24 : vector<1x1x32xf32> to vector<1x32xf32>
    %26 = vector.broadcast %25 : vector<1x32xf32> to vector<16x32xf32>
    %27 = arith.addf %23, %26 : vector<16x32xf32>
    %c2_25 = arith.constant 2 : index
    %c0_26 = arith.constant 0 : index
    %c0_27 = arith.constant 0 : index
    %28 = vector.load %arg8[%c2_25, %c0_26, %c0_27] : memref<4x16x32xf32, #tpu.memory_space<vmem>>, vector<1x16x32xf32>
    %29 = vector.shape_cast %28 : vector<1x16x32xf32> to vector<16x32xf32>
    %30 = vector.shape_cast %27 : vector<16x32xf32> to vector<1x16x32xf32>
    tpu.vector_store %arg8[%c2_25, %c0_26, %c0_27], %30 {strides = array<i32>} : memref<4x16x32xf32, #tpu.memory_space<vmem>>, vector<1x16x32xf32>,
    %c3 = arith.constant 3 : index
    %c0_28 = arith.constant 0 : index
    %c0_29 = arith.constant 0 : index
    %31 = vector.load %arg2[%c3, %c0_28, %c0_29] : memref<4x32x32xbf16, #tpu.memory_space<vmem>>, vector<1x32x32xbf16>
    %32 = vector.shape_cast %31 : vector<1x32x32xbf16> to vector<32x32xbf16>
    %cst_30 = arith.constant dense<0.000000e+00> : vector<16x32xf32>
    %33 = tpu.matmul %0, %32, %cst_30 {dimension_numbers = #tpu.dot_dimension_numbers<[1], [0], [0], [1], [0, 0, 1, 1], [], []>} : vector<16x32xbf16>, vector<32x32xbf16>, vector<16x32xf32> -> vector<16x32xf32>
    %c3_31 = arith.constant 3 : index
    %c0_32 = arith.constant 0 : index
    %c0_33 = arith.constant 0 : index
    %34 = vector.load %arg4[%c3_31, %c0_32, %c0_33] : memref<4x1x32xf32, #tpu.memory_space<vmem>>, vector<1x1x32xf32>
    %35 = vector.shape_cast %34 : vector<1x1x32xf32> to vector<1x32xf32>
    %36 = vector.broadcast %35 : vector<1x32xf32> to vector<16x32xf32>
    %37 = arith.addf %33, %36 : vector<16x32xf32>
    %c3_34 = arith.constant 3 : index
    %c0_35 = arith.constant 0 : index
    %c0_36 = arith.constant 0 : index
    %38 = vector.load %arg8[%c3_34, %c0_35, %c0_36] : memref<4x16x32xf32, #tpu.memory_space<vmem>>, vector<1x16x32xf32>
    %39 = vector.shape_cast %38 : vector<1x16x32xf32> to vector<16x32xf32>
    %40 = vector.shape_cast %37 : vector<16x32xf32> to vector<1x16x32xf32>
    tpu.vector_store %arg8[%c3_34, %c0_35, %c0_36], %40 {strides = array<i32>} : memref<4x16x32xf32, #tpu.memory_space<vmem>>, vector<1x16x32xf32>,
    %cst_37 = arith.constant 0.000000e+00 : f32
    %41 = vector.broadcast %cst_37 : f32 to vector<2x32xf32>
    %c0_38 = arith.constant 0 : index
    %c0_39 = arith.constant 0 : index
    %42 = vector.load %arg10[%c0_38, %c0_39] : memref<2x32xf32, #tpu.memory_space<vmem>>, vector<2x32xf32>
    tpu.vector_store %arg10[%c0_38, %c0_39], %41 {strides = array<i32>} : memref<2x32xf32, #tpu.memory_space<vmem>>, vector<2x32xf32>,
    %cst_40 = arith.constant 0.000000e+00 : f32
    %43 = vector.broadcast %cst_40 : f32 to vector<2x32xf32>
    %c0_41 = arith.constant 0 : index
    %c0_42 = arith.constant 0 : index
    %44 = vector.load %arg11[%c0_41, %c0_42] : memref<2x32xf32, #tpu.memory_space<vmem>>, vector<2x32xf32>
    tpu.vector_store %arg11[%c0_41, %c0_42], %43 {strides = array<i32>} : memref<2x32xf32, #tpu.memory_space<vmem>>, vector<2x32xf32>,
    %c0_43 = arith.constant 0 : index
    %c0_44 = arith.constant 0 : index
    %c0_45 = arith.constant 0 : index
    %45 = vector.load %arg3[%c0_43, %c0_44, %c0_45] : memref<4x32x32xbf16, #tpu.memory_space<vmem>>, vector<1x32x32xbf16>
    %46 = vector.shape_cast %45 : vector<1x32x32xbf16> to vector<32x32xbf16>
    %c1_46 = arith.constant 1 : index
    %c0_47 = arith.constant 0 : index
    %c0_48 = arith.constant 0 : index
    %47 = vector.load %arg3[%c1_46, %c0_47, %c0_48] : memref<4x32x32xbf16, #tpu.memory_space<vmem>>, vector<1x32x32xbf16>
    %48 = vector.shape_cast %47 : vector<1x32x32xbf16> to vector<32x32xbf16>
    %c2_49 = arith.constant 2 : index
    %c0_50 = arith.constant 0 : index
    %c0_51 = arith.constant 0 : index
    %49 = vector.load %arg3[%c2_49, %c0_50, %c0_51] : memref<4x32x32xbf16, #tpu.memory_space<vmem>>, vector<1x32x32xbf16>
    %50 = vector.shape_cast %49 : vector<1x32x32xbf16> to vector<32x32xbf16>
    %c3_52 = arith.constant 3 : index
    %c0_53 = arith.constant 0 : index
    %c0_54 = arith.constant 0 : index
    %51 = vector.load %arg3[%c3_52, %c0_53, %c0_54] : memref<4x32x32xbf16, #tpu.memory_space<vmem>>, vector<1x32x32xbf16>
    %52 = vector.shape_cast %51 : vector<1x32x32xbf16> to vector<32x32xbf16>
    %c0_55 = arith.constant 0 : index
    %c0_56 = arith.constant 0 : index
    %53 = vector.load %arg10[%c0_55, %c0_56] : memref<2x32xf32, #tpu.memory_space<vmem>>, vector<2x32xf32>
    %54 = arith.truncf %53 : vector<2x32xf32> to vector<2x32xbf16>
    %c0_57 = arith.constant 0 : index
    %c0_58 = arith.constant 0 : index
    %c0_59 = arith.constant 0 : index
    %55 = vector.load %arg8[%c0_57, %c0_58, %c0_59] : memref<4x16x32xf32, #tpu.memory_space<vmem>>, vector<1x2x32xf32>
    %56 = vector.shape_cast %55 : vector<1x2x32xf32> to vector<2x32xf32>
    %cst_60 = arith.constant dense<0.000000e+00> : vector<2x32xf32>
    %57 = tpu.matmul %54, %46, %cst_60 {dimension_numbers = #tpu.dot_dimension_numbers<[1], [0], [0], [1], [0, 0, 1, 1], [], []>} : vector<2x32xbf16>, vector<32x32xbf16>, vector<2x32xf32> -> vector<2x32xf32>
    %58 = arith.addf %56, %57 : vector<2x32xf32>
    %c1_61 = arith.constant 1 : index
    %c0_62 = arith.constant 0 : index
    %c0_63 = arith.constant 0 : index
    %59 = vector.load %arg8[%c1_61, %c0_62, %c0_63] : memref<4x16x32xf32, #tpu.memory_space<vmem>>, vector<1x2x32xf32>
    %60 = vector.shape_cast %59 : vector<1x2x32xf32> to vector<2x32xf32>
    %cst_64 = arith.constant dense<0.000000e+00> : vector<2x32xf32>
    %61 = tpu.matmul %54, %48, %cst_64 {dimension_numbers = #tpu.dot_dimension_numbers<[1], [0], [0], [1], [0, 0, 1, 1], [], []>} : vector<2x32xbf16>, vector<32x32xbf16>, vector<2x32xf32> -> vector<2x32xf32>
    %62 = arith.addf %60, %61 : vector<2x32xf32>
    %c2_65 = arith.constant 2 : index
    %c0_66 = arith.constant 0 : index
    %c0_67 = arith.constant 0 : index
    %63 = vector.load %arg8[%c2_65, %c0_66, %c0_67] : memref<4x16x32xf32, #tpu.memory_space<vmem>>, vector<1x2x32xf32>
    %64 = vector.shape_cast %63 : vector<1x2x32xf32> to vector<2x32xf32>
    %cst_68 = arith.constant dense<0.000000e+00> : vector<2x32xf32>
    %65 = tpu.matmul %54, %50, %cst_68 {dimension_numbers = #tpu.dot_dimension_numbers<[1], [0], [0], [1], [0, 0, 1, 1], [], []>} : vector<2x32xbf16>, vector<32x32xbf16>, vector<2x32xf32> -> vector<2x32xf32>
    %66 = arith.addf %64, %65 : vector<2x32xf32>
    %c3_69 = arith.constant 3 : index
    %c0_70 = arith.constant 0 : index
    %c0_71 = arith.constant 0 : index
    %67 = vector.load %arg8[%c3_69, %c0_70, %c0_71] : memref<4x16x32xf32, #tpu.memory_space<vmem>>, vector<1x2x32xf32>
    %68 = vector.shape_cast %67 : vector<1x2x32xf32> to vector<2x32xf32>
    %cst_72 = arith.constant dense<0.000000e+00> : vector<2x32xf32>
    %69 = tpu.matmul %54, %52, %cst_72 {dimension_numbers = #tpu.dot_dimension_numbers<[1], [0], [0], [1], [0, 0, 1, 1], [], []>} : vector<2x32xbf16>, vector<32x32xbf16>, vector<2x32xf32> -> vector<2x32xf32>
    %70 = arith.addf %68, %69 : vector<2x32xf32>
    %71 = arith.negf %58 : vector<2x32xf32>
    %72 = math.exp %71 : vector<2x32xf32>
    %cst_73 = arith.constant 1.000000e+00 : f32
    %73 = vector.broadcast %cst_73 : f32 to vector<2x32xf32>
    %74 = arith.addf %73, %72 : vector<2x32xf32>
    %75 = arith.divf %73, %74 : vector<2x32xf32>
    %76 = arith.negf %62 : vector<2x32xf32>
    %77 = math.exp %76 : vector<2x32xf32>
    %cst_74 = arith.constant 1.000000e+00 : f32
    %78 = vector.broadcast %cst_74 : f32 to vector<2x32xf32>
    %79 = arith.addf %78, %77 : vector<2x32xf32>
    %80 = arith.divf %78, %79 : vector<2x32xf32>
    %81 = math.tanh %66 : vector<2x32xf32>
    %82 = arith.negf %70 : vector<2x32xf32>
    %83 = math.exp %82 : vector<2x32xf32>
    %cst_75 = arith.constant 1.000000e+00 : f32
    %84 = vector.broadcast %cst_75 : f32 to vector<2x32xf32>
    %85 = arith.addf %84, %83 : vector<2x32xf32>
    %86 = arith.divf %84, %85 : vector<2x32xf32>
    %c0_76 = arith.constant 0 : index
    %c0_77 = arith.constant 0 : index
    %87 = vector.load %arg11[%c0_76, %c0_77] : memref<2x32xf32, #tpu.memory_space<vmem>>, vector<2x32xf32>
    %88 = arith.mulf %80, %87 : vector<2x32xf32>
    %89 = arith.mulf %75, %81 : vector<2x32xf32>
    %90 = arith.addf %88, %89 : vector<2x32xf32>
    %91 = math.tanh %90 : vector<2x32xf32>
    %92 = arith.mulf %86, %91 : vector<2x32xf32>
    %c0_78 = arith.constant 0 : index
    %c0_79 = arith.constant 0 : index
    %93 = vector.load %arg11[%c0_78, %c0_79] : memref<2x32xf32, #tpu.memory_space<vmem>>, vector<2x32xf32>
    tpu.vector_store %arg11[%c0_78, %c0_79], %90 {strides = array<i32>} : memref<2x32xf32, #tpu.memory_space<vmem>>, vector<2x32xf32>,
    %c0_80 = arith.constant 0 : index
    %c0_81 = arith.constant 0 : index
    %94 = vector.load %arg10[%c0_80, %c0_81] : memref<2x32xf32, #tpu.memory_space<vmem>>, vector<2x32xf32>
    tpu.vector_store %arg10[%c0_80, %c0_81], %92 {strides = array<i32>} : memref<2x32xf32, #tpu.memory_space<vmem>>, vector<2x32xf32>,
    %95 = arith.truncf %92 : vector<2x32xf32> to vector<2x32xbf16>
    %c0_82 = arith.constant 0 : index
    %c0_83 = arith.constant 0 : index
    %96 = vector.load %arg9[%c0_82, %c0_83] : memref<16x32xbf16, #tpu.memory_space<vmem>>, vector<2x32xbf16>
    tpu.vector_store %arg9[%c0_82, %c0_83], %95 {strides = array<i32>} : memref<16x32xbf16, #tpu.memory_space<vmem>>, vector<2x32xbf16>,
    %c0_84 = arith.constant 0 : index
    %c0_85 = arith.constant 0 : index
    %97 = vector.load %arg10[%c0_84, %c0_85] : memref<2x32xf32, #tpu.memory_space<vmem>>, vector<2x32xf32>
    %98 = arith.truncf %97 : vector<2x32xf32> to vector<2x32xbf16>
    %c0_86 = arith.constant 0 : index
    %c2_87 = arith.constant 2 : index
    %c0_88 = arith.constant 0 : index
    %99 = vector.load %arg8[%c0_86, %c2_87, %c0_88] : memref<4x16x32xf32, #tpu.memory_space<vmem>>, vector<1x2x32xf32>
    %100 = vector.shape_cast %99 : vector<1x2x32xf32> to vector<2x32xf32>
    %cst_89 = arith.constant dense<0.000000e+00> : vector<2x32xf32>
    %101 = tpu.matmul %98, %46, %cst_89 {dimension_numbers = #tpu.dot_dimension_numbers<[1], [0], [0], [1], [0, 0, 1, 1], [], []>} : vector<2x32xbf16>, vector<32x32xbf16>, vector<2x32xf32> -> vector<2x32xf32>
    %102 = arith.addf %100, %101 : vector<2x32xf32>
    %c1_90 = arith.constant 1 : index
    %c2_91 = arith.constant 2 : index
    %c0_92 = arith.constant 0 : index
    %103 = vector.load %arg8[%c1_90, %c2_91, %c0_92] : memref<4x16x32xf32, #tpu.memory_space<vmem>>, vector<1x2x32xf32>
    %104 = vector.shape_cast %103 : vector<1x2x32xf32> to vector<2x32xf32>
    %cst_93 = arith.constant dense<0.000000e+00> : vector<2x32xf32>
    %105 = tpu.matmul %98, %48, %cst_93 {dimension_numbers = #tpu.dot_dimension_numbers<[1], [0], [0], [1], [0, 0, 1, 1], [], []>} : vector<2x32xbf16>, vector<32x32xbf16>, vector<2x32xf32> -> vector<2x32xf32>
    %106 = arith.addf %104, %105 : vector<2x32xf32>
    %c2_94 = arith.constant 2 : index
    %c2_95 = arith.constant 2 : index
    %c0_96 = arith.constant 0 : index
    %107 = vector.load %arg8[%c2_94, %c2_95, %c0_96] : memref<4x16x32xf32, #tpu.memory_space<vmem>>, vector<1x2x32xf32>
    %108 = vector.shape_cast %107 : vector<1x2x32xf32> to vector<2x32xf32>
    %cst_97 = arith.constant dense<0.000000e+00> : vector<2x32xf32>
    %109 = tpu.matmul %98, %50, %cst_97 {dimension_numbers = #tpu.dot_dimension_numbers<[1], [0], [0], [1], [0, 0, 1, 1], [], []>} : vector<2x32xbf16>, vector<32x32xbf16>, vector<2x32xf32> -> vector<2x32xf32>
    %110 = arith.addf %108, %109 : vector<2x32xf32>
    %c3_98 = arith.constant 3 : index
    %c2_99 = arith.constant 2 : index
    %c0_100 = arith.constant 0 : index
    %111 = vector.load %arg8[%c3_98, %c2_99, %c0_100] : memref<4x16x32xf32, #tpu.memory_space<vmem>>, vector<1x2x32xf32>
    %112 = vector.shape_cast %111 : vector<1x2x32xf32> to vector<2x32xf32>
    %cst_101 = arith.constant dense<0.000000e+00> : vector<2x32xf32>
    %113 = tpu.matmul %98, %52, %cst_101 {dimension_numbers = #tpu.dot_dimension_numbers<[1], [0], [0], [1], [0, 0, 1, 1], [], []>} : vector<2x32xbf16>, vector<32x32xbf16>, vector<2x32xf32> -> vector<2x32xf32>
    %114 = arith.addf %112, %113 : vector<2x32xf32>
    %115 = arith.negf %102 : vector<2x32xf32>
    %116 = math.exp %115 : vector<2x32xf32>
    %cst_102 = arith.constant 1.000000e+00 : f32
    %117 = vector.broadcast %cst_102 : f32 to vector<2x32xf32>
    %118 = arith.addf %117, %116 : vector<2x32xf32>
    %119 = arith.divf %117, %118 : vector<2x32xf32>
    %120 = arith.negf %106 : vector<2x32xf32>
    %121 = math.exp %120 : vector<2x32xf32>
    %cst_103 = arith.constant 1.000000e+00 : f32
    %122 = vector.broadcast %cst_103 : f32 to vector<2x32xf32>
    %123 = arith.addf %122, %121 : vector<2x32xf32>
    %124 = arith.divf %122, %123 : vector<2x32xf32>
    %125 = math.tanh %110 : vector<2x32xf32>
    %126 = arith.negf %114 : vector<2x32xf32>
    %127 = math.exp %126 : vector<2x32xf32>
    %cst_104 = arith.constant 1.000000e+00 : f32
    %128 = vector.broadcast %cst_104 : f32 to vector<2x32xf32>
    %129 = arith.addf %128, %127 : vector<2x32xf32>
    %130 = arith.divf %128, %129 : vector<2x32xf32>
    %c0_105 = arith.constant 0 : index
    %c0_106 = arith.constant 0 : index
    %131 = vector.load %arg11[%c0_105, %c0_106] : memref<2x32xf32, #tpu.memory_space<vmem>>, vector<2x32xf32>
    %132 = arith.mulf %124, %131 : vector<2x32xf32>
    %133 = arith.mulf %119, %125 : vector<2x32xf32>
    %134 = arith.addf %132, %133 : vector<2x32xf32>
    %135 = math.tanh %134 : vector<2x32xf32>
    %136 = arith.mulf %130, %135 : vector<2x32xf32>
    %c0_107 = arith.constant 0 : index
    %c0_108 = arith.constant 0 : index
    %137 = vector.load %arg11[%c0_107, %c0_108] : memref<2x32xf32, #tpu.memory_space<vmem>>, vector<2x32xf32>
    tpu.vector_store %arg11[%c0_107, %c0_108], %134 {strides = array<i32>} : memref<2x32xf32, #tpu.memory_space<vmem>>, vector<2x32xf32>,
    %c0_109 = arith.constant 0 : index
    %c0_110 = arith.constant 0 : index
    %138 = vector.load %arg10[%c0_109, %c0_110] : memref<2x32xf32, #tpu.memory_space<vmem>>, vector<2x32xf32>
    tpu.vector_store %arg10[%c0_109, %c0_110], %136 {strides = array<i32>} : memref<2x32xf32, #tpu.memory_space<vmem>>, vector<2x32xf32>,
    %139 = arith.truncf %136 : vector<2x32xf32> to vector<2x32xbf16>
    %c2_111 = arith.constant 2 : index
    %c0_112 = arith.constant 0 : index
    %140 = vector.load %arg9[%c2_111, %c0_112] : memref<16x32xbf16, #tpu.memory_space<vmem>>, vector<2x32xbf16>
    tpu.vector_store %arg9[%c2_111, %c0_112], %139 {strides = array<i32>} : memref<16x32xbf16, #tpu.memory_space<vmem>>, vector<2x32xbf16>,
    %c0_113 = arith.constant 0 : index
    %c0_114 = arith.constant 0 : index
    %141 = vector.load %arg10[%c0_113, %c0_114] : memref<2x32xf32, #tpu.memory_space<vmem>>, vector<2x32xf32>
    %142 = arith.truncf %141 : vector<2x32xf32> to vector<2x32xbf16>
    %c0_115 = arith.constant 0 : index
    %c4 = arith.constant 4 : index
    %c0_116 = arith.constant 0 : index
    %143 = vector.load %arg8[%c0_115, %c4, %c0_116] : memref<4x16x32xf32, #tpu.memory_space<vmem>>, vector<1x2x32xf32>
    %144 = vector.shape_cast %143 : vector<1x2x32xf32> to vector<2x32xf32>
    %cst_117 = arith.constant dense<0.000000e+00> : vector<2x32xf32>
    %145 = tpu.matmul %142, %46, %cst_117 {dimension_numbers = #tpu.dot_dimension_numbers<[1], [0], [0], [1], [0, 0, 1, 1], [], []>} : vector<2x32xbf16>, vector<32x32xbf16>, vector<2x32xf32> -> vector<2x32xf32>
    %146 = arith.addf %144, %145 : vector<2x32xf32>
    %c1_118 = arith.constant 1 : index
    %c4_119 = arith.constant 4 : index
    %c0_120 = arith.constant 0 : index
    %147 = vector.load %arg8[%c1_118, %c4_119, %c0_120] : memref<4x16x32xf32, #tpu.memory_space<vmem>>, vector<1x2x32xf32>
    %148 = vector.shape_cast %147 : vector<1x2x32xf32> to vector<2x32xf32>
    %cst_121 = arith.constant dense<0.000000e+00> : vector<2x32xf32>
    %149 = tpu.matmul %142, %48, %cst_121 {dimension_numbers = #tpu.dot_dimension_numbers<[1], [0], [0], [1], [0, 0, 1, 1], [], []>} : vector<2x32xbf16>, vector<32x32xbf16>, vector<2x32xf32> -> vector<2x32xf32>
    %150 = arith.addf %148, %149 : vector<2x32xf32>
    %c2_122 = arith.constant 2 : index
    %c4_123 = arith.constant 4 : index
    %c0_124 = arith.constant 0 : index
    %151 = vector.load %arg8[%c2_122, %c4_123, %c0_124] : memref<4x16x32xf32, #tpu.memory_space<vmem>>, vector<1x2x32xf32>
    %152 = vector.shape_cast %151 : vector<1x2x32xf32> to vector<2x32xf32>
    %cst_125 = arith.constant dense<0.000000e+00> : vector<2x32xf32>
    %153 = tpu.matmul %142, %50, %cst_125 {dimension_numbers = #tpu.dot_dimension_numbers<[1], [0], [0], [1], [0, 0, 1, 1], [], []>} : vector<2x32xbf16>, vector<32x32xbf16>, vector<2x32xf32> -> vector<2x32xf32>
    %154 = arith.addf %152, %153 : vector<2x32xf32>
    %c3_126 = arith.constant 3 : index
    %c4_127 = arith.constant 4 : index
    %c0_128 = arith.constant 0 : index
    %155 = vector.load %arg8[%c3_126, %c4_127, %c0_128] : memref<4x16x32xf32, #tpu.memory_space<vmem>>, vector<1x2x32xf32>
    %156 = vector.shape_cast %155 : vector<1x2x32xf32> to vector<2x32xf32>
    %cst_129 = arith.constant dense<0.000000e+00> : vector<2x32xf32>
    %157 = tpu.matmul %142, %52, %cst_129 {dimension_numbers = #tpu.dot_dimension_numbers<[1], [0], [0], [1], [0, 0, 1, 1], [], []>} : vector<2x32xbf16>, vector<32x32xbf16>, vector<2x32xf32> -> vector<2x32xf32>
    %158 = arith.addf %156, %157 : vector<2x32xf32>
    %159 = arith.negf %146 : vector<2x32xf32>
    %160 = math.exp %159 : vector<2x32xf32>
    %cst_130 = arith.constant 1.000000e+00 : f32
    %161 = vector.broadcast %cst_130 : f32 to vector<2x32xf32>
    %162 = arith.addf %161, %160 : vector<2x32xf32>
    %163 = arith.divf %161, %162 : vector<2x32xf32>
    %164 = arith.negf %150 : vector<2x32xf32>
    %165 = math.exp %164 : vector<2x32xf32>
    %cst_131 = arith.constant 1.000000e+00 : f32
    %166 = vector.broadcast %cst_131 : f32 to vector<2x32xf32>
    %167 = arith.addf %166, %165 : vector<2x32xf32>
    %168 = arith.divf %166, %167 : vector<2x32xf32>
    %169 = math.tanh %154 : vector<2x32xf32>
    %170 = arith.negf %158 : vector<2x32xf32>
    %171 = math.exp %170 : vector<2x32xf32>
    %cst_132 = arith.constant 1.000000e+00 : f32
    %172 = vector.broadcast %cst_132 : f32 to vector<2x32xf32>
    %173 = arith.addf %172, %171 : vector<2x32xf32>
    %174 = arith.divf %172, %173 : vector<2x32xf32>
    %c0_133 = arith.constant 0 : index
    %c0_134 = arith.constant 0 : index
    %175 = vector.load %arg11[%c0_133, %c0_134] : memref<2x32xf32, #tpu.memory_space<vmem>>, vector<2x32xf32>
    %176 = arith.mulf %168, %175 : vector<2x32xf32>
    %177 = arith.mulf %163, %169 : vector<2x32xf32>
    %178 = arith.addf %176, %177 : vector<2x32xf32>
    %179 = math.tanh %178 : vector<2x32xf32>
    %180 = arith.mulf %174, %179 : vector<2x32xf32>
    %c0_135 = arith.constant 0 : index
    %c0_136 = arith.constant 0 : index
    %181 = vector.load %arg11[%c0_135, %c0_136] : memref<2x32xf32, #tpu.memory_space<vmem>>, vector<2x32xf32>
    tpu.vector_store %arg11[%c0_135, %c0_136], %178 {strides = array<i32>} : memref<2x32xf32, #tpu.memory_space<vmem>>, vector<2x32xf32>,
    %c0_137 = arith.constant 0 : index
    %c0_138 = arith.constant 0 : index
    %182 = vector.load %arg10[%c0_137, %c0_138] : memref<2x32xf32, #tpu.memory_space<vmem>>, vector<2x32xf32>
    tpu.vector_store %arg10[%c0_137, %c0_138], %180 {strides = array<i32>} : memref<2x32xf32, #tpu.memory_space<vmem>>, vector<2x32xf32>,
    %183 = arith.truncf %180 : vector<2x32xf32> to vector<2x32xbf16>
    %c4_139 = arith.constant 4 : index
    %c0_140 = arith.constant 0 : index
    %184 = vector.load %arg9[%c4_139, %c0_140] : memref<16x32xbf16, #tpu.memory_space<vmem>>, vector<2x32xbf16>
    tpu.vector_store %arg9[%c4_139, %c0_140], %183 {strides = array<i32>} : memref<16x32xbf16, #tpu.memory_space<vmem>>, vector<2x32xbf16>,
    %c0_141 = arith.constant 0 : index
    %c0_142 = arith.constant 0 : index
    %185 = vector.load %arg10[%c0_141, %c0_142] : memref<2x32xf32, #tpu.memory_space<vmem>>, vector<2x32xf32>
    %186 = arith.truncf %185 : vector<2x32xf32> to vector<2x32xbf16>
    %c0_143 = arith.constant 0 : index
    %c6 = arith.constant 6 : index
    %c0_144 = arith.constant 0 : index
    %187 = vector.load %arg8[%c0_143, %c6, %c0_144] : memref<4x16x32xf32, #tpu.memory_space<vmem>>, vector<1x2x32xf32>
    %188 = vector.shape_cast %187 : vector<1x2x32xf32> to vector<2x32xf32>
    %cst_145 = arith.constant dense<0.000000e+00> : vector<2x32xf32>
    %189 = tpu.matmul %186, %46, %cst_145 {dimension_numbers = #tpu.dot_dimension_numbers<[1], [0], [0], [1], [0, 0, 1, 1], [], []>} : vector<2x32xbf16>, vector<32x32xbf16>, vector<2x32xf32> -> vector<2x32xf32>
    %190 = arith.addf %188, %189 : vector<2x32xf32>
    %c1_146 = arith.constant 1 : index
    %c6_147 = arith.constant 6 : index
    %c0_148 = arith.constant 0 : index
    %191 = vector.load %arg8[%c1_146, %c6_147, %c0_148] : memref<4x16x32xf32, #tpu.memory_space<vmem>>, vector<1x2x32xf32>
    %192 = vector.shape_cast %191 : vector<1x2x32xf32> to vector<2x32xf32>
    %cst_149 = arith.constant dense<0.000000e+00> : vector<2x32xf32>
    %193 = tpu.matmul %186, %48, %cst_149 {dimension_numbers = #tpu.dot_dimension_numbers<[1], [0], [0], [1], [0, 0, 1, 1], [], []>} : vector<2x32xbf16>, vector<32x32xbf16>, vector<2x32xf32> -> vector<2x32xf32>
    %194 = arith.addf %192, %193 : vector<2x32xf32>
    %c2_150 = arith.constant 2 : index
    %c6_151 = arith.constant 6 : index
    %c0_152 = arith.constant 0 : index
    %195 = vector.load %arg8[%c2_150, %c6_151, %c0_152] : memref<4x16x32xf32, #tpu.memory_space<vmem>>, vector<1x2x32xf32>
    %196 = vector.shape_cast %195 : vector<1x2x32xf32> to vector<2x32xf32>
    %cst_153 = arith.constant dense<0.000000e+00> : vector<2x32xf32>
    %197 = tpu.matmul %186, %50, %cst_153 {dimension_numbers = #tpu.dot_dimension_numbers<[1], [0], [0], [1], [0, 0, 1, 1], [], []>} : vector<2x32xbf16>, vector<32x32xbf16>, vector<2x32xf32> -> vector<2x32xf32>
    %198 = arith.addf %196, %197 : vector<2x32xf32>
    %c3_154 = arith.constant 3 : index
    %c6_155 = arith.constant 6 : index
    %c0_156 = arith.constant 0 : index
    %199 = vector.load %arg8[%c3_154, %c6_155, %c0_156] : memref<4x16x32xf32, #tpu.memory_space<vmem>>, vector<1x2x32xf32>
    %200 = vector.shape_cast %199 : vector<1x2x32xf32> to vector<2x32xf32>
    %cst_157 = arith.constant dense<0.000000e+00> : vector<2x32xf32>
    %201 = tpu.matmul %186, %52, %cst_157 {dimension_numbers = #tpu.dot_dimension_numbers<[1], [0], [0], [1], [0, 0, 1, 1], [], []>} : vector<2x32xbf16>, vector<32x32xbf16>, vector<2x32xf32> -> vector<2x32xf32>
    %202 = arith.addf %200, %201 : vector<2x32xf32>
    %203 = arith.negf %190 : vector<2x32xf32>
    %204 = math.exp %203 : vector<2x32xf32>
    %cst_158 = arith.constant 1.000000e+00 : f32
    %205 = vector.broadcast %cst_158 : f32 to vector<2x32xf32>
    %206 = arith.addf %205, %204 : vector<2x32xf32>
    %207 = arith.divf %205, %206 : vector<2x32xf32>
    %208 = arith.negf %194 : vector<2x32xf32>
    %209 = math.exp %208 : vector<2x32xf32>
    %cst_159 = arith.constant 1.000000e+00 : f32
    %210 = vector.broadcast %cst_159 : f32 to vector<2x32xf32>
    %211 = arith.addf %210, %209 : vector<2x32xf32>
    %212 = arith.divf %210, %211 : vector<2x32xf32>
    %213 = math.tanh %198 : vector<2x32xf32>
    %214 = arith.negf %202 : vector<2x32xf32>
    %215 = math.exp %214 : vector<2x32xf32>
    %cst_160 = arith.constant 1.000000e+00 : f32
    %216 = vector.broadcast %cst_160 : f32 to vector<2x32xf32>
    %217 = arith.addf %216, %215 : vector<2x32xf32>
    %218 = arith.divf %216, %217 : vector<2x32xf32>
    %c0_161 = arith.constant 0 : index
    %c0_162 = arith.constant 0 : index
    %219 = vector.load %arg11[%c0_161, %c0_162] : memref<2x32xf32, #tpu.memory_space<vmem>>, vector<2x32xf32>
    %220 = arith.mulf %212, %219 : vector<2x32xf32>
    %221 = arith.mulf %207, %213 : vector<2x32xf32>
    %222 = arith.addf %220, %221 : vector<2x32xf32>
    %223 = math.tanh %222 : vector<2x32xf32>
    %224 = arith.mulf %218, %223 : vector<2x32xf32>
    %c0_163 = arith.constant 0 : index
    %c0_164 = arith.constant 0 : index
    %225 = vector.load %arg11[%c0_163, %c0_164] : memref<2x32xf32, #tpu.memory_space<vmem>>, vector<2x32xf32>
    tpu.vector_store %arg11[%c0_163, %c0_164], %222 {strides = array<i32>} : memref<2x32xf32, #tpu.memory_space<vmem>>, vector<2x32xf32>,
    %c0_165 = arith.constant 0 : index
    %c0_166 = arith.constant 0 : index
    %226 = vector.load %arg10[%c0_165, %c0_166] : memref<2x32xf32, #tpu.memory_space<vmem>>, vector<2x32xf32>
    tpu.vector_store %arg10[%c0_165, %c0_166], %224 {strides = array<i32>} : memref<2x32xf32, #tpu.memory_space<vmem>>, vector<2x32xf32>,
    %227 = arith.truncf %224 : vector<2x32xf32> to vector<2x32xbf16>
    %c6_167 = arith.constant 6 : index
    %c0_168 = arith.constant 0 : index
    %228 = vector.load %arg9[%c6_167, %c0_168] : memref<16x32xbf16, #tpu.memory_space<vmem>>, vector<2x32xbf16>
    tpu.vector_store %arg9[%c6_167, %c0_168], %227 {strides = array<i32>} : memref<16x32xbf16, #tpu.memory_space<vmem>>, vector<2x32xbf16>,
    %c0_169 = arith.constant 0 : index
    %c0_170 = arith.constant 0 : index
    %229 = vector.load %arg10[%c0_169, %c0_170] : memref<2x32xf32, #tpu.memory_space<vmem>>, vector<2x32xf32>
    %230 = arith.truncf %229 : vector<2x32xf32> to vector<2x32xbf16>
    %c0_171 = arith.constant 0 : index
    %c8 = arith.constant 8 : index
    %c0_172 = arith.constant 0 : index
    %231 = vector.load %arg8[%c0_171, %c8, %c0_172] : memref<4x16x32xf32, #tpu.memory_space<vmem>>, vector<1x2x32xf32>
    %232 = vector.shape_cast %231 : vector<1x2x32xf32> to vector<2x32xf32>
    %cst_173 = arith.constant dense<0.000000e+00> : vector<2x32xf32>
    %233 = tpu.matmul %230, %46, %cst_173 {dimension_numbers = #tpu.dot_dimension_numbers<[1], [0], [0], [1], [0, 0, 1, 1], [], []>} : vector<2x32xbf16>, vector<32x32xbf16>, vector<2x32xf32> -> vector<2x32xf32>
    %234 = arith.addf %232, %233 : vector<2x32xf32>
    %c1_174 = arith.constant 1 : index
    %c8_175 = arith.constant 8 : index
    %c0_176 = arith.constant 0 : index
    %235 = vector.load %arg8[%c1_174, %c8_175, %c0_176] : memref<4x16x32xf32, #tpu.memory_space<vmem>>, vector<1x2x32xf32>
    %236 = vector.shape_cast %235 : vector<1x2x32xf32> to vector<2x32xf32>
    %cst_177 = arith.constant dense<0.000000e+00> : vector<2x32xf32>
    %237 = tpu.matmul %230, %48, %cst_177 {dimension_numbers = #tpu.dot_dimension_numbers<[1], [0], [0], [1], [0, 0, 1, 1], [], []>} : vector<2x32xbf16>, vector<32x32xbf16>, vector<2x32xf32> -> vector<2x32xf32>
    %238 = arith.addf %236, %237 : vector<2x32xf32>
    %c2_178 = arith.constant 2 : index
    %c8_179 = arith.constant 8 : index
    %c0_180 = arith.constant 0 : index
    %239 = vector.load %arg8[%c2_178, %c8_179, %c0_180] : memref<4x16x32xf32, #tpu.memory_space<vmem>>, vector<1x2x32xf32>
    %240 = vector.shape_cast %239 : vector<1x2x32xf32> to vector<2x32xf32>
    %cst_181 = arith.constant dense<0.000000e+00> : vector<2x32xf32>
    %241 = tpu.matmul %230, %50, %cst_181 {dimension_numbers = #tpu.dot_dimension_numbers<[1], [0], [0], [1], [0, 0, 1, 1], [], []>} : vector<2x32xbf16>, vector<32x32xbf16>, vector<2x32xf32> -> vector<2x32xf32>
    %242 = arith.addf %240, %241 : vector<2x32xf32>
    %c3_182 = arith.constant 3 : index
    %c8_183 = arith.constant 8 : index
    %c0_184 = arith.constant 0 : index
    %243 = vector.load %arg8[%c3_182, %c8_183, %c0_184] : memref<4x16x32xf32, #tpu.memory_space<vmem>>, vector<1x2x32xf32>
    %244 = vector.shape_cast %243 : vector<1x2x32xf32> to vector<2x32xf32>
    %cst_185 = arith.constant dense<0.000000e+00> : vector<2x32xf32>
    %245 = tpu.matmul %230, %52, %cst_185 {dimension_numbers = #tpu.dot_dimension_numbers<[1], [0], [0], [1], [0, 0, 1, 1], [], []>} : vector<2x32xbf16>, vector<32x32xbf16>, vector<2x32xf32> -> vector<2x32xf32>
    %246 = arith.addf %244, %245 : vector<2x32xf32>
    %247 = arith.negf %234 : vector<2x32xf32>
    %248 = math.exp %247 : vector<2x32xf32>
    %cst_186 = arith.constant 1.000000e+00 : f32
    %249 = vector.broadcast %cst_186 : f32 to vector<2x32xf32>
    %250 = arith.addf %249, %248 : vector<2x32xf32>
    %251 = arith.divf %249, %250 : vector<2x32xf32>
    %252 = arith.negf %238 : vector<2x32xf32>
    %253 = math.exp %252 : vector<2x32xf32>
    %cst_187 = arith.constant 1.000000e+00 : f32
    %254 = vector.broadcast %cst_187 : f32 to vector<2x32xf32>
    %255 = arith.addf %254, %253 : vector<2x32xf32>
    %256 = arith.divf %254, %255 : vector<2x32xf32>
    %257 = math.tanh %242 : vector<2x32xf32>
    %258 = arith.negf %246 : vector<2x32xf32>
    %259 = math.exp %258 : vector<2x32xf32>
    %cst_188 = arith.constant 1.000000e+00 : f32
    %260 = vector.broadcast %cst_188 : f32 to vector<2x32xf32>
    %261 = arith.addf %260, %259 : vector<2x32xf32>
    %262 = arith.divf %260, %261 : vector<2x32xf32>
    %c0_189 = arith.constant 0 : index
    %c0_190 = arith.constant 0 : index
    %263 = vector.load %arg11[%c0_189, %c0_190] : memref<2x32xf32, #tpu.memory_space<vmem>>, vector<2x32xf32>
    %264 = arith.mulf %256, %263 : vector<2x32xf32>
    %265 = arith.mulf %251, %257 : vector<2x32xf32>
    %266 = arith.addf %264, %265 : vector<2x32xf32>
    %267 = math.tanh %266 : vector<2x32xf32>
    %268 = arith.mulf %262, %267 : vector<2x32xf32>
    %c0_191 = arith.constant 0 : index
    %c0_192 = arith.constant 0 : index
    %269 = vector.load %arg11[%c0_191, %c0_192] : memref<2x32xf32, #tpu.memory_space<vmem>>, vector<2x32xf32>
    tpu.vector_store %arg11[%c0_191, %c0_192], %266 {strides = array<i32>} : memref<2x32xf32, #tpu.memory_space<vmem>>, vector<2x32xf32>,
    %c0_193 = arith.constant 0 : index
    %c0_194 = arith.constant 0 : index
    %270 = vector.load %arg10[%c0_193, %c0_194] : memref<2x32xf32, #tpu.memory_space<vmem>>, vector<2x32xf32>
    tpu.vector_store %arg10[%c0_193, %c0_194], %268 {strides = array<i32>} : memref<2x32xf32, #tpu.memory_space<vmem>>, vector<2x32xf32>,
    %271 = arith.truncf %268 : vector<2x32xf32> to vector<2x32xbf16>
    %c8_195 = arith.constant 8 : index
    %c0_196 = arith.constant 0 : index
    %272 = vector.load %arg9[%c8_195, %c0_196] : memref<16x32xbf16, #tpu.memory_space<vmem>>, vector<2x32xbf16>
    tpu.vector_store %arg9[%c8_195, %c0_196], %271 {strides = array<i32>} : memref<16x32xbf16, #tpu.memory_space<vmem>>, vector<2x32xbf16>,
    %c0_197 = arith.constant 0 : index
    %c0_198 = arith.constant 0 : index
    %273 = vector.load %arg10[%c0_197, %c0_198] : memref<2x32xf32, #tpu.memory_space<vmem>>, vector<2x32xf32>
    %274 = arith.truncf %273 : vector<2x32xf32> to vector<2x32xbf16>
    %c0_199 = arith.constant 0 : index
    %c10 = arith.constant 10 : index
    %c0_200 = arith.constant 0 : index
    %275 = vector.load %arg8[%c0_199, %c10, %c0_200] : memref<4x16x32xf32, #tpu.memory_space<vmem>>, vector<1x2x32xf32>
    %276 = vector.shape_cast %275 : vector<1x2x32xf32> to vector<2x32xf32>
    %cst_201 = arith.constant dense<0.000000e+00> : vector<2x32xf32>
    %277 = tpu.matmul %274, %46, %cst_201 {dimension_numbers = #tpu.dot_dimension_numbers<[1], [0], [0], [1], [0, 0, 1, 1], [], []>} : vector<2x32xbf16>, vector<32x32xbf16>, vector<2x32xf32> -> vector<2x32xf32>
    %278 = arith.addf %276, %277 : vector<2x32xf32>
    %c1_202 = arith.constant 1 : index
    %c10_203 = arith.constant 10 : index
    %c0_204 = arith.constant 0 : index
    %279 = vector.load %arg8[%c1_202, %c10_203, %c0_204] : memref<4x16x32xf32, #tpu.memory_space<vmem>>, vector<1x2x32xf32>
    %280 = vector.shape_cast %279 : vector<1x2x32xf32> to vector<2x32xf32>
    %cst_205 = arith.constant dense<0.000000e+00> : vector<2x32xf32>
    %281 = tpu.matmul %274, %48, %cst_205 {dimension_numbers = #tpu.dot_dimension_numbers<[1], [0], [0], [1], [0, 0, 1, 1], [], []>} : vector<2x32xbf16>, vector<32x32xbf16>, vector<2x32xf32> -> vector<2x32xf32>
    %282 = arith.addf %280, %281 : vector<2x32xf32>
    %c2_206 = arith.constant 2 : index
    %c10_207 = arith.constant 10 : index
    %c0_208 = arith.constant 0 : index
    %283 = vector.load %arg8[%c2_206, %c10_207, %c0_208] : memref<4x16x32xf32, #tpu.memory_space<vmem>>, vector<1x2x32xf32>
    %284 = vector.shape_cast %283 : vector<1x2x32xf32> to vector<2x32xf32>
    %cst_209 = arith.constant dense<0.000000e+00> : vector<2x32xf32>
    %285 = tpu.matmul %274, %50, %cst_209 {dimension_numbers = #tpu.dot_dimension_numbers<[1], [0], [0], [1], [0, 0, 1, 1], [], []>} : vector<2x32xbf16>, vector<32x32xbf16>, vector<2x32xf32> -> vector<2x32xf32>
    %286 = arith.addf %284, %285 : vector<2x32xf32>
    %c3_210 = arith.constant 3 : index
    %c10_211 = arith.constant 10 : index
    %c0_212 = arith.constant 0 : index
    %287 = vector.load %arg8[%c3_210, %c10_211, %c0_212] : memref<4x16x32xf32, #tpu.memory_space<vmem>>, vector<1x2x32xf32>
    %288 = vector.shape_cast %287 : vector<1x2x32xf32> to vector<2x32xf32>
    %cst_213 = arith.constant dense<0.000000e+00> : vector<2x32xf32>
    %289 = tpu.matmul %274, %52, %cst_213 {dimension_numbers = #tpu.dot_dimension_numbers<[1], [0], [0], [1], [0, 0, 1, 1], [], []>} : vector<2x32xbf16>, vector<32x32xbf16>, vector<2x32xf32> -> vector<2x32xf32>
    %290 = arith.addf %288, %289 : vector<2x32xf32>
    %291 = arith.negf %278 : vector<2x32xf32>
    %292 = math.exp %291 : vector<2x32xf32>
    %cst_214 = arith.constant 1.000000e+00 : f32
    %293 = vector.broadcast %cst_214 : f32 to vector<2x32xf32>
    %294 = arith.addf %293, %292 : vector<2x32xf32>
    %295 = arith.divf %293, %294 : vector<2x32xf32>
    %296 = arith.negf %282 : vector<2x32xf32>
    %297 = math.exp %296 : vector<2x32xf32>
    %cst_215 = arith.constant 1.000000e+00 : f32
    %298 = vector.broadcast %cst_215 : f32 to vector<2x32xf32>
    %299 = arith.addf %298, %297 : vector<2x32xf32>
    %300 = arith.divf %298, %299 : vector<2x32xf32>
    %301 = math.tanh %286 : vector<2x32xf32>
    %302 = arith.negf %290 : vector<2x32xf32>
    %303 = math.exp %302 : vector<2x32xf32>
    %cst_216 = arith.constant 1.000000e+00 : f32
    %304 = vector.broadcast %cst_216 : f32 to vector<2x32xf32>
    %305 = arith.addf %304, %303 : vector<2x32xf32>
    %306 = arith.divf %304, %305 : vector<2x32xf32>
    %c0_217 = arith.constant 0 : index
    %c0_218 = arith.constant 0 : index
    %307 = vector.load %arg11[%c0_217, %c0_218] : memref<2x32xf32, #tpu.memory_space<vmem>>, vector<2x32xf32>
    %308 = arith.mulf %300, %307 : vector<2x32xf32>
    %309 = arith.mulf %295, %301 : vector<2x32xf32>
    %310 = arith.addf %308, %309 : vector<2x32xf32>
    %311 = math.tanh %310 : vector<2x32xf32>
    %312 = arith.mulf %306, %311 : vector<2x32xf32>
    %c0_219 = arith.constant 0 : index
    %c0_220 = arith.constant 0 : index
    %313 = vector.load %arg11[%c0_219, %c0_220] : memref<2x32xf32, #tpu.memory_space<vmem>>, vector<2x32xf32>
    tpu.vector_store %arg11[%c0_219, %c0_220], %310 {strides = array<i32>} : memref<2x32xf32, #tpu.memory_space<vmem>>, vector<2x32xf32>,
    %c0_221 = arith.constant 0 : index
    %c0_222 = arith.constant 0 : index
    %314 = vector.load %arg10[%c0_221, %c0_222] : memref<2x32xf32, #tpu.memory_space<vmem>>, vector<2x32xf32>
    tpu.vector_store %arg10[%c0_221, %c0_222], %312 {strides = array<i32>} : memref<2x32xf32, #tpu.memory_space<vmem>>, vector<2x32xf32>,
    %315 = arith.truncf %312 : vector<2x32xf32> to vector<2x32xbf16>
    %c10_223 = arith.constant 10 : index
    %c0_224 = arith.constant 0 : index
    %316 = vector.load %arg9[%c10_223, %c0_224] : memref<16x32xbf16, #tpu.memory_space<vmem>>, vector<2x32xbf16>
    tpu.vector_store %arg9[%c10_223, %c0_224], %315 {strides = array<i32>} : memref<16x32xbf16, #tpu.memory_space<vmem>>, vector<2x32xbf16>,
    %c0_225 = arith.constant 0 : index
    %c0_226 = arith.constant 0 : index
    %317 = vector.load %arg10[%c0_225, %c0_226] : memref<2x32xf32, #tpu.memory_space<vmem>>, vector<2x32xf32>
    %318 = arith.truncf %317 : vector<2x32xf32> to vector<2x32xbf16>
    %c0_227 = arith.constant 0 : index
    %c12 = arith.constant 12 : index
    %c0_228 = arith.constant 0 : index
    %319 = vector.load %arg8[%c0_227, %c12, %c0_228] : memref<4x16x32xf32, #tpu.memory_space<vmem>>, vector<1x2x32xf32>
    %320 = vector.shape_cast %319 : vector<1x2x32xf32> to vector<2x32xf32>
    %cst_229 = arith.constant dense<0.000000e+00> : vector<2x32xf32>
    %321 = tpu.matmul %318, %46, %cst_229 {dimension_numbers = #tpu.dot_dimension_numbers<[1], [0], [0], [1], [0, 0, 1, 1], [], []>} : vector<2x32xbf16>, vector<32x32xbf16>, vector<2x32xf32> -> vector<2x32xf32>
    %322 = arith.addf %320, %321 : vector<2x32xf32>
    %c1_230 = arith.constant 1 : index
    %c12_231 = arith.constant 12 : index
    %c0_232 = arith.constant 0 : index
    %323 = vector.load %arg8[%c1_230, %c12_231, %c0_232] : memref<4x16x32xf32, #tpu.memory_space<vmem>>, vector<1x2x32xf32>
    %324 = vector.shape_cast %323 : vector<1x2x32xf32> to vector<2x32xf32>
    %cst_233 = arith.constant dense<0.000000e+00> : vector<2x32xf32>
    %325 = tpu.matmul %318, %48, %cst_233 {dimension_numbers = #tpu.dot_dimension_numbers<[1], [0], [0], [1], [0, 0, 1, 1], [], []>} : vector<2x32xbf16>, vector<32x32xbf16>, vector<2x32xf32> -> vector<2x32xf32>
    %326 = arith.addf %324, %325 : vector<2x32xf32>
    %c2_234 = arith.constant 2 : index
    %c12_235 = arith.constant 12 : index
    %c0_236 = arith.constant 0 : index
    %327 = vector.load %arg8[%c2_234, %c12_235, %c0_236] : memref<4x16x32xf32, #tpu.memory_space<vmem>>, vector<1x2x32xf32>
    %328 = vector.shape_cast %327 : vector<1x2x32xf32> to vector<2x32xf32>
    %cst_237 = arith.constant dense<0.000000e+00> : vector<2x32xf32>
    %329 = tpu.matmul %318, %50, %cst_237 {dimension_numbers = #tpu.dot_dimension_numbers<[1], [0], [0], [1], [0, 0, 1, 1], [], []>} : vector<2x32xbf16>, vector<32x32xbf16>, vector<2x32xf32> -> vector<2x32xf32>
    %330 = arith.addf %328, %329 : vector<2x32xf32>
    %c3_238 = arith.constant 3 : index
    %c12_239 = arith.constant 12 : index
    %c0_240 = arith.constant 0 : index
    %331 = vector.load %arg8[%c3_238, %c12_239, %c0_240] : memref<4x16x32xf32, #tpu.memory_space<vmem>>, vector<1x2x32xf32>
    %332 = vector.shape_cast %331 : vector<1x2x32xf32> to vector<2x32xf32>
    %cst_241 = arith.constant dense<0.000000e+00> : vector<2x32xf32>
    %333 = tpu.matmul %318, %52, %cst_241 {dimension_numbers = #tpu.dot_dimension_numbers<[1], [0], [0], [1], [0, 0, 1, 1], [], []>} : vector<2x32xbf16>, vector<32x32xbf16>, vector<2x32xf32> -> vector<2x32xf32>
    %334 = arith.addf %332, %333 : vector<2x32xf32>
    %335 = arith.negf %322 : vector<2x32xf32>
    %336 = math.exp %335 : vector<2x32xf32>
    %cst_242 = arith.constant 1.000000e+00 : f32
    %337 = vector.broadcast %cst_242 : f32 to vector<2x32xf32>
    %338 = arith.addf %337, %336 : vector<2x32xf32>
    %339 = arith.divf %337, %338 : vector<2x32xf32>
    %340 = arith.negf %326 : vector<2x32xf32>
    %341 = math.exp %340 : vector<2x32xf32>
    %cst_243 = arith.constant 1.000000e+00 : f32
    %342 = vector.broadcast %cst_243 : f32 to vector<2x32xf32>
    %343 = arith.addf %342, %341 : vector<2x32xf32>
    %344 = arith.divf %342, %343 : vector<2x32xf32>
    %345 = math.tanh %330 : vector<2x32xf32>
    %346 = arith.negf %334 : vector<2x32xf32>
    %347 = math.exp %346 : vector<2x32xf32>
    %cst_244 = arith.constant 1.000000e+00 : f32
    %348 = vector.broadcast %cst_244 : f32 to vector<2x32xf32>
    %349 = arith.addf %348, %347 : vector<2x32xf32>
    %350 = arith.divf %348, %349 : vector<2x32xf32>
    %c0_245 = arith.constant 0 : index
    %c0_246 = arith.constant 0 : index
    %351 = vector.load %arg11[%c0_245, %c0_246] : memref<2x32xf32, #tpu.memory_space<vmem>>, vector<2x32xf32>
    %352 = arith.mulf %344, %351 : vector<2x32xf32>
    %353 = arith.mulf %339, %345 : vector<2x32xf32>
    %354 = arith.addf %352, %353 : vector<2x32xf32>
    %355 = math.tanh %354 : vector<2x32xf32>
    %356 = arith.mulf %350, %355 : vector<2x32xf32>
    %c0_247 = arith.constant 0 : index
    %c0_248 = arith.constant 0 : index
    %357 = vector.load %arg11[%c0_247, %c0_248] : memref<2x32xf32, #tpu.memory_space<vmem>>, vector<2x32xf32>
    tpu.vector_store %arg11[%c0_247, %c0_248], %354 {strides = array<i32>} : memref<2x32xf32, #tpu.memory_space<vmem>>, vector<2x32xf32>,
    %c0_249 = arith.constant 0 : index
    %c0_250 = arith.constant 0 : index
    %358 = vector.load %arg10[%c0_249, %c0_250] : memref<2x32xf32, #tpu.memory_space<vmem>>, vector<2x32xf32>
    tpu.vector_store %arg10[%c0_249, %c0_250], %356 {strides = array<i32>} : memref<2x32xf32, #tpu.memory_space<vmem>>, vector<2x32xf32>,
    %359 = arith.truncf %356 : vector<2x32xf32> to vector<2x32xbf16>
    %c12_251 = arith.constant 12 : index
    %c0_252 = arith.constant 0 : index
    %360 = vector.load %arg9[%c12_251, %c0_252] : memref<16x32xbf16, #tpu.memory_space<vmem>>, vector<2x32xbf16>
    tpu.vector_store %arg9[%c12_251, %c0_252], %359 {strides = array<i32>} : memref<16x32xbf16, #tpu.memory_space<vmem>>, vector<2x32xbf16>,
    %c0_253 = arith.constant 0 : index
    %c0_254 = arith.constant 0 : index
    %361 = vector.load %arg10[%c0_253, %c0_254] : memref<2x32xf32, #tpu.memory_space<vmem>>, vector<2x32xf32>
    %362 = arith.truncf %361 : vector<2x32xf32> to vector<2x32xbf16>
    %c0_255 = arith.constant 0 : index
    %c14 = arith.constant 14 : index
    %c0_256 = arith.constant 0 : index
    %363 = vector.load %arg8[%c0_255, %c14, %c0_256] : memref<4x16x32xf32, #tpu.memory_space<vmem>>, vector<1x2x32xf32>
    %364 = vector.shape_cast %363 : vector<1x2x32xf32> to vector<2x32xf32>
    %cst_257 = arith.constant dense<0.000000e+00> : vector<2x32xf32>
    %365 = tpu.matmul %362, %46, %cst_257 {dimension_numbers = #tpu.dot_dimension_numbers<[1], [0], [0], [1], [0, 0, 1, 1], [], []>} : vector<2x32xbf16>, vector<32x32xbf16>, vector<2x32xf32> -> vector<2x32xf32>
    %366 = arith.addf %364, %365 : vector<2x32xf32>
    %c1_258 = arith.constant 1 : index
    %c14_259 = arith.constant 14 : index
    %c0_260 = arith.constant 0 : index
    %367 = vector.load %arg8[%c1_258, %c14_259, %c0_260] : memref<4x16x32xf32, #tpu.memory_space<vmem>>, vector<1x2x32xf32>
    %368 = vector.shape_cast %367 : vector<1x2x32xf32> to vector<2x32xf32>
    %cst_261 = arith.constant dense<0.000000e+00> : vector<2x32xf32>
    %369 = tpu.matmul %362, %48, %cst_261 {dimension_numbers = #tpu.dot_dimension_numbers<[1], [0], [0], [1], [0, 0, 1, 1], [], []>} : vector<2x32xbf16>, vector<32x32xbf16>, vector<2x32xf32> -> vector<2x32xf32>
    %370 = arith.addf %368, %369 : vector<2x32xf32>
    %c2_262 = arith.constant 2 : index
    %c14_263 = arith.constant 14 : index
    %c0_264 = arith.constant 0 : index
    %371 = vector.load %arg8[%c2_262, %c14_263, %c0_264] : memref<4x16x32xf32, #tpu.memory_space<vmem>>, vector<1x2x32xf32>
    %372 = vector.shape_cast %371 : vector<1x2x32xf32> to vector<2x32xf32>
    %cst_265 = arith.constant dense<0.000000e+00> : vector<2x32xf32>
    %373 = tpu.matmul %362, %50, %cst_265 {dimension_numbers = #tpu.dot_dimension_numbers<[1], [0], [0], [1], [0, 0, 1, 1], [], []>} : vector<2x32xbf16>, vector<32x32xbf16>, vector<2x32xf32> -> vector<2x32xf32>
    %374 = arith.addf %372, %373 : vector<2x32xf32>
    %c3_266 = arith.constant 3 : index
    %c14_267 = arith.constant 14 : index
    %c0_268 = arith.constant 0 : index
    %375 = vector.load %arg8[%c3_266, %c14_267, %c0_268] : memref<4x16x32xf32, #tpu.memory_space<vmem>>, vector<1x2x32xf32>
    %376 = vector.shape_cast %375 : vector<1x2x32xf32> to vector<2x32xf32>
    %cst_269 = arith.constant dense<0.000000e+00> : vector<2x32xf32>
    %377 = tpu.matmul %362, %52, %cst_269 {dimension_numbers = #tpu.dot_dimension_numbers<[1], [0], [0], [1], [0, 0, 1, 1], [], []>} : vector<2x32xbf16>, vector<32x32xbf16>, vector<2x32xf32> -> vector<2x32xf32>
    %378 = arith.addf %376, %377 : vector<2x32xf32>
    %379 = arith.negf %366 : vector<2x32xf32>
    %380 = math.exp %379 : vector<2x32xf32>
    %cst_270 = arith.constant 1.000000e+00 : f32
    %381 = vector.broadcast %cst_270 : f32 to vector<2x32xf32>
    %382 = arith.addf %381, %380 : vector<2x32xf32>
    %383 = arith.divf %381, %382 : vector<2x32xf32>
    %384 = arith.negf %370 : vector<2x32xf32>
    %385 = math.exp %384 : vector<2x32xf32>
    %cst_271 = arith.constant 1.000000e+00 : f32
    %386 = vector.broadcast %cst_271 : f32 to vector<2x32xf32>
    %387 = arith.addf %386, %385 : vector<2x32xf32>
    %388 = arith.divf %386, %387 : vector<2x32xf32>
    %389 = math.tanh %374 : vector<2x32xf32>
    %390 = arith.negf %378 : vector<2x32xf32>
    %391 = math.exp %390 : vector<2x32xf32>
    %cst_272 = arith.constant 1.000000e+00 : f32
    %392 = vector.broadcast %cst_272 : f32 to vector<2x32xf32>
    %393 = arith.addf %392, %391 : vector<2x32xf32>
    %394 = arith.divf %392, %393 : vector<2x32xf32>
    %c0_273 = arith.constant 0 : index
    %c0_274 = arith.constant 0 : index
    %395 = vector.load %arg11[%c0_273, %c0_274] : memref<2x32xf32, #tpu.memory_space<vmem>>, vector<2x32xf32>
    %396 = arith.mulf %388, %395 : vector<2x32xf32>
    %397 = arith.mulf %383, %389 : vector<2x32xf32>
    %398 = arith.addf %396, %397 : vector<2x32xf32>
    %399 = math.tanh %398 : vector<2x32xf32>
    %400 = arith.mulf %394, %399 : vector<2x32xf32>
    %c0_275 = arith.constant 0 : index
    %c0_276 = arith.constant 0 : index
    %401 = vector.load %arg11[%c0_275, %c0_276] : memref<2x32xf32, #tpu.memory_space<vmem>>, vector<2x32xf32>
    tpu.vector_store %arg11[%c0_275, %c0_276], %398 {strides = array<i32>} : memref<2x32xf32, #tpu.memory_space<vmem>>, vector<2x32xf32>,
    %c0_277 = arith.constant 0 : index
    %c0_278 = arith.constant 0 : index
    %402 = vector.load %arg10[%c0_277, %c0_278] : memref<2x32xf32, #tpu.memory_space<vmem>>, vector<2x32xf32>
    tpu.vector_store %arg10[%c0_277, %c0_278], %400 {strides = array<i32>} : memref<2x32xf32, #tpu.memory_space<vmem>>, vector<2x32xf32>,
    %403 = arith.truncf %400 : vector<2x32xf32> to vector<2x32xbf16>
    %c14_279 = arith.constant 14 : index
    %c0_280 = arith.constant 0 : index
    %404 = vector.load %arg9[%c14_279, %c0_280] : memref<16x32xbf16, #tpu.memory_space<vmem>>, vector<2x32xbf16>
    tpu.vector_store %arg9[%c14_279, %c0_280], %403 {strides = array<i32>} : memref<16x32xbf16, #tpu.memory_space<vmem>>, vector<2x32xbf16>,
    %c0_281 = arith.constant 0 : index
    %c0_282 = arith.constant 0 : index
    %405 = vector.load %arg9[%c0_281, %c0_282] : memref<16x32xbf16, #tpu.memory_space<vmem>>, vector<16x32xbf16>
    %c0_283 = arith.constant 0 : index
    %c0_284 = arith.constant 0 : index
    %406 = vector.load %arg5[%c0_283, %c0_284] : memref<32x128xbf16, #tpu.memory_space<vmem>>, vector<32x128xbf16>
    %cst_285 = arith.constant dense<0.000000e+00> : vector<16x128xf32>
    %407 = tpu.matmul %405, %406, %cst_285 {dimension_numbers = #tpu.dot_dimension_numbers<[1], [0], [0], [1], [0, 0, 1, 1], [], []>} : vector<16x32xbf16>, vector<32x128xbf16>, vector<16x128xf32> -> vector<16x128xf32>
    %c0_286 = arith.constant 0 : index
    %c0_287 = arith.constant 0 : index
    %408 = vector.load %arg6[%c0_286, %c0_287] : memref<1x128xf32, #tpu.memory_space<vmem>>, vector<1x128xf32>
    %409 = vector.broadcast %408 : vector<1x128xf32> to vector<16x128xf32>
    %410 = arith.addf %407, %409 : vector<16x128xf32>
    %cst_288 = arith.constant dense<0xFF800000> : vector<16xf32>
    %411 = vector.multi_reduction <maximumf>, %410, %cst_288 [1] : vector<16x128xf32> to vector<16xf32>
    %412 = vector.shape_cast %411 : vector<16xf32> to vector<16x1xf32>
    %413 = vector.broadcast %412 : vector<16x1xf32> to vector<16x128xf32>
    %414 = arith.subf %410, %413 : vector<16x128xf32>
    %415 = math.exp %414 : vector<16x128xf32>
    %cst_289 = arith.constant dense<0.000000e+00> : vector<16xf32>
    %416 = vector.multi_reduction <add>, %415, %cst_289 [1] : vector<16x128xf32> to vector<16xf32>
    %417 = vector.shape_cast %416 : vector<16xf32> to vector<16x1xf32>
    %418 = tpu.reciprocal %417 {approx = true} : vector<16x1xf32> -> vector<16x1xf32>
    %419 = vector.broadcast %418 : vector<16x1xf32> to vector<16x128xf32>
    %420 = arith.mulf %415, %419 : vector<16x128xf32>
    %c0_290 = arith.constant 0 : index
    %c0_291 = arith.constant 0 : index
    %421 = vector.load %arg7[%c0_290, %c0_291] : memref<16x128xf32, #tpu.memory_space<vmem>>, vector<16x128xf32>
    tpu.vector_store %arg7[%c0_290, %c0_291], %420 {strides = array<i32>} : memref<16x128xf32, #tpu.memory_space<vmem>>, vector<16x128xf32>,
    return
  }
  func.func @transform_0(%arg0: i32) -> (i32, i32) {
    %c0_i32 = arith.constant 0 : i32
    %c0_i32_0 = arith.constant 0 : i32
    %c0_i32_1 = arith.constant 0 : i32
    return %c0_i32, %c0_i32_0 : i32, i32
  }
  func.func @transform_1(%arg0: i32) -> (i32, i32, i32) {
    %c0_i32 = arith.constant 0 : i32
    %c0_i32_0 = arith.constant 0 : i32
    %c0_i32_1 = arith.constant 0 : i32
    %c0_i32_2 = arith.constant 0 : i32
    return %c0_i32, %c0_i32_0, %c0_i32_1 : i32, i32, i32
  }
  func.func @transform_2(%arg0: i32) -> (i32, i32, i32) {
    %c0_i32 = arith.constant 0 : i32
    %c0_i32_0 = arith.constant 0 : i32
    %c0_i32_1 = arith.constant 0 : i32
    %c0_i32_2 = arith.constant 0 : i32
    return %c0_i32, %c0_i32_0, %c0_i32_1 : i32, i32, i32
  }
  func.func @transform_3(%arg0: i32) -> (i32, i32, i32) {
    %c0_i32 = arith.constant 0 : i32
    %c0_i32_0 = arith.constant 0 : i32
    %c0_i32_1 = arith.constant 0 : i32
    %c0_i32_2 = arith.constant 0 : i32
    return %c0_i32, %c0_i32_0, %c0_i32_1 : i32, i32, i32
  }
  func.func @transform_4(%arg0: i32) -> (i32, i32) {
    %c0_i32 = arith.constant 0 : i32
    %c0_i32_0 = arith.constant 0 : i32
    %c0_i32_1 = arith.constant 0 : i32
    return %c0_i32, %c0_i32_0 : i32, i32
  }
  func.func @transform_5(%arg0: i32) -> (i32, i32) {
    %c0_i32 = arith.constant 0 : i32
    %c0_i32_0 = arith.constant 0 : i32
    %c0_i32_1 = arith.constant 0 : i32
    return %c0_i32, %c0_i32_0 : i32, i32
  }
  func.func @transform_6(%arg0: i32) -> (i32, i32) {
    %c0_i32 = arith.constant 0 : i32
    %c0_i32_0 = arith.constant 0 : i32
    %c0_i32_1 = arith.constant 0 : i32
    return %c0_i32, %c0_i32_0 : i32, i32
  }
}

</mosaic_0001>

<llo_original>
// kernel: tpu_custom_call.1
$region0: #{tpu_custom_call.1}
  #allocation0 [shape = 'u32[]', space=smem, size = 0x4, offset = 0x4, fixed_abs, tag = 'smem constant byte address 0x4 - core index']
  #allocation1 [shape = 'u32[144,128]{1,0:T(1,128)}', space=vmem, size = 0x12000, scoped, tag = 'internal scratch']
  #allocation2 [shape = 'f32[4,16,32]{2,1,0:T(8,128)}', space=vmem, size = 0x8000, scoped, tag = 'scratch operand']
  #allocation3 [shape = 'bf16[16,32]{1,0:T(8,128)(2,1)}', space=vmem, size = 0x1000, scoped, tag = 'scratch operand']
  #allocation4 [shape = 'f32[2,32]{1,0:T(2,128)}', space=vmem, size = 0x400, scoped, tag = 'scratch operand']
  #allocation5 [shape = 'f32[2,32]{1,0:T(2,128)}', space=vmem, size = 0x400, scoped, tag = 'scratch operand']
  %s0 = inlined_call_operand.hbm [shape: bf16[16,32], index: 0, kind: input, shape index: {}]
  %s1 = inlined_call_operand.hbm [shape: bf16[4,32,32], index: 1, kind: input, shape index: {}]
  %s2 = inlined_call_operand.hbm [shape: bf16[4,32,32], index: 2, kind: input, shape index: {}]
  %s3 = inlined_call_operand.vmem [shape: f32[4,1,32], index: 3, kind: input, shape index: {}]
  %s4 = inlined_call_operand.hbm [shape: bf16[32,128], index: 4, kind: input, shape index: {}]
  %s5 = inlined_call_operand.vmem [shape: f32[1,128], index: 5, kind: input, shape index: {}]
  %s6 = inlined_call_operand.hbm [shape: f32[16,128], index: 6, kind: output, shape index: {}]
  %s7 = sld [smem:[#allocation0]]
  $region50: #{tpu_custom_call.1} parent=0
    _
  %s9 = ssub.s32 1, %s7
  %s10 = scalar_select 0, %s9, %s7
  $region1: #{tpu_custom_call.1} parent=0
    #allocation6 [shape = 'u8[4096]{0}', space=vmem, size = 0x1000, scoped, tag = 'input window, operand 0, single buffered']
    #allocation7 [shape = 's32[1]{0}', space=sflag, size = 0x4, scoped, tag = 'scoped memory for tpu_custom_call.1']
    #allocation8 [shape = 's32[1]{0}', space=sflag, size = 0x4, scoped, tag = 'scoped memory for tpu_custom_call.1']
    #allocation9 [shape = 'u8[32768]{0}', space=vmem, size = 0x8000, scoped, tag = 'input window, operand 1, single buffered']
    #allocation10 [shape = 's32[1]{0}', space=sflag, size = 0x4, scoped, tag = 'scoped memory for tpu_custom_call.1']
    #allocation11 [shape = 'u8[32768]{0}', space=vmem, size = 0x8000, scoped, tag = 'input window, operand 2, single buffered']
    #allocation12 [shape = 'u8[8192]{0}', space=vmem, size = 0x2000, scoped, tag = 'input window, operand 4, single buffered']
    #allocation13 [shape = 's32[1]{0}', space=sflag, size = 0x4, scoped, tag = 'scoped memory for tpu_custom_call.1']
    #allocation14 [shape = 'u8[8192]{0}', space=vmem, size = 0x2000, scoped, tag = 'output window, operand 0, single buffered']
    %11 = vsyncpa [#allocation7], 0
    %12 = vsyncpa [#allocation10], 0
    %13 = vsyncpa [#allocation13], 0
    %14 = vsyncpa [#allocation8], 0
    // Predicated region
    $region2: #{tpu_custom_call.1} parent=1 // pred_check
      _
    $region3: #{tpu_custom_call.1} parent=1 // pred_check_branch
      %16 = sbr.rel (0) target = $region5
    $region4: #{tpu_custom_call.1} parent=1 // pred_region
      %s18 = ssub.s32 128, 128
      %19 = vsyncadd [#allocation7], %s18
      %s20 = sshll.u32 [#allocation6], 4
      %s21 = int_to_ptr.vmem [resolvable:$true] %s20
      %26 = dma.hbm_to_vmem [thread:$0]  %s0, 128, %s21, [#allocation7], 64, 64, 4
    $region5: #{tpu_custom_call.1} parent=1 // pred_fallthru
      _
    // Predicated region
    $region6: #{tpu_custom_call.1} parent=1 // pred_check
      _
    $region7: #{tpu_custom_call.1} parent=1 // pred_check_branch
      %28 = sbr.rel (0) target = $region9
    $region8: #{tpu_custom_call.1} parent=1 // pred_region
      %s30 = ssub.s32 1024, 1024
      %31 = vsyncadd [#allocation10], %s30
      %s32 = sshll.u32 [#allocation9], 4
      %s33 = int_to_ptr.vmem [resolvable:$true] %s32
      %38 = dma.hbm_to_vmem [thread:$0]  %s1, 1024, %s33, [#allocation10], 64, 64, 4
    $region9: #{tpu_custom_call.1} parent=1 // pred_fallthru
      _
    // Predicated region
    $region10: #{tpu_custom_call.1} parent=1 // pred_check
      _
    $region11: #{tpu_custom_call.1} parent=1 // pred_check_branch
      %40 = sbr.rel (0) target = $region13
    $region12: #{tpu_custom_call.1} parent=1 // pred_region
      %s42 = ssub.s32 1024, 1024
      %43 = vsyncadd [#allocation10], %s42
      %s44 = sshll.u32 [#allocation11], 4
      %s45 = int_to_ptr.vmem [resolvable:$true] %s44
      %50 = dma.hbm_to_vmem [thread:$0]  %s2, 1024, %s45, [#allocation10], 64, 64, 4
    $region13: #{tpu_custom_call.1} parent=1 // pred_fallthru
      _
    // Predicated region
    $region14: #{tpu_custom_call.1} parent=1 // pred_check
      _
    $region15: #{tpu_custom_call.1} parent=1 // pred_check_branch
      %52 = sbr.rel (0) target = $region17
    $region16: #{tpu_custom_call.1} parent=1 // pred_region
      _
    $region17: #{tpu_custom_call.1} parent=1 // pred_fallthru
      _
    // Predicated region
    $region18: #{tpu_custom_call.1} parent=1 // pred_check
      _
    $region19: #{tpu_custom_call.1} parent=1 // pred_check_branch
      %54 = sbr.rel (0) target = $region21
    $region20: #{tpu_custom_call.1} parent=1 // pred_region
      %s56 = ssub.s32 256, 256
      %57 = vsyncadd [#allocation13], %s56
      %s58 = sshll.u32 [#allocation12], 4
      %s59 = int_to_ptr.vmem [resolvable:$true] %s58
      %64 = dma.hbm_to_vmem [thread:$0]  %s4, 256, %s59, [#allocation13], 64, 64, 4
    $region21: #{tpu_custom_call.1} parent=1 // pred_fallthru
      _
    // Predicated region
    $region22: #{tpu_custom_call.1} parent=1 // pred_check
      _
    $region23: #{tpu_custom_call.1} parent=1 // pred_check_branch
      %66 = sbr.rel (0) target = $region25
    $region24: #{tpu_custom_call.1} parent=1 // pred_region
      _
    $region25: #{tpu_custom_call.1} parent=1 // pred_fallthru
      _
    // Predicated region
    $region26: #{tpu_custom_call.1} parent=1 // pred_check
      _
    $region27: #{tpu_custom_call.1} parent=1 // pred_check_branch
      %68 = sbr.rel (0) target = $region29
    $region28: #{tpu_custom_call.1} parent=1 // pred_region
      %69 = dma.done [#allocation7], 128
    $region29: #{tpu_custom_call.1} parent=1 // pred_fallthru
      _
    // Predicated region
    $region30: #{tpu_custom_call.1} parent=1 // pred_check
      _
    $region31: #{tpu_custom_call.1} parent=1 // pred_check_branch
      %71 = sbr.rel (0) target = $region33
    $region32: #{tpu_custom_call.1} parent=1 // pred_region
      %72 = dma.done [#allocation10], 1024
    $region33: #{tpu_custom_call.1} parent=1 // pred_fallthru
      _
    // Predicated region
    $region34: #{tpu_custom_call.1} parent=1 // pred_check
      _
    $region35: #{tpu_custom_call.1} parent=1 // pred_check_branch
      %74 = sbr.rel (0) target = $region37
    $region36: #{tpu_custom_call.1} parent=1 // pred_region
      %75 = dma.done [#allocation10], 1024
    $region37: #{tpu_custom_call.1} parent=1 // pred_fallthru
      _
    // Predicated region
    $region38: #{tpu_custom_call.1} parent=1 // pred_check
      _
    $region39: #{tpu_custom_call.1} parent=1 // pred_check_branch
      %77 = sbr.rel (0) target = $region41
    $region40: #{tpu_custom_call.1} parent=1 // pred_region
      %78 = dma.done [#allocation13], 256
    $region41: #{tpu_custom_call.1} parent=1 // pred_fallthru
      _
    %v80 = vld [vmem:[#allocation6] sm:$0xf]
    %v81 = vld [vmem:[#allocation6 + $0x4] sm:$0xf]
    %v82 = vld [vmem:[#allocation9] sm:$0xf]
    %v83 = vld [vmem:[#allocation9 + $0x4] sm:$0xf]
    %v84 = vld [vmem:[#allocation9 + $0x8] sm:$0xf]
    %v85 = vld [vmem:[#allocation9 + $0xc] sm:$0xf]
    %v86 = vld [vmem:[%s3] sm:$0x1]
    %v88 = vlaneseq
    %v89 = vshrl.u32 %v88, 7
    %v90 = vsub.s32 0, %v89
    %v91 = vrot.slane %v86, %v90
    %v95 = vunpack.c.l.b16 %v80
    %v96 = vunpack.c.l.b16 %v81
    %v97 = vpack.c.b16 %v96, %v95
    %v102 = vunpack.c.l.b16 %v82
    %v103 = vunpack.c.l.b16 %v83
    %v104 = vunpack.c.l.b16 %v84
    %v105 = vunpack.c.l.b16 %v85
    %v106 = vpack.c.b16 %v103, %v102
    %v107 = vpack.c.b16 %v105, %v104
    %vm110 = vcmask 261120
    %v112 = vsel %vm110, %v97, 0
    %114 = vmatprep.subr.bf16.mxu0 0
    %115 = vmatpush1.bf16.msra.mxu0 0
    %116 = vmatprep.subr.bf16.mxu0 0
    %117 = vmatpush1.bf16.msra.mxu0 0
    %118 = vmatprep.subr.bf16.mxu0 0
    %119 = vmatpush1.bf16.msra.mxu0 0
    %120 = vmatprep.subr.bf16.mxu0 0
    %121 = vmatpush1.bf16.msra.mxu0 0
    %122 = vmatprep.subr.bf16.mxu0 0
    %123 = vmatpush1.bf16.msra.mxu0 0
    %124 = vmatprep.subr.bf16.mxu0 0
    %125 = vmatpush1.bf16.msra.mxu0 0
    %126 = vmatprep.subr.bf16.mxu0 0
    %127 = vmatpush1.bf16.msra.mxu0 %v107
    %128 = vmatprep.subr.bf16.mxu0 0
    %129 = vmatpush1.bf16.msra.mxu0 %v106
    %130 = vmatprep.subr.bf16.mxu0 0
    %131 = vmatpush2.bf16.msra.mxu0 0
    %132 = vmatprep.subr.bf16.mxu0 0
    %133 = vmatpush2.bf16.msra.mxu0 0
    %134 = vmatprep.subr.bf16.mxu0 0
    %135 = vmatpush2.bf16.msra.mxu0 0
    %136 = vmatprep.subr.bf16.mxu0 0
    %137 = vmatpush2.bf16.msra.mxu0 0
    %138 = vmatprep.subr.bf16.mxu0 0
    %139 = vmatpush2.bf16.msra.mxu0 0
    %140 = vmatprep.subr.bf16.mxu0 0
    %141 = vmatpush2.bf16.msra.mxu0 0
    %142 = vmatprep.subr.bf16.mxu0 0
    %143 = vmatpush2.bf16.msra.mxu0 0
    %144 = vmatprep.subr.bf16.mxu0 0
    %145 = vmatpush2.bf16.msra.mxu0 0
    %146 = vmatprep.mubr.bf16.mxu0 0
    %147 = vmatmul.mubr.bf16.gmra.mxu0 %v112
    %v148 = vpop.f32.mrf.mxu0
    %v149 = vadd.f32 %v91, %v148
    %v150 = vpop.f32.mrf.mxu0
    %v151 = vpop.f32.mrf.mxu0
    %v152 = vadd.f32 %v91, %v151
    %v153 = vpop.f32.mrf.mxu0
    %154 = vdwg.mxu0
    %155 = vst.msk [vmem:[#allocation2] sm:$0xff] %vm110, %v149
    %156 = vst.msk [vmem:[#allocation2 + $0x8] sm:$0xff] %vm110, %v152
    %s157 = scalar_lea.vmem [#allocation9], 16
    %v158 = vld [vmem:[%s157] sm:$0xf]
    %v159 = vld [vmem:[%s157 + $0x4] sm:$0xf]
    %v160 = vld [vmem:[%s157 + $0x8] sm:$0xf]
    %v161 = vld [vmem:[%s157 + $0xc] sm:$0xf]
    %s162 = scalar_lea.vmem %s3, 1
    %v163 = vld [vmem:[%s162] sm:$0x1]
    %v165 = vlaneseq
    %v166 = vshrl.u32 %v165, 7
    %v167 = vsub.s32 0, %v166
    %v168 = vrot.slane %v163, %v167
    %v174 = vunpack.c.l.b16 %v158
    %v175 = vunpack.c.l.b16 %v159
    %v176 = vunpack.c.l.b16 %v160
    %v177 = vunpack.c.l.b16 %v161
    %v178 = vpack.c.b16 %v175, %v174
    %v179 = vpack.c.b16 %v177, %v176
    %182 = vmatprep.subr.bf16.mxu0 0
    %183 = vmatpush1.bf16.msra.mxu0 0
    %184 = vmatprep.subr.bf16.mxu0 0
    %185 = vmatpush1.bf16.msra.mxu0 0
    %186 = vmatprep.subr.bf16.mxu0 0
    %187 = vmatpush1.bf16.msra.mxu0 0
    %188 = vmatprep.subr.bf16.mxu0 0
    %189 = vmatpush1.bf16.msra.mxu0 0
    %190 = vmatprep.subr.bf16.mxu0 0
    %191 = vmatpush1.bf16.msra.mxu0 0
    %192 = vmatprep.subr.bf16.mxu0 0
    %193 = vmatpush1.bf16.msra.mxu0 0
    %194 = vmatprep.subr.bf16.mxu0 0
    %195 = vmatpush1.bf16.msra.mxu0 %v179
    %196 = vmatprep.subr.bf16.mxu0 0
    %197 = vmatpush1.bf16.msra.mxu0 %v178
    %198 = vmatprep.subr.bf16.mxu0 0
    %199 = vmatpush2.bf16.msra.mxu0 0
    %200 = vmatprep.subr.bf16.mxu0 0
    %201 = vmatpush2.bf16.msra.mxu0 0
    %202 = vmatprep.subr.bf16.mxu0 0
    %203 = vmatpush2.bf16.msra.mxu0 0
    %204 = vmatprep.subr.bf16.mxu0 0
    %205 = vmatpush2.bf16.msra.mxu0 0
    %206 = vmatprep.subr.bf16.mxu0 0
    %207 = vmatpush2.bf16.msra.mxu0 0
    %208 = vmatprep.subr.bf16.mxu0 0
    %209 = vmatpush2.bf16.msra.mxu0 0
    %210 = vmatprep.subr.bf16.mxu0 0
    %211 = vmatpush2.bf16.msra.mxu0 0
    %212 = vmatprep.subr.bf16.mxu0 0
    %213 = vmatpush2.bf16.msra.mxu0 0
    %214 = vmatprep.mubr.bf16.mxu0 0
    %215 = vmatmul.mubr.bf16.gmra.mxu0 %v112
    %v216 = vpop.f32.mrf.mxu0
    %v217 = vadd.f32 %v168, %v216
    %v218 = vpop.f32.mrf.mxu0
    %v219 = vpop.f32.mrf.mxu0
    %v220 = vadd.f32 %v168, %v219
    %v221 = vpop.f32.mrf.mxu0
    %222 = vdwg.mxu0
    %s223 = scalar_lea.vmem [#allocation2], 16
    %224 = vst.msk [vmem:[%s223] sm:$0xff] %vm110, %v217
    %225 = vst.msk [vmem:[%s223 + $0x8] sm:$0xff] %vm110, %v220
    %s226 = scalar_lea.vmem [#allocation9], 32
    %v227 = vld [vmem:[%s226] sm:$0xf]
    %v228 = vld [vmem:[%s226 + $0x4] sm:$0xf]
    %v229 = vld [vmem:[%s226 + $0x8] sm:$0xf]
    %v230 = vld [vmem:[%s226 + $0xc] sm:$0xf]
    %s231 = scalar_lea.vmem %s3, 2
    %v232 = vld [vmem:[%s231] sm:$0x1]
    %v234 = vlaneseq
    %v235 = vshrl.u32 %v234, 7
    %v236 = vsub.s32 0, %v235
    %v237 = vrot.slane %v232, %v236
    %v243 = vunpack.c.l.b16 %v227
    %v244 = vunpack.c.l.b16 %v228
    %v245 = vunpack.c.l.b16 %v229
    %v246 = vunpack.c.l.b16 %v230
    %v247 = vpack.c.b16 %v244, %v243
    %v248 = vpack.c.b16 %v246, %v245
    %251 = vmatprep.subr.bf16.mxu0 0
    %252 = vmatpush1.bf16.msra.mxu0 0
    %253 = vmatprep.subr.bf16.mxu0 0
    %254 = vmatpush1.bf16.msra.mxu0 0
    %255 = vmatprep.subr.bf16.mxu0 0
    %256 = vmatpush1.bf16.msra.mxu0 0
    %257 = vmatprep.subr.bf16.mxu0 0
    %258 = vmatpush1.bf16.msra.mxu0 0
    %259 = vmatprep.subr.bf16.mxu0 0
    %260 = vmatpush1.bf16.msra.mxu0 0
    %261 = vmatprep.subr.bf16.mxu0 0
    %262 = vmatpush1.bf16.msra.mxu0 0
    %263 = vmatprep.subr.bf16.mxu0 0
    %264 = vmatpush1.bf16.msra.mxu0 %v248
    %265 = vmatprep.subr.bf16.mxu0 0
    %266 = vmatpush1.bf16.msra.mxu0 %v247
    %267 = vmatprep.subr.bf16.mxu0 0
    %268 = vmatpush2.bf16.msra.mxu0 0
    %269 = vmatprep.subr.bf16.mxu0 0
    %270 = vmatpush2.bf16.msra.mxu0 0
    %271 = vmatprep.subr.bf16.mxu0 0
    %272 = vmatpush2.bf16.msra.mxu0 0
    %273 = vmatprep.subr.bf16.mxu0 0
    %274 = vmatpush2.bf16.msra.mxu0 0
    %275 = vmatprep.subr.bf16.mxu0 0
    %276 = vmatpush2.bf16.msra.mxu0 0
    %277 = vmatprep.subr.bf16.mxu0 0
    %278 = vmatpush2.bf16.msra.mxu0 0
    %279 = vmatprep.subr.bf16.mxu0 0
    %280 = vmatpush2.bf16.msra.mxu0 0
    %281 = vmatprep.subr.bf16.mxu0 0
    %282 = vmatpush2.bf16.msra.mxu0 0
    %283 = vmatprep.mubr.bf16.mxu0 0
    %284 = vmatmul.mubr.bf16.gmra.mxu0 %v112
    %v285 = vpop.f32.mrf.mxu0
    %v286 = vadd.f32 %v237, %v285
    %v287 = vpop.f32.mrf.mxu0
    %v288 = vpop.f32.mrf.mxu0
    %v289 = vadd.f32 %v237, %v288
    %v290 = vpop.f32.mrf.mxu0
    %291 = vdwg.mxu0
    %s292 = scalar_lea.vmem [#allocation2], 32
    %293 = vst.msk [vmem:[%s292] sm:$0xff] %vm110, %v286
    %294 = vst.msk [vmem:[%s292 + $0x8] sm:$0xff] %vm110, %v289
    %s295 = scalar_lea.vmem [#allocation9], 48
    %v296 = vld [vmem:[%s295] sm:$0xf]
    %v297 = vld [vmem:[%s295 + $0x4] sm:$0xf]
    %v298 = vld [vmem:[%s295 + $0x8] sm:$0xf]
    %v299 = vld [vmem:[%s295 + $0xc] sm:$0xf]
    %s300 = scalar_lea.vmem %s3, 3
    %v301 = vld [vmem:[%s300] sm:$0x1]
    %v303 = vlaneseq
    %v304 = vshrl.u32 %v303, 7
    %v305 = vsub.s32 0, %v304
    %v306 = vrot.slane %v301, %v305
    %v312 = vunpack.c.l.b16 %v296
    %v313 = vunpack.c.l.b16 %v297
    %v314 = vunpack.c.l.b16 %v298
    %v315 = vunpack.c.l.b16 %v299
    %v316 = vpack.c.b16 %v313, %v312
    %v317 = vpack.c.b16 %v315, %v314
    %320 = vmatprep.subr.bf16.mxu0 0
    %321 = vmatpush1.bf16.msra.mxu0 0
    %322 = vmatprep.subr.bf16.mxu0 0
    %323 = vmatpush1.bf16.msra.mxu0 0
    %324 = vmatprep.subr.bf16.mxu0 0
    %325 = vmatpush1.bf16.msra.mxu0 0
    %326 = vmatprep.subr.bf16.mxu0 0
    %327 = vmatpush1.bf16.msra.mxu0 0
    %328 = vmatprep.subr.bf16.mxu0 0
    %329 = vmatpush1.bf16.msra.mxu0 0
    %330 = vmatprep.subr.bf16.mxu0 0
    %331 = vmatpush1.bf16.msra.mxu0 0
    %332 = vmatprep.subr.bf16.mxu0 0
    %333 = vmatpush1.bf16.msra.mxu0 %v317
    %334 = vmatprep.subr.bf16.mxu0 0
    %335 = vmatpush1.bf16.msra.mxu0 %v316
    %336 = vmatprep.subr.bf16.mxu0 0
    %337 = vmatpush2.bf16.msra.mxu0 0
    %338 = vmatprep.subr.bf16.mxu0 0
    %339 = vmatpush2.bf16.msra.mxu0 0
    %340 = vmatprep.subr.bf16.mxu0 0
    %341 = vmatpush2.bf16.msra.mxu0 0
    %342 = vmatprep.subr.bf16.mxu0 0
    %343 = vmatpush2.bf16.msra.mxu0 0
    %344 = vmatprep.subr.bf16.mxu0 0
    %345 = vmatpush2.bf16.msra.mxu0 0
    %346 = vmatprep.subr.bf16.mxu0 0
    %347 = vmatpush2.bf16.msra.mxu0 0
    %348 = vmatprep.subr.bf16.mxu0 0
    %349 = vmatpush2.bf16.msra.mxu0 0
    %350 = vmatprep.subr.bf16.mxu0 0
    %351 = vmatpush2.bf16.msra.mxu0 0
    %352 = vmatprep.mubr.bf16.mxu0 0
    %353 = vmatmul.mubr.bf16.gmra.mxu0 %v112
    %v354 = vpop.f32.mrf.mxu0
    %v355 = vadd.f32 %v306, %v354
    %v356 = vpop.f32.mrf.mxu0
    %v357 = vpop.f32.mrf.mxu0
    %v358 = vadd.f32 %v306, %v357
    %v359 = vpop.f32.mrf.mxu0
    %360 = vdwg.mxu0
    %s361 = scalar_lea.vmem [#allocation2], 48
    %362 = vst.msk [vmem:[%s361] sm:$0xff] %vm110, %v355
    %363 = vst.msk [vmem:[%s361 + $0x8] sm:$0xff] %vm110, %v358
    %vm364 = vcmask 254976
    %365 = vst.msk [vmem:[#allocation4] sm:$0x3] %vm364, 0.0
    %366 = vst.msk [vmem:[#allocation5] sm:$0x3] %vm364, 0.0
    %v367 = vld [vmem:[#allocation11] sm:$0xf]
    %v368 = vld [vmem:[#allocation11 + $0x4] sm:$0xf]
    %v369 = vld [vmem:[#allocation11 + $0x8] sm:$0xf]
    %v370 = vld [vmem:[#allocation11 + $0xc] sm:$0xf]
    %s371 = scalar_lea.vmem [#allocation11], 16
    %v372 = vld [vmem:[%s371] sm:$0xf]
    %v373 = vld [vmem:[%s371 + $0x4] sm:$0xf]
    %v374 = vld [vmem:[%s371 + $0x8] sm:$0xf]
    %v375 = vld [vmem:[%s371 + $0xc] sm:$0xf]
    %s376 = scalar_lea.vmem [#allocation11], 32
    %v377 = vld [vmem:[%s376] sm:$0xf]
    %v378 = vld [vmem:[%s376 + $0x4] sm:$0xf]
    %v379 = vld [vmem:[%s376 + $0x8] sm:$0xf]
    %v380 = vld [vmem:[%s376 + $0xc] sm:$0xf]
    %s381 = scalar_lea.vmem [#allocation11], 48
    %v382 = vld [vmem:[%s381] sm:$0xf]
    %v383 = vld [vmem:[%s381 + $0x4] sm:$0xf]
    %v384 = vld [vmem:[%s381 + $0x8] sm:$0xf]
    %v385 = vld [vmem:[%s381 + $0xc] sm:$0xf]
    %v386 = vld [vmem:[#allocation4] sm:$0x3]
    %v387 = vpack.c.bf16 %v386, %v386
    %v388 = vld [vmem:[#allocation2] sm:$0x3]
    %v393 = vunpack.c.l.b16 %v367
    %v394 = vunpack.c.l.b16 %v368
    %v395 = vunpack.c.l.b16 %v369
    %v396 = vunpack.c.l.b16 %v370
    %v397 = vpack.c.b16 %v394, %v393
    %v398 = vpack.c.b16 %v396, %v395
    %v402 = vsel %vm110, %v387, 0
    %404 = vmatprep.subr.bf16.mxu0 0
    %405 = vmatpush1.bf16.msra.mxu0 0
    %406 = vmatprep.subr.bf16.mxu0 0
    %407 = vmatpush1.bf16.msra.mxu0 0
    %408 = vmatprep.subr.bf16.mxu0 0
    %409 = vmatpush1.bf16.msra.mxu0 0
    %410 = vmatprep.subr.bf16.mxu0 0
    %411 = vmatpush1.bf16.msra.mxu0 0
    %412 = vmatprep.subr.bf16.mxu0 0
    %413 = vmatpush1.bf16.msra.mxu0 0
    %414 = vmatprep.subr.bf16.mxu0 0
    %415 = vmatpush1.bf16.msra.mxu0 0
    %416 = vmatprep.subr.bf16.mxu0 0
    %417 = vmatpush1.bf16.msra.mxu0 %v398
    %418 = vmatprep.subr.bf16.mxu0 0
    %419 = vmatpush1.bf16.msra.mxu0 %v397
    %420 = vmatprep.subr.bf16.mxu0 0
    %421 = vmatpush2.bf16.msra.mxu0 0
    %422 = vmatprep.subr.bf16.mxu0 0
    %423 = vmatpush2.bf16.msra.mxu0 0
    %424 = vmatprep.subr.bf16.mxu0 0
    %425 = vmatpush2.bf16.msra.mxu0 0
    %426 = vmatprep.subr.bf16.mxu0 0
    %427 = vmatpush2.bf16.msra.mxu0 0
    %428 = vmatprep.subr.bf16.mxu0 0
    %429 = vmatpush2.bf16.msra.mxu0 0
    %430 = vmatprep.subr.bf16.mxu0 0
    %431 = vmatpush2.bf16.msra.mxu0 0
    %432 = vmatprep.subr.bf16.mxu0 0
    %433 = vmatpush2.bf16.msra.mxu0 0
    %434 = vmatprep.subr.bf16.mxu0 0
    %435 = vmatpush2.bf16.msra.mxu0 0
    %436 = vmatprep.mubr.bf16.mxu0 0
    %437 = vmatmul.mubr.bf16.gmra.mxu0 %v402
    %v438 = vpop.f32.mrf.mxu0
    %v439 = vadd.f32 0.0, %v438
    %v440 = vpop.f32.mrf.mxu0
    %v441 = vpop.f32.mrf.mxu0
    %v442 = vpop.f32.mrf.mxu0
    %443 = vdwg.mxu0
    %v444 = vadd.f32 %v388, %v439
    %v445 = vld [vmem:[%s223] sm:$0x3]
    %v450 = vunpack.c.l.b16 %v372
    %v451 = vunpack.c.l.b16 %v373
    %v452 = vunpack.c.l.b16 %v374
    %v453 = vunpack.c.l.b16 %v375
    %v454 = vpack.c.b16 %v451, %v450
    %v455 = vpack.c.b16 %v453, %v452
    %458 = vmatprep.subr.bf16.mxu0 0
    %459 = vmatpush1.bf16.msra.mxu0 0
    %460 = vmatprep.subr.bf16.mxu0 0
    %461 = vmatpush1.bf16.msra.mxu0 0
    %462 = vmatprep.subr.bf16.mxu0 0
    %463 = vmatpush1.bf16.msra.mxu0 0
    %464 = vmatprep.subr.bf16.mxu0 0
    %465 = vmatpush1.bf16.msra.mxu0 0
    %466 = vmatprep.subr.bf16.mxu0 0
    %467 = vmatpush1.bf16.msra.mxu0 0
    %468 = vmatprep.subr.bf16.mxu0 0
    %469 = vmatpush1.bf16.msra.mxu0 0
    %470 = vmatprep.subr.bf16.mxu0 0
    %471 = vmatpush1.bf16.msra.mxu0 %v455
    %472 = vmatprep.subr.bf16.mxu0 0
    %473 = vmatpush1.bf16.msra.mxu0 %v454
    %474 = vmatprep.subr.bf16.mxu0 0
    %475 = vmatpush2.bf16.msra.mxu0 0
    %476 = vmatprep.subr.bf16.mxu0 0
    %477 = vmatpush2.bf16.msra.mxu0 0
    %478 = vmatprep.subr.bf16.mxu0 0
    %479 = vmatpush2.bf16.msra.mxu0 0
    %480 = vmatprep.subr.bf16.mxu0 0
    %481 = vmatpush2.bf16.msra.mxu0 0
    %482 = vmatprep.subr.bf16.mxu0 0
    %483 = vmatpush2.bf16.msra.mxu0 0
    %484 = vmatprep.subr.bf16.mxu0 0
    %485 = vmatpush2.bf16.msra.mxu0 0
    %486 = vmatprep.subr.bf16.mxu0 0
    %487 = vmatpush2.bf16.msra.mxu0 0
    %488 = vmatprep.subr.bf16.mxu0 0
    %489 = vmatpush2.bf16.msra.mxu0 0
    %490 = vmatprep.mubr.bf16.mxu0 0
    %491 = vmatmul.mubr.bf16.gmra.mxu0 %v402
    %v492 = vpop.f32.mrf.mxu0
    %v493 = vadd.f32 0.0, %v492
    %v494 = vpop.f32.mrf.mxu0
    %v495 = vpop.f32.mrf.mxu0
    %v496 = vpop.f32.mrf.mxu0
    %497 = vdwg.mxu0
    %v498 = vadd.f32 %v445, %v493
    %v499 = vld [vmem:[%s292] sm:$0x3]
    %v504 = vunpack.c.l.b16 %v377
    %v505 = vunpack.c.l.b16 %v378
    %v506 = vunpack.c.l.b16 %v379
    %v507 = vunpack.c.l.b16 %v380
    %v508 = vpack.c.b16 %v505, %v504
    %v509 = vpack.c.b16 %v507, %v506
    %512 = vmatprep.subr.bf16.mxu0 0
    %513 = vmatpush1.bf16.msra.mxu0 0
    %514 = vmatprep.subr.bf16.mxu0 0
    %515 = vmatpush1.bf16.msra.mxu0 0
    %516 = vmatprep.subr.bf16.mxu0 0
    %517 = vmatpush1.bf16.msra.mxu0 0
    %518 = vmatprep.subr.bf16.mxu0 0
    %519 = vmatpush1.bf16.msra.mxu0 0
    %520 = vmatprep.subr.bf16.mxu0 0
    %521 = vmatpush1.bf16.msra.mxu0 0
    %522 = vmatprep.subr.bf16.mxu0 0
    %523 = vmatpush1.bf16.msra.mxu0 0
    %524 = vmatprep.subr.bf16.mxu0 0
    %525 = vmatpush1.bf16.msra.mxu0 %v509
    %526 = vmatprep.subr.bf16.mxu0 0
    %527 = vmatpush1.bf16.msra.mxu0 %v508
    %528 = vmatprep.subr.bf16.mxu0 0
    %529 = vmatpush2.bf16.msra.mxu0 0
    %530 = vmatprep.subr.bf16.mxu0 0
    %531 = vmatpush2.bf16.msra.mxu0 0
    %532 = vmatprep.subr.bf16.mxu0 0
    %533 = vmatpush2.bf16.msra.mxu0 0
    %534 = vmatprep.subr.bf16.mxu0 0
    %535 = vmatpush2.bf16.msra.mxu0 0
    %536 = vmatprep.subr.bf16.mxu0 0
    %537 = vmatpush2.bf16.msra.mxu0 0
    %538 = vmatprep.subr.bf16.mxu0 0
    %539 = vmatpush2.bf16.msra.mxu0 0
    %540 = vmatprep.subr.bf16.mxu0 0
    %541 = vmatpush2.bf16.msra.mxu0 0
    %542 = vmatprep.subr.bf16.mxu0 0
    %543 = vmatpush2.bf16.msra.mxu0 0
    %544 = vmatprep.mubr.bf16.mxu0 0
    %545 = vmatmul.mubr.bf16.gmra.mxu0 %v402
    %v546 = vpop.f32.mrf.mxu0
    %v547 = vadd.f32 0.0, %v546
    %v548 = vpop.f32.mrf.mxu0
    %v549 = vpop.f32.mrf.mxu0
    %v550 = vpop.f32.mrf.mxu0
    %551 = vdwg.mxu0
    %v552 = vadd.f32 %v499, %v547
    %v553 = vld [vmem:[%s361] sm:$0x3]
    %v558 = vunpack.c.l.b16 %v382
    %v559 = vunpack.c.l.b16 %v383
    %v560 = vunpack.c.l.b16 %v384
    %v561 = vunpack.c.l.b16 %v385
    %v562 = vpack.c.b16 %v559, %v558
    %v563 = vpack.c.b16 %v561, %v560
    %566 = vmatprep.subr.bf16.mxu0 0
    %567 = vmatpush1.bf16.msra.mxu0 0
    %568 = vmatprep.subr.bf16.mxu0 0
    %569 = vmatpush1.bf16.msra.mxu0 0
    %570 = vmatprep.subr.bf16.mxu0 0
    %571 = vmatpush1.bf16.msra.mxu0 0
    %572 = vmatprep.subr.bf16.mxu0 0
    %573 = vmatpush1.bf16.msra.mxu0 0
    %574 = vmatprep.subr.bf16.mxu0 0
    %575 = vmatpush1.bf16.msra.mxu0 0
    %576 = vmatprep.subr.bf16.mxu0 0
    %577 = vmatpush1.bf16.msra.mxu0 0
    %578 = vmatprep.subr.bf16.mxu0 0
    %579 = vmatpush1.bf16.msra.mxu0 %v563
    %580 = vmatprep.subr.bf16.mxu0 0
    %581 = vmatpush1.bf16.msra.mxu0 %v562
    %582 = vmatprep.subr.bf16.mxu0 0
    %583 = vmatpush2.bf16.msra.mxu0 0
    %584 = vmatprep.subr.bf16.mxu0 0
    %585 = vmatpush2.bf16.msra.mxu0 0
    %586 = vmatprep.subr.bf16.mxu0 0
    %587 = vmatpush2.bf16.msra.mxu0 0
    %588 = vmatprep.subr.bf16.mxu0 0
    %589 = vmatpush2.bf16.msra.mxu0 0
    %590 = vmatprep.subr.bf16.mxu0 0
    %591 = vmatpush2.bf16.msra.mxu0 0
    %592 = vmatprep.subr.bf16.mxu0 0
    %593 = vmatpush2.bf16.msra.mxu0 0
    %594 = vmatprep.subr.bf16.mxu0 0
    %595 = vmatpush2.bf16.msra.mxu0 0
    %596 = vmatprep.subr.bf16.mxu0 0
    %597 = vmatpush2.bf16.msra.mxu0 0
    %598 = vmatprep.mubr.bf16.mxu0 0
    %599 = vmatmul.mubr.bf16.gmra.mxu0 %v402
    %v600 = vpop.f32.mrf.mxu0
    %v601 = vadd.f32 0.0, %v600
    %v602 = vpop.f32.mrf.mxu0
    %v603 = vpop.f32.mrf.mxu0
    %v604 = vpop.f32.mrf.mxu0
    %605 = vdwg.mxu0
    %v606 = vadd.f32 %v553, %v601
    %v607 = vxor.u32 %v444, 2147483648
    %v608 = vmul.f32 %v607, 1.442695
    %v609 = vpow.pop %v608
    %v610 = vadd.f32 %v609, 1.0
    %v611 = vrcp.pop %v610
    %v612 = vmul.f32 1.0, %v611
    %v613 = vxor.u32 %v498, 2147483648
    %v614 = vmul.f32 %v613, 1.442695
    %v615 = vpow.pop %v614
    %v616 = vadd.f32 %v615, 1.0
    %v617 = vrcp.pop %v616
    %v618 = vmul.f32 1.0, %v617
    %v619 = vtanh.pop %v552
    %v620 = vxor.u32 %v606, 2147483648
    %v621 = vmul.f32 %v620, 1.442695
    %v622 = vpow.pop %v621
    %v623 = vadd.f32 %v622, 1.0
    %v624 = vrcp.pop %v623
    %v625 = vmul.f32 1.0, %v624
    %v626 = vld [vmem:[#allocation5] sm:$0x3]
    %v627 = vmul.f32 %v618, %v626
    %v628 = vmul.f32 %v612, %v619
    %v629 = vadd.f32 %v627, %v628
    %v630 = vtanh.pop %v629
    %v631 = vmul.f32 %v625, %v630
    %632 = vst.msk [vmem:[#allocation5] sm:$0x3] %vm364, %v629
    %633 = vst.msk [vmem:[#allocation4] sm:$0x3] %vm364, %v631
    %v634 = vpack.c.bf16 %v631, %v631
    %vm635 = vcmask 253952
    %636 = vst.msk [vmem:[#allocation3] sm:$0x1] %vm635, %v634
    %v637 = vld [vmem:[#allocation4] sm:$0x3]
    %v638 = vpack.c.bf16 %v637, %v637
    %v639 = vld [vmem:[#allocation2 + $0x2] sm:$0x3]
    %v641 = vsel %vm110, %v638, 0
    %643 = vmatprep.subr.bf16.mxu0 0
    %644 = vmatpush1.bf16.msra.mxu0 0
    %645 = vmatprep.subr.bf16.mxu0 0
    %646 = vmatpush1.bf16.msra.mxu0 0
    %647 = vmatprep.subr.bf16.mxu0 0
    %648 = vmatpush1.bf16.msra.mxu0 0
    %649 = vmatprep.subr.bf16.mxu0 0
    %650 = vmatpush1.bf16.msra.mxu0 0
    %651 = vmatprep.subr.bf16.mxu0 0
    %652 = vmatpush1.bf16.msra.mxu0 0
    %653 = vmatprep.subr.bf16.mxu0 0
    %654 = vmatpush1.bf16.msra.mxu0 0
    %655 = vmatprep.subr.bf16.mxu0 0
    %656 = vmatpush1.bf16.msra.mxu0 %v398
    %657 = vmatprep.subr.bf16.mxu0 0
    %658 = vmatpush1.bf16.msra.mxu0 %v397
    %659 = vmatprep.subr.bf16.mxu0 0
    %660 = vmatpush2.bf16.msra.mxu0 0
    %661 = vmatprep.subr.bf16.mxu0 0
    %662 = vmatpush2.bf16.msra.mxu0 0
    %663 = vmatprep.subr.bf16.mxu0 0
    %664 = vmatpush2.bf16.msra.mxu0 0
    %665 = vmatprep.subr.bf16.mxu0 0
    %666 = vmatpush2.bf16.msra.mxu0 0
    %667 = vmatprep.subr.bf16.mxu0 0
    %668 = vmatpush2.bf16.msra.mxu0 0
    %669 = vmatprep.subr.bf16.mxu0 0
    %670 = vmatpush2.bf16.msra.mxu0 0
    %671 = vmatprep.subr.bf16.mxu0 0
    %672 = vmatpush2.bf16.msra.mxu0 0
    %673 = vmatprep.subr.bf16.mxu0 0
    %674 = vmatpush2.bf16.msra.mxu0 0
    %675 = vmatprep.mubr.bf16.mxu0 0
    %676 = vmatmul.mubr.bf16.gmra.mxu0 %v641
    %v677 = vpop.f32.mrf.mxu0
    %v678 = vadd.f32 0.0, %v677
    %v679 = vpop.f32.mrf.mxu0
    %v680 = vpop.f32.mrf.mxu0
    %v681 = vpop.f32.mrf.mxu0
    %682 = vdwg.mxu0
    %v683 = vadd.f32 %v639, %v678
    %v684 = vld [vmem:[%s223 + $0x2] sm:$0x3]
    %685 = vmatprep.subr.bf16.mxu0 0
    %686 = vmatpush1.bf16.msra.mxu0 0
    %687 = vmatprep.subr.bf16.mxu0 0
    %688 = vmatpush1.bf16.msra.mxu0 0
    %689 = vmatprep.subr.bf16.mxu0 0
    %690 = vmatpush1.bf16.msra.mxu0 0
    %691 = vmatprep.subr.bf16.mxu0 0
    %692 = vmatpush1.bf16.msra.mxu0 0
    %693 = vmatprep.subr.bf16.mxu0 0
    %694 = vmatpush1.bf16.msra.mxu0 0
    %695 = vmatprep.subr.bf16.mxu0 0
    %696 = vmatpush1.bf16.msra.mxu0 0
    %697 = vmatprep.subr.bf16.mxu0 0
    %698 = vmatpush1.bf16.msra.mxu0 %v455
    %699 = vmatprep.subr.bf16.mxu0 0
    %700 = vmatpush1.bf16.msra.mxu0 %v454
    %701 = vmatprep.subr.bf16.mxu0 0
    %702 = vmatpush2.bf16.msra.mxu0 0
    %703 = vmatprep.subr.bf16.mxu0 0
    %704 = vmatpush2.bf16.msra.mxu0 0
    %705 = vmatprep.subr.bf16.mxu0 0
    %706 = vmatpush2.bf16.msra.mxu0 0
    %707 = vmatprep.subr.bf16.mxu0 0
    %708 = vmatpush2.bf16.msra.mxu0 0
    %709 = vmatprep.subr.bf16.mxu0 0
    %710 = vmatpush2.bf16.msra.mxu0 0
    %711 = vmatprep.subr.bf16.mxu0 0
    %712 = vmatpush2.bf16.msra.mxu0 0
    %713 = vmatprep.subr.bf16.mxu0 0
    %714 = vmatpush2.bf16.msra.mxu0 0
    %715 = vmatprep.subr.bf16.mxu0 0
    %716 = vmatpush2.bf16.msra.mxu0 0
    %717 = vmatprep.mubr.bf16.mxu0 0
    %718 = vmatmul.mubr.bf16.gmra.mxu0 %v641
    %v719 = vpop.f32.mrf.mxu0
    %v720 = vadd.f32 0.0, %v719
    %v721 = vpop.f32.mrf.mxu0
    %v722 = vpop.f32.mrf.mxu0
    %v723 = vpop.f32.mrf.mxu0
    %724 = vdwg.mxu0
    %v725 = vadd.f32 %v684, %v720
    %v726 = vld [vmem:[%s292 + $0x2] sm:$0x3]
    %727 = vmatprep.subr.bf16.mxu0 0
    %728 = vmatpush1.bf16.msra.mxu0 0
    %729 = vmatprep.subr.bf16.mxu0 0
    %730 = vmatpush1.bf16.msra.mxu0 0
    %731 = vmatprep.subr.bf16.mxu0 0
    %732 = vmatpush1.bf16.msra.mxu0 0
    %733 = vmatprep.subr.bf16.mxu0 0
    %734 = vmatpush1.bf16.msra.mxu0 0
    %735 = vmatprep.subr.bf16.mxu0 0
    %736 = vmatpush1.bf16.msra.mxu0 0
    %737 = vmatprep.subr.bf16.mxu0 0
    %738 = vmatpush1.bf16.msra.mxu0 0
    %739 = vmatprep.subr.bf16.mxu0 0
    %740 = vmatpush1.bf16.msra.mxu0 %v509
    %741 = vmatprep.subr.bf16.mxu0 0
    %742 = vmatpush1.bf16.msra.mxu0 %v508
    %743 = vmatprep.subr.bf16.mxu0 0
    %744 = vmatpush2.bf16.msra.mxu0 0
    %745 = vmatprep.subr.bf16.mxu0 0
    %746 = vmatpush2.bf16.msra.mxu0 0
    %747 = vmatprep.subr.bf16.mxu0 0
    %748 = vmatpush2.bf16.msra.mxu0 0
    %749 = vmatprep.subr.bf16.mxu0 0
    %750 = vmatpush2.bf16.msra.mxu0 0
    %751 = vmatprep.subr.bf16.mxu0 0
    %752 = vmatpush2.bf16.msra.mxu0 0
    %753 = vmatprep.subr.bf16.mxu0 0
    %754 = vmatpush2.bf16.msra.mxu0 0
    %755 = vmatprep.subr.bf16.mxu0 0
    %756 = vmatpush2.bf16.msra.mxu0 0
    %757 = vmatprep.subr.bf16.mxu0 0
    %758 = vmatpush2.bf16.msra.mxu0 0
    %759 = vmatprep.mubr.bf16.mxu0 0
    %760 = vmatmul.mubr.bf16.gmra.mxu0 %v641
    %v761 = vpop.f32.mrf.mxu0
    %v762 = vadd.f32 0.0, %v761
    %v763 = vpop.f32.mrf.mxu0
    %v764 = vpop.f32.mrf.mxu0
    %v765 = vpop.f32.mrf.mxu0
    %766 = vdwg.mxu0
    %v767 = vadd.f32 %v726, %v762
    %v768 = vld [vmem:[%s361 + $0x2] sm:$0x3]
    %769 = vmatprep.subr.bf16.mxu0 0
    %770 = vmatpush1.bf16.msra.mxu0 0
    %771 = vmatprep.subr.bf16.mxu0 0
    %772 = vmatpush1.bf16.msra.mxu0 0
    %773 = vmatprep.subr.bf16.mxu0 0
    %774 = vmatpush1.bf16.msra.mxu0 0
    %775 = vmatprep.subr.bf16.mxu0 0
    %776 = vmatpush1.bf16.msra.mxu0 0
    %777 = vmatprep.subr.bf16.mxu0 0
    %778 = vmatpush1.bf16.msra.mxu0 0
    %779 = vmatprep.subr.bf16.mxu0 0
    %780 = vmatpush1.bf16.msra.mxu0 0
    %781 = vmatprep.subr.bf16.mxu0 0
    %782 = vmatpush1.bf16.msra.mxu0 %v563
    %783 = vmatprep.subr.bf16.mxu0 0
    %784 = vmatpush1.bf16.msra.mxu0 %v562
    %785 = vmatprep.subr.bf16.mxu0 0
    %786 = vmatpush2.bf16.msra.mxu0 0
    %787 = vmatprep.subr.bf16.mxu0 0
    %788 = vmatpush2.bf16.msra.mxu0 0
    %789 = vmatprep.subr.bf16.mxu0 0
    %790 = vmatpush2.bf16.msra.mxu0 0
    %791 = vmatprep.subr.bf16.mxu0 0
    %792 = vmatpush2.bf16.msra.mxu0 0
    %793 = vmatprep.subr.bf16.mxu0 0
    %794 = vmatpush2.bf16.msra.mxu0 0
    %795 = vmatprep.subr.bf16.mxu0 0
    %796 = vmatpush2.bf16.msra.mxu0 0
    %797 = vmatprep.subr.bf16.mxu0 0
    %798 = vmatpush2.bf16.msra.mxu0 0
    %799 = vmatprep.subr.bf16.mxu0 0
    %800 = vmatpush2.bf16.msra.mxu0 0
    %801 = vmatprep.mubr.bf16.mxu0 0
    %802 = vmatmul.mubr.bf16.gmra.mxu0 %v641
    %v803 = vpop.f32.mrf.mxu0
    %v804 = vadd.f32 0.0, %v803
    %v805 = vpop.f32.mrf.mxu0
    %v806 = vpop.f32.mrf.mxu0
    %v807 = vpop.f32.mrf.mxu0
    %808 = vdwg.mxu0
    %v809 = vadd.f32 %v768, %v804
    %v810 = vxor.u32 %v683, 2147483648
    %v811 = vmul.f32 %v810, 1.442695
    %v812 = vpow.pop %v811
    %v813 = vadd.f32 %v812, 1.0
    %v814 = vrcp.pop %v813
    %v815 = vmul.f32 1.0, %v814
    %v816 = vxor.u32 %v725, 2147483648
    %v817 = vmul.f32 %v816, 1.442695
    %v818 = vpow.pop %v817
    %v819 = vadd.f32 %v818, 1.0
    %v820 = vrcp.pop %v819
    %v821 = vmul.f32 1.0, %v820
    %v822 = vtanh.pop %v767
    %v823 = vxor.u32 %v809, 2147483648
    %v824 = vmul.f32 %v823, 1.442695
    %v825 = vpow.pop %v824
    %v826 = vadd.f32 %v825, 1.0
    %v827 = vrcp.pop %v826
    %v828 = vmul.f32 1.0, %v827
    %v829 = vld [vmem:[#allocation5] sm:$0x3]
    %v830 = vmul.f32 %v821, %v829
    %v831 = vmul.f32 %v815, %v822
    %v832 = vadd.f32 %v830, %v831
    %v833 = vtanh.pop %v832
    %v834 = vmul.f32 %v828, %v833
    %835 = vst.msk [vmem:[#allocation5] sm:$0x3] %vm364, %v832
    %836 = vst.msk [vmem:[#allocation4] sm:$0x3] %vm364, %v834
    %v837 = vpack.c.bf16 %v834, %v834
    %v839 = vunpack.c.l.b16 %v837
    %v840 = vpack.c.b16 %v839, %v839
    %v841 = vrot.slane %v840, 7
    %vm843 = vcmask 254977
    %844 = vst.msk [vmem:[#allocation3] sm:$0x2] %vm843, %v841
    %v845 = vld [vmem:[#allocation4] sm:$0x3]
    %v846 = vpack.c.bf16 %v845, %v845
    %v847 = vld [vmem:[#allocation2 + $0x4] sm:$0x3]
    %v849 = vsel %vm110, %v846, 0
    %851 = vmatprep.subr.bf16.mxu0 0
    %852 = vmatpush1.bf16.msra.mxu0 0
    %853 = vmatprep.subr.bf16.mxu0 0
    %854 = vmatpush1.bf16.msra.mxu0 0
    %855 = vmatprep.subr.bf16.mxu0 0
    %856 = vmatpush1.bf16.msra.mxu0 0
    %857 = vmatprep.subr.bf16.mxu0 0
    %858 = vmatpush1.bf16.msra.mxu0 0
    %859 = vmatprep.subr.bf16.mxu0 0
    %860 = vmatpush1.bf16.msra.mxu0 0
    %861 = vmatprep.subr.bf16.mxu0 0
    %862 = vmatpush1.bf16.msra.mxu0 0
    %863 = vmatprep.subr.bf16.mxu0 0
    %864 = vmatpush1.bf16.msra.mxu0 %v398
    %865 = vmatprep.subr.bf16.mxu0 0
    %866 = vmatpush1.bf16.msra.mxu0 %v397
    %867 = vmatprep.subr.bf16.mxu0 0
    %868 = vmatpush2.bf16.msra.mxu0 0
    %869 = vmatprep.subr.bf16.mxu0 0
    %870 = vmatpush2.bf16.msra.mxu0 0
    %871 = vmatprep.subr.bf16.mxu0 0
    %872 = vmatpush2.bf16.msra.mxu0 0
    %873 = vmatprep.subr.bf16.mxu0 0
    %874 = vmatpush2.bf16.msra.mxu0 0
    %875 = vmatprep.subr.bf16.mxu0 0
    %876 = vmatpush2.bf16.msra.mxu0 0
    %877 = vmatprep.subr.bf16.mxu0 0
    %878 = vmatpush2.bf16.msra.mxu0 0
    %879 = vmatprep.subr.bf16.mxu0 0
    %880 = vmatpush2.bf16.msra.mxu0 0
    %881 = vmatprep.subr.bf16.mxu0 0
    %882 = vmatpush2.bf16.msra.mxu0 0
    %883 = vmatprep.mubr.bf16.mxu0 0
    %884 = vmatmul.mubr.bf16.gmra.mxu0 %v849
    %v885 = vpop.f32.mrf.mxu0
    %v886 = vadd.f32 0.0, %v885
    %v887 = vpop.f32.mrf.mxu0
    %v888 = vpop.f32.mrf.mxu0
    %v889 = vpop.f32.mrf.mxu0
    %890 = vdwg.mxu0
    %v891 = vadd.f32 %v847, %v886
    %v892 = vld [vmem:[%s223 + $0x4] sm:$0x3]
    %893 = vmatprep.subr.bf16.mxu0 0
    %894 = vmatpush1.bf16.msra.mxu0 0
    %895 = vmatprep.subr.bf16.mxu0 0
    %896 = vmatpush1.bf16.msra.mxu0 0
    %897 = vmatprep.subr.bf16.mxu0 0
    %898 = vmatpush1.bf16.msra.mxu0 0
    %899 = vmatprep.subr.bf16.mxu0 0
    %900 = vmatpush1.bf16.msra.mxu0 0
    %901 = vmatprep.subr.bf16.mxu0 0
    %902 = vmatpush1.bf16.msra.mxu0 0
    %903 = vmatprep.subr.bf16.mxu0 0
    %904 = vmatpush1.bf16.msra.mxu0 0
    %905 = vmatprep.subr.bf16.mxu0 0
    %906 = vmatpush1.bf16.msra.mxu0 %v455
    %907 = vmatprep.subr.bf16.mxu0 0
    %908 = vmatpush1.bf16.msra.mxu0 %v454
    %909 = vmatprep.subr.bf16.mxu0 0
    %910 = vmatpush2.bf16.msra.mxu0 0
    %911 = vmatprep.subr.bf16.mxu0 0
    %912 = vmatpush2.bf16.msra.mxu0 0
    %913 = vmatprep.subr.bf16.mxu0 0
    %914 = vmatpush2.bf16.msra.mxu0 0
    %915 = vmatprep.subr.bf16.mxu0 0
    %916 = vmatpush2.bf16.msra.mxu0 0
    %917 = vmatprep.subr.bf16.mxu0 0
    %918 = vmatpush2.bf16.msra.mxu0 0
    %919 = vmatprep.subr.bf16.mxu0 0
    %920 = vmatpush2.bf16.msra.mxu0 0
    %921 = vmatprep.subr.bf16.mxu0 0
    %922 = vmatpush2.bf16.msra.mxu0 0
    %923 = vmatprep.subr.bf16.mxu0 0
    %924 = vmatpush2.bf16.msra.mxu0 0
    %925 = vmatprep.mubr.bf16.mxu0 0
    %926 = vmatmul.mubr.bf16.gmra.mxu0 %v849
    %v927 = vpop.f32.mrf.mxu0
    %v928 = vadd.f32 0.0, %v927
    %v929 = vpop.f32.mrf.mxu0
    %v930 = vpop.f32.mrf.mxu0
    %v931 = vpop.f32.mrf.mxu0
    %932 = vdwg.mxu0
    %v933 = vadd.f32 %v892, %v928
    %v934 = vld [vmem:[%s292 + $0x4] sm:$0x3]
    %935 = vmatprep.subr.bf16.mxu0 0
    %936 = vmatpush1.bf16.msra.mxu0 0
    %937 = vmatprep.subr.bf16.mxu0 0
    %938 = vmatpush1.bf16.msra.mxu0 0
    %939 = vmatprep.subr.bf16.mxu0 0
    %940 = vmatpush1.bf16.msra.mxu0 0
    %941 = vmatprep.subr.bf16.mxu0 0
    %942 = vmatpush1.bf16.msra.mxu0 0
    %943 = vmatprep.subr.bf16.mxu0 0
    %944 = vmatpush1.bf16.msra.mxu0 0
    %945 = vmatprep.subr.bf16.mxu0 0
    %946 = vmatpush1.bf16.msra.mxu0 0
    %947 = vmatprep.subr.bf16.mxu0 0
    %948 = vmatpush1.bf16.msra.mxu0 %v509
    %949 = vmatprep.subr.bf16.mxu0 0
    %950 = vmatpush1.bf16.msra.mxu0 %v508
    %951 = vmatprep.subr.bf16.mxu0 0
    %952 = vmatpush2.bf16.msra.mxu0 0
    %953 = vmatprep.subr.bf16.mxu0 0
    %954 = vmatpush2.bf16.msra.mxu0 0
    %955 = vmatprep.subr.bf16.mxu0 0
    %956 = vmatpush2.bf16.msra.mxu0 0
    %957 = vmatprep.subr.bf16.mxu0 0
    %958 = vmatpush2.bf16.msra.mxu0 0
    %959 = vmatprep.subr.bf16.mxu0 0
    %960 = vmatpush2.bf16.msra.mxu0 0
    %961 = vmatprep.subr.bf16.mxu0 0
    %962 = vmatpush2.bf16.msra.mxu0 0
    %963 = vmatprep.subr.bf16.mxu0 0
    %964 = vmatpush2.bf16.msra.mxu0 0
    %965 = vmatprep.subr.bf16.mxu0 0
    %966 = vmatpush2.bf16.msra.mxu0 0
    %967 = vmatprep.mubr.bf16.mxu0 0
    %968 = vmatmul.mubr.bf16.gmra.mxu0 %v849
    %v969 = vpop.f32.mrf.mxu0
    %v970 = vadd.f32 0.0, %v969
    %v971 = vpop.f32.mrf.mxu0
    %v972 = vpop.f32.mrf.mxu0
    %v973 = vpop.f32.mrf.mxu0
    %974 = vdwg.mxu0
    %v975 = vadd.f32 %v934, %v970
    %v976 = vld [vmem:[%s361 + $0x4] sm:$0x3]
    %977 = vmatprep.subr.bf16.mxu0 0
    %978 = vmatpush1.bf16.msra.mxu0 0
    %979 = vmatprep.subr.bf16.mxu0 0
    %980 = vmatpush1.bf16.msra.mxu0 0
    %981 = vmatprep.subr.bf16.mxu0 0
    %982 = vmatpush1.bf16.msra.mxu0 0
    %983 = vmatprep.subr.bf16.mxu0 0
    %984 = vmatpush1.bf16.msra.mxu0 0
    %985 = vmatprep.subr.bf16.mxu0 0
    %986 = vmatpush1.bf16.msra.mxu0 0
    %987 = vmatprep.subr.bf16.mxu0 0
    %988 = vmatpush1.bf16.msra.mxu0 0
    %989 = vmatprep.subr.bf16.mxu0 0
    %990 = vmatpush1.bf16.msra.mxu0 %v563
    %991 = vmatprep.subr.bf16.mxu0 0
    %992 = vmatpush1.bf16.msra.mxu0 %v562
    %993 = vmatprep.subr.bf16.mxu0 0
    %994 = vmatpush2.bf16.msra.mxu0 0
    %995 = vmatprep.subr.bf16.mxu0 0
    %996 = vmatpush2.bf16.msra.mxu0 0
    %997 = vmatprep.subr.bf16.mxu0 0
    %998 = vmatpush2.bf16.msra.mxu0 0
    %999 = vmatprep.subr.bf16.mxu0 0
    %1000 = vmatpush2.bf16.msra.mxu0 0
    %1001 = vmatprep.subr.bf16.mxu0 0
    %1002 = vmatpush2.bf16.msra.mxu0 0
    %1003 = vmatprep.subr.bf16.mxu0 0
    %1004 = vmatpush2.bf16.msra.mxu0 0
    %1005 = vmatprep.subr.bf16.mxu0 0
    %1006 = vmatpush2.bf16.msra.mxu0 0
    %1007 = vmatprep.subr.bf16.mxu0 0
    %1008 = vmatpush2.bf16.msra.mxu0 0
    %1009 = vmatprep.mubr.bf16.mxu0 0
    %1010 = vmatmul.mubr.bf16.gmra.mxu0 %v849
    %v1011 = vpop.f32.mrf.mxu0
    %v1012 = vadd.f32 0.0, %v1011
    %v1013 = vpop.f32.mrf.mxu0
    %v1014 = vpop.f32.mrf.mxu0
    %v1015 = vpop.f32.mrf.mxu0
    %1016 = vdwg.mxu0
    %v1017 = vadd.f32 %v976, %v1012
    %v1018 = vxor.u32 %v891, 2147483648
    %v1019 = vmul.f32 %v1018, 1.442695
    %v1020 = vpow.pop %v1019
    %v1021 = vadd.f32 %v1020, 1.0
    %v1022 = vrcp.pop %v1021
    %v1023 = vmul.f32 1.0, %v1022
    %v1024 = vxor.u32 %v933, 2147483648
    %v1025 = vmul.f32 %v1024, 1.442695
    %v1026 = vpow.pop %v1025
    %v1027 = vadd.f32 %v1026, 1.0
    %v1028 = vrcp.pop %v1027
    %v1029 = vmul.f32 1.0, %v1028
    %v1030 = vtanh.pop %v975
    %v1031 = vxor.u32 %v1017, 2147483648
    %v1032 = vmul.f32 %v1031, 1.442695
    %v1033 = vpow.pop %v1032
    %v1034 = vadd.f32 %v1033, 1.0
    %v1035 = vrcp.pop %v1034
    %v1036 = vmul.f32 1.0, %v1035
    %v1037 = vld [vmem:[#allocation5] sm:$0x3]
    %v1038 = vmul.f32 %v1029, %v1037
    %v1039 = vmul.f32 %v1023, %v1030
    %v1040 = vadd.f32 %v1038, %v1039
    %v1041 = vtanh.pop %v1040
    %v1042 = vmul.f32 %v1036, %v1041
    %1043 = vst.msk [vmem:[#allocation5] sm:$0x3] %vm364, %v1040
    %1044 = vst.msk [vmem:[#allocation4] sm:$0x3] %vm364, %v1042
    %v1045 = vpack.c.bf16 %v1042, %v1042
    %v1047 = vunpack.c.l.b16 %v1045
    %v1048 = vpack.c.b16 %v1047, %v1047
    %v1049 = vrot.slane %v1048, 6
    %vm1051 = vcmask 256002
    %1052 = vst.msk [vmem:[#allocation3] sm:$0x4] %vm1051, %v1049
    %v1053 = vld [vmem:[#allocation4] sm:$0x3]
    %v1054 = vpack.c.bf16 %v1053, %v1053
    %v1055 = vld [vmem:[#allocation2 + $0x6] sm:$0x3]
    %v1057 = vsel %vm110, %v1054, 0
    %1059 = vmatprep.subr.bf16.mxu0 0
    %1060 = vmatpush1.bf16.msra.mxu0 0
    %1061 = vmatprep.subr.bf16.mxu0 0
    %1062 = vmatpush1.bf16.msra.mxu0 0
    %1063 = vmatprep.subr.bf16.mxu0 0
    %1064 = vmatpush1.bf16.msra.mxu0 0
    %1065 = vmatprep.subr.bf16.mxu0 0
    %1066 = vmatpush1.bf16.msra.mxu0 0
    %1067 = vmatprep.subr.bf16.mxu0 0
    %1068 = vmatpush1.bf16.msra.mxu0 0
    %1069 = vmatprep.subr.bf16.mxu0 0
    %1070 = vmatpush1.bf16.msra.mxu0 0
    %1071 = vmatprep.subr.bf16.mxu0 0
    %1072 = vmatpush1.bf16.msra.mxu0 %v398
    %1073 = vmatprep.subr.bf16.mxu0 0
    %1074 = vmatpush1.bf16.msra.mxu0 %v397
    %1075 = vmatprep.subr.bf16.mxu0 0
    %1076 = vmatpush2.bf16.msra.mxu0 0
    %1077 = vmatprep.subr.bf16.mxu0 0
    %1078 = vmatpush2.bf16.msra.mxu0 0
    %1079 = vmatprep.subr.bf16.mxu0 0
    %1080 = vmatpush2.bf16.msra.mxu0 0
    %1081 = vmatprep.subr.bf16.mxu0 0
    %1082 = vmatpush2.bf16.msra.mxu0 0
    %1083 = vmatprep.subr.bf16.mxu0 0
    %1084 = vmatpush2.bf16.msra.mxu0 0
    %1085 = vmatprep.subr.bf16.mxu0 0
    %1086 = vmatpush2.bf16.msra.mxu0 0
    %1087 = vmatprep.subr.bf16.mxu0 0
    %1088 = vmatpush2.bf16.msra.mxu0 0
    %1089 = vmatprep.subr.bf16.mxu0 0
    %1090 = vmatpush2.bf16.msra.mxu0 0
    %1091 = vmatprep.mubr.bf16.mxu0 0
    %1092 = vmatmul.mubr.bf16.gmra.mxu0 %v1057
    %v1093 = vpop.f32.mrf.mxu0
    %v1094 = vadd.f32 0.0, %v1093
    %v1095 = vpop.f32.mrf.mxu0
    %v1096 = vpop.f32.mrf.mxu0
    %v1097 = vpop.f32.mrf.mxu0
    %1098 = vdwg.mxu0
    %v1099 = vadd.f32 %v1055, %v1094
    %v1100 = vld [vmem:[%s223 + $0x6] sm:$0x3]
    %1101 = vmatprep.subr.bf16.mxu0 0
    %1102 = vmatpush1.bf16.msra.mxu0 0
    %1103 = vmatprep.subr.bf16.mxu0 0
    %1104 = vmatpush1.bf16.msra.mxu0 0
    %1105 = vmatprep.subr.bf16.mxu0 0
    %1106 = vmatpush1.bf16.msra.mxu0 0
    %1107 = vmatprep.subr.bf16.mxu0 0
    %1108 = vmatpush1.bf16.msra.mxu0 0
    %1109 = vmatprep.subr.bf16.mxu0 0
    %1110 = vmatpush1.bf16.msra.mxu0 0
    %1111 = vmatprep.subr.bf16.mxu0 0
    %1112 = vmatpush1.bf16.msra.mxu0 0
    %1113 = vmatprep.subr.bf16.mxu0 0
    %1114 = vmatpush1.bf16.msra.mxu0 %v455
    %1115 = vmatprep.subr.bf16.mxu0 0
    %1116 = vmatpush1.bf16.msra.mxu0 %v454
    %1117 = vmatprep.subr.bf16.mxu0 0
    %1118 = vmatpush2.bf16.msra.mxu0 0
    %1119 = vmatprep.subr.bf16.mxu0 0
    %1120 = vmatpush2.bf16.msra.mxu0 0
    %1121 = vmatprep.subr.bf16.mxu0 0
    %1122 = vmatpush2.bf16.msra.mxu0 0
    %1123 = vmatprep.subr.bf16.mxu0 0
    %1124 = vmatpush2.bf16.msra.mxu0 0
    %1125 = vmatprep.subr.bf16.mxu0 0
    %1126 = vmatpush2.bf16.msra.mxu0 0
    %1127 = vmatprep.subr.bf16.mxu0 0
    %1128 = vmatpush2.bf16.msra.mxu0 0
    %1129 = vmatprep.subr.bf16.mxu0 0
    %1130 = vmatpush2.bf16.msra.mxu0 0
    %1131 = vmatprep.subr.bf16.mxu0 0
    %1132 = vmatpush2.bf16.msra.mxu0 0
    %1133 = vmatprep.mubr.bf16.mxu0 0
    %1134 = vmatmul.mubr.bf16.gmra.mxu0 %v1057
    %v1135 = vpop.f32.mrf.mxu0
    %v1136 = vadd.f32 0.0, %v1135
    %v1137 = vpop.f32.mrf.mxu0
    %v1138 = vpop.f32.mrf.mxu0
    %v1139 = vpop.f32.mrf.mxu0
    %1140 = vdwg.mxu0
    %v1141 = vadd.f32 %v1100, %v1136
    %v1142 = vld [vmem:[%s292 + $0x6] sm:$0x3]
    %1143 = vmatprep.subr.bf16.mxu0 0
    %1144 = vmatpush1.bf16.msra.mxu0 0
    %1145 = vmatprep.subr.bf16.mxu0 0
    %1146 = vmatpush1.bf16.msra.mxu0 0
    %1147 = vmatprep.subr.bf16.mxu0 0
    %1148 = vmatpush1.bf16.msra.mxu0 0
    %1149 = vmatprep.subr.bf16.mxu0 0
    %1150 = vmatpush1.bf16.msra.mxu0 0
    %1151 = vmatprep.subr.bf16.mxu0 0
    %1152 = vmatpush1.bf16.msra.mxu0 0
    %1153 = vmatprep.subr.bf16.mxu0 0
    %1154 = vmatpush1.bf16.msra.mxu0 0
    %1155 = vmatprep.subr.bf16.mxu0 0
    %1156 = vmatpush1.bf16.msra.mxu0 %v509
    %1157 = vmatprep.subr.bf16.mxu0 0
    %1158 = vmatpush1.bf16.msra.mxu0 %v508
    %1159 = vmatprep.subr.bf16.mxu0 0
    %1160 = vmatpush2.bf16.msra.mxu0 0
    %1161 = vmatprep.subr.bf16.mxu0 0
    %1162 = vmatpush2.bf16.msra.mxu0 0
    %1163 = vmatprep.subr.bf16.mxu0 0
    %1164 = vmatpush2.bf16.msra.mxu0 0
    %1165 = vmatprep.subr.bf16.mxu0 0
    %1166 = vmatpush2.bf16.msra.mxu0 0
    %1167 = vmatprep.subr.bf16.mxu0 0
    %1168 = vmatpush2.bf16.msra.mxu0 0
    %1169 = vmatprep.subr.bf16.mxu0 0
    %1170 = vmatpush2.bf16.msra.mxu0 0
    %1171 = vmatprep.subr.bf16.mxu0 0
    %1172 = vmatpush2.bf16.msra.mxu0 0
    %1173 = vmatprep.subr.bf16.mxu0 0
    %1174 = vmatpush2.bf16.msra.mxu0 0
    %1175 = vmatprep.mubr.bf16.mxu0 0
    %1176 = vmatmul.mubr.bf16.gmra.mxu0 %v1057
    %v1177 = vpop.f32.mrf.mxu0
    %v1178 = vadd.f32 0.0, %v1177
    %v1179 = vpop.f32.mrf.mxu0
    %v1180 = vpop.f32.mrf.mxu0
    %v1181 = vpop.f32.mrf.mxu0
    %1182 = vdwg.mxu0
    %v1183 = vadd.f32 %v1142, %v1178
    %v1184 = vld [vmem:[%s361 + $0x6] sm:$0x3]
    %1185 = vmatprep.subr.bf16.mxu0 0
    %1186 = vmatpush1.bf16.msra.mxu0 0
    %1187 = vmatprep.subr.bf16.mxu0 0
    %1188 = vmatpush1.bf16.msra.mxu0 0
    %1189 = vmatprep.subr.bf16.mxu0 0
    %1190 = vmatpush1.bf16.msra.mxu0 0
    %1191 = vmatprep.subr.bf16.mxu0 0
    %1192 = vmatpush1.bf16.msra.mxu0 0
    %1193 = vmatprep.subr.bf16.mxu0 0
    %1194 = vmatpush1.bf16.msra.mxu0 0
    %1195 = vmatprep.subr.bf16.mxu0 0
    %1196 = vmatpush1.bf16.msra.mxu0 0
    %1197 = vmatprep.subr.bf16.mxu0 0
    %1198 = vmatpush1.bf16.msra.mxu0 %v563
    %1199 = vmatprep.subr.bf16.mxu0 0
    %1200 = vmatpush1.bf16.msra.mxu0 %v562
    %1201 = vmatprep.subr.bf16.mxu0 0
    %1202 = vmatpush2.bf16.msra.mxu0 0
    %1203 = vmatprep.subr.bf16.mxu0 0
    %1204 = vmatpush2.bf16.msra.mxu0 0
    %1205 = vmatprep.subr.bf16.mxu0 0
    %1206 = vmatpush2.bf16.msra.mxu0 0
    %1207 = vmatprep.subr.bf16.mxu0 0
    %1208 = vmatpush2.bf16.msra.mxu0 0
    %1209 = vmatprep.subr.bf16.mxu0 0
    %1210 = vmatpush2.bf16.msra.mxu0 0
    %1211 = vmatprep.subr.bf16.mxu0 0
    %1212 = vmatpush2.bf16.msra.mxu0 0
    %1213 = vmatprep.subr.bf16.mxu0 0
    %1214 = vmatpush2.bf16.msra.mxu0 0
    %1215 = vmatprep.subr.bf16.mxu0 0
    %1216 = vmatpush2.bf16.msra.mxu0 0
    %1217 = vmatprep.mubr.bf16.mxu0 0
    %1218 = vmatmul.mubr.bf16.gmra.mxu0 %v1057
    %v1219 = vpop.f32.mrf.mxu0
    %v1220 = vadd.f32 0.0, %v1219
    %v1221 = vpop.f32.mrf.mxu0
    %v1222 = vpop.f32.mrf.mxu0
    %v1223 = vpop.f32.mrf.mxu0
    %1224 = vdwg.mxu0
    %v1225 = vadd.f32 %v1184, %v1220
    %v1226 = vxor.u32 %v1099, 2147483648
    %v1227 = vmul.f32 %v1226, 1.442695
    %v1228 = vpow.pop %v1227
    %v1229 = vadd.f32 %v1228, 1.0
    %v1230 = vrcp.pop %v1229
    %v1231 = vmul.f32 1.0, %v1230
    %v1232 = vxor.u32 %v1141, 2147483648
    %v1233 = vmul.f32 %v1232, 1.442695
    %v1234 = vpow.pop %v1233
    %v1235 = vadd.f32 %v1234, 1.0
    %v1236 = vrcp.pop %v1235
    %v1237 = vmul.f32 1.0, %v1236
    %v1238 = vtanh.pop %v1183
    %v1239 = vxor.u32 %v1225, 2147483648
    %v1240 = vmul.f32 %v1239, 1.442695
    %v1241 = vpow.pop %v1240
    %v1242 = vadd.f32 %v1241, 1.0
    %v1243 = vrcp.pop %v1242
    %v1244 = vmul.f32 1.0, %v1243
    %v1245 = vld [vmem:[#allocation5] sm:$0x3]
    %v1246 = vmul.f32 %v1237, %v1245
    %v1247 = vmul.f32 %v1231, %v1238
    %v1248 = vadd.f32 %v1246, %v1247
    %v1249 = vtanh.pop %v1248
    %v1250 = vmul.f32 %v1244, %v1249
    %1251 = vst.msk [vmem:[#allocation5] sm:$0x3] %vm364, %v1248
    %1252 = vst.msk [vmem:[#allocation4] sm:$0x3] %vm364, %v1250
    %v1253 = vpack.c.bf16 %v1250, %v1250
    %v1255 = vunpack.c.l.b16 %v1253
    %v1256 = vpack.c.b16 %v1255, %v1255
    %v1257 = vrot.slane %v1256, 5
    %vm1259 = vcmask 257027
    %1260 = vst.msk [vmem:[#allocation3] sm:$0x8] %vm1259, %v1257
    %v1261 = vld [vmem:[#allocation4] sm:$0x3]
    %v1262 = vpack.c.bf16 %v1261, %v1261
    %v1263 = vld [vmem:[#allocation2 + $0x8] sm:$0x3]
    %v1265 = vsel %vm110, %v1262, 0
    %1267 = vmatprep.subr.bf16.mxu0 0
    %1268 = vmatpush1.bf16.msra.mxu0 0
    %1269 = vmatprep.subr.bf16.mxu0 0
    %1270 = vmatpush1.bf16.msra.mxu0 0
    %1271 = vmatprep.subr.bf16.mxu0 0
    %1272 = vmatpush1.bf16.msra.mxu0 0
    %1273 = vmatprep.subr.bf16.mxu0 0
    %1274 = vmatpush1.bf16.msra.mxu0 0
    %1275 = vmatprep.subr.bf16.mxu0 0
    %1276 = vmatpush1.bf16.msra.mxu0 0
    %1277 = vmatprep.subr.bf16.mxu0 0
    %1278 = vmatpush1.bf16.msra.mxu0 0
    %1279 = vmatprep.subr.bf16.mxu0 0
    %1280 = vmatpush1.bf16.msra.mxu0 %v398
    %1281 = vmatprep.subr.bf16.mxu0 0
    %1282 = vmatpush1.bf16.msra.mxu0 %v397
    %1283 = vmatprep.subr.bf16.mxu0 0
    %1284 = vmatpush2.bf16.msra.mxu0 0
    %1285 = vmatprep.subr.bf16.mxu0 0
    %1286 = vmatpush2.bf16.msra.mxu0 0
    %1287 = vmatprep.subr.bf16.mxu0 0
    %1288 = vmatpush2.bf16.msra.mxu0 0
    %1289 = vmatprep.subr.bf16.mxu0 0
    %1290 = vmatpush2.bf16.msra.mxu0 0
    %1291 = vmatprep.subr.bf16.mxu0 0
    %1292 = vmatpush2.bf16.msra.mxu0 0
    %1293 = vmatprep.subr.bf16.mxu0 0
    %1294 = vmatpush2.bf16.msra.mxu0 0
    %1295 = vmatprep.subr.bf16.mxu0 0
    %1296 = vmatpush2.bf16.msra.mxu0 0
    %1297 = vmatprep.subr.bf16.mxu0 0
    %1298 = vmatpush2.bf16.msra.mxu0 0
    %1299 = vmatprep.mubr.bf16.mxu0 0
    %1300 = vmatmul.mubr.bf16.gmra.mxu0 %v1265
    %v1301 = vpop.f32.mrf.mxu0
    %v1302 = vadd.f32 0.0, %v1301
    %v1303 = vpop.f32.mrf.mxu0
    %v1304 = vpop.f32.mrf.mxu0
    %v1305 = vpop.f32.mrf.mxu0
    %1306 = vdwg.mxu0
    %v1307 = vadd.f32 %v1263, %v1302
    %v1308 = vld [vmem:[%s223 + $0x8] sm:$0x3]
    %1309 = vmatprep.subr.bf16.mxu0 0
    %1310 = vmatpush1.bf16.msra.mxu0 0
    %1311 = vmatprep.subr.bf16.mxu0 0
    %1312 = vmatpush1.bf16.msra.mxu0 0
    %1313 = vmatprep.subr.bf16.mxu0 0
    %1314 = vmatpush1.bf16.msra.mxu0 0
    %1315 = vmatprep.subr.bf16.mxu0 0
    %1316 = vmatpush1.bf16.msra.mxu0 0
    %1317 = vmatprep.subr.bf16.mxu0 0
    %1318 = vmatpush1.bf16.msra.mxu0 0
    %1319 = vmatprep.subr.bf16.mxu0 0
    %1320 = vmatpush1.bf16.msra.mxu0 0
    %1321 = vmatprep.subr.bf16.mxu0 0
    %1322 = vmatpush1.bf16.msra.mxu0 %v455
    %1323 = vmatprep.subr.bf16.mxu0 0
    %1324 = vmatpush1.bf16.msra.mxu0 %v454
    %1325 = vmatprep.subr.bf16.mxu0 0
    %1326 = vmatpush2.bf16.msra.mxu0 0
    %1327 = vmatprep.subr.bf16.mxu0 0
    %1328 = vmatpush2.bf16.msra.mxu0 0
    %1329 = vmatprep.subr.bf16.mxu0 0
    %1330 = vmatpush2.bf16.msra.mxu0 0
    %1331 = vmatprep.subr.bf16.mxu0 0
    %1332 = vmatpush2.bf16.msra.mxu0 0
    %1333 = vmatprep.subr.bf16.mxu0 0
    %1334 = vmatpush2.bf16.msra.mxu0 0
    %1335 = vmatprep.subr.bf16.mxu0 0
    %1336 = vmatpush2.bf16.msra.mxu0 0
    %1337 = vmatprep.subr.bf16.mxu0 0
    %1338 = vmatpush2.bf16.msra.mxu0 0
    %1339 = vmatprep.subr.bf16.mxu0 0
    %1340 = vmatpush2.bf16.msra.mxu0 0
    %1341 = vmatprep.mubr.bf16.mxu0 0
    %1342 = vmatmul.mubr.bf16.gmra.mxu0 %v1265
    %v1343 = vpop.f32.mrf.mxu0
    %v1344 = vadd.f32 0.0, %v1343
    %v1345 = vpop.f32.mrf.mxu0
    %v1346 = vpop.f32.mrf.mxu0
    %v1347 = vpop.f32.mrf.mxu0
    %1348 = vdwg.mxu0
    %v1349 = vadd.f32 %v1308, %v1344
    %v1350 = vld [vmem:[%s292 + $0x8] sm:$0x3]
    %1351 = vmatprep.subr.bf16.mxu0 0
    %1352 = vmatpush1.bf16.msra.mxu0 0
    %1353 = vmatprep.subr.bf16.mxu0 0
    %1354 = vmatpush1.bf16.msra.mxu0 0
    %1355 = vmatprep.subr.bf16.mxu0 0
    %1356 = vmatpush1.bf16.msra.mxu0 0
    %1357 = vmatprep.subr.bf16.mxu0 0
    %1358 = vmatpush1.bf16.msra.mxu0 0
    %1359 = vmatprep.subr.bf16.mxu0 0
    %1360 = vmatpush1.bf16.msra.mxu0 0
    %1361 = vmatprep.subr.bf16.mxu0 0
    %1362 = vmatpush1.bf16.msra.mxu0 0
    %1363 = vmatprep.subr.bf16.mxu0 0
    %1364 = vmatpush1.bf16.msra.mxu0 %v509
    %1365 = vmatprep.subr.bf16.mxu0 0
    %1366 = vmatpush1.bf16.msra.mxu0 %v508
    %1367 = vmatprep.subr.bf16.mxu0 0
    %1368 = vmatpush2.bf16.msra.mxu0 0
    %1369 = vmatprep.subr.bf16.mxu0 0
    %1370 = vmatpush2.bf16.msra.mxu0 0
    %1371 = vmatprep.subr.bf16.mxu0 0
    %1372 = vmatpush2.bf16.msra.mxu0 0
    %1373 = vmatprep.subr.bf16.mxu0 0
    %1374 = vmatpush2.bf16.msra.mxu0 0
    %1375 = vmatprep.subr.bf16.mxu0 0
    %1376 = vmatpush2.bf16.msra.mxu0 0
    %1377 = vmatprep.subr.bf16.mxu0 0
    %1378 = vmatpush2.bf16.msra.mxu0 0
    %1379 = vmatprep.subr.bf16.mxu0 0
    %1380 = vmatpush2.bf16.msra.mxu0 0
    %1381 = vmatprep.subr.bf16.mxu0 0
    %1382 = vmatpush2.bf16.msra.mxu0 0
    %1383 = vmatprep.mubr.bf16.mxu0 0
    %1384 = vmatmul.mubr.bf16.gmra.mxu0 %v1265
    %v1385 = vpop.f32.mrf.mxu0
    %v1386 = vadd.f32 0.0, %v1385
    %v1387 = vpop.f32.mrf.mxu0
    %v1388 = vpop.f32.mrf.mxu0
    %v1389 = vpop.f32.mrf.mxu0
    %1390 = vdwg.mxu0
    %v1391 = vadd.f32 %v1350, %v1386
    %v1392 = vld [vmem:[%s361 + $0x8] sm:$0x3]
    %1393 = vmatprep.subr.bf16.mxu0 0
    %1394 = vmatpush1.bf16.msra.mxu0 0
    %1395 = vmatprep.subr.bf16.mxu0 0
    %1396 = vmatpush1.bf16.msra.mxu0 0
    %1397 = vmatprep.subr.bf16.mxu0 0
    %1398 = vmatpush1.bf16.msra.mxu0 0
    %1399 = vmatprep.subr.bf16.mxu0 0
    %1400 = vmatpush1.bf16.msra.mxu0 0
    %1401 = vmatprep.subr.bf16.mxu0 0
    %1402 = vmatpush1.bf16.msra.mxu0 0
    %1403 = vmatprep.subr.bf16.mxu0 0
    %1404 = vmatpush1.bf16.msra.mxu0 0
    %1405 = vmatprep.subr.bf16.mxu0 0
    %1406 = vmatpush1.bf16.msra.mxu0 %v563
    %1407 = vmatprep.subr.bf16.mxu0 0
    %1408 = vmatpush1.bf16.msra.mxu0 %v562
    %1409 = vmatprep.subr.bf16.mxu0 0
    %1410 = vmatpush2.bf16.msra.mxu0 0
    %1411 = vmatprep.subr.bf16.mxu0 0
    %1412 = vmatpush2.bf16.msra.mxu0 0
    %1413 = vmatprep.subr.bf16.mxu0 0
    %1414 = vmatpush2.bf16.msra.mxu0 0
    %1415 = vmatprep.subr.bf16.mxu0 0
    %1416 = vmatpush2.bf16.msra.mxu0 0
    %1417 = vmatprep.subr.bf16.mxu0 0
    %1418 = vmatpush2.bf16.msra.mxu0 0
    %1419 = vmatprep.subr.bf16.mxu0 0
    %1420 = vmatpush2.bf16.msra.mxu0 0
    %1421 = vmatprep.subr.bf16.mxu0 0
    %1422 = vmatpush2.bf16.msra.mxu0 0
    %1423 = vmatprep.subr.bf16.mxu0 0
    %1424 = vmatpush2.bf16.msra.mxu0 0
    %1425 = vmatprep.mubr.bf16.mxu0 0
    %1426 = vmatmul.mubr.bf16.gmra.mxu0 %v1265
    %v1427 = vpop.f32.mrf.mxu0
    %v1428 = vadd.f32 0.0, %v1427
    %v1429 = vpop.f32.mrf.mxu0
    %v1430 = vpop.f32.mrf.mxu0
    %v1431 = vpop.f32.mrf.mxu0
    %1432 = vdwg.mxu0
    %v1433 = vadd.f32 %v1392, %v1428
    %v1434 = vxor.u32 %v1307, 2147483648
    %v1435 = vmul.f32 %v1434, 1.442695
    %v1436 = vpow.pop %v1435
    %v1437 = vadd.f32 %v1436, 1.0
    %v1438 = vrcp.pop %v1437
    %v1439 = vmul.f32 1.0, %v1438
    %v1440 = vxor.u32 %v1349, 2147483648
    %v1441 = vmul.f32 %v1440, 1.442695
    %v1442 = vpow.pop %v1441
    %v1443 = vadd.f32 %v1442, 1.0
    %v1444 = vrcp.pop %v1443
    %v1445 = vmul.f32 1.0, %v1444
    %v1446 = vtanh.pop %v1391
    %v1447 = vxor.u32 %v1433, 2147483648
    %v1448 = vmul.f32 %v1447, 1.442695
    %v1449 = vpow.pop %v1448
    %v1450 = vadd.f32 %v1449, 1.0
    %v1451 = vrcp.pop %v1450
    %v1452 = vmul.f32 1.0, %v1451
    %v1453 = vld [vmem:[#allocation5] sm:$0x3]
    %v1454 = vmul.f32 %v1445, %v1453
    %v1455 = vmul.f32 %v1439, %v1446
    %v1456 = vadd.f32 %v1454, %v1455
    %v1457 = vtanh.pop %v1456
    %v1458 = vmul.f32 %v1452, %v1457
    %1459 = vst.msk [vmem:[#allocation5] sm:$0x3] %vm364, %v1456
    %1460 = vst.msk [vmem:[#allocation4] sm:$0x3] %vm364, %v1458
    %v1461 = vpack.c.bf16 %v1458, %v1458
    %1462 = vst.msk [vmem:[#allocation3 + $0x4] sm:$0x1] %vm635, %v1461
    %v1463 = vld [vmem:[#allocation4] sm:$0x3]
    %v1464 = vpack.c.bf16 %v1463, %v1463
    %v1465 = vld [vmem:[#allocation2 + $0xa] sm:$0x3]
    %v1467 = vsel %vm110, %v1464, 0
    %1469 = vmatprep.subr.bf16.mxu0 0
    %1470 = vmatpush1.bf16.msra.mxu0 0
    %1471 = vmatprep.subr.bf16.mxu0 0
    %1472 = vmatpush1.bf16.msra.mxu0 0
    %1473 = vmatprep.subr.bf16.mxu0 0
    %1474 = vmatpush1.bf16.msra.mxu0 0
    %1475 = vmatprep.subr.bf16.mxu0 0
    %1476 = vmatpush1.bf16.msra.mxu0 0
    %1477 = vmatprep.subr.bf16.mxu0 0
    %1478 = vmatpush1.bf16.msra.mxu0 0
    %1479 = vmatprep.subr.bf16.mxu0 0
    %1480 = vmatpush1.bf16.msra.mxu0 0
    %1481 = vmatprep.subr.bf16.mxu0 0
    %1482 = vmatpush1.bf16.msra.mxu0 %v398
    %1483 = vmatprep.subr.bf16.mxu0 0
    %1484 = vmatpush1.bf16.msra.mxu0 %v397
    %1485 = vmatprep.subr.bf16.mxu0 0
    %1486 = vmatpush2.bf16.msra.mxu0 0
    %1487 = vmatprep.subr.bf16.mxu0 0
    %1488 = vmatpush2.bf16.msra.mxu0 0
    %1489 = vmatprep.subr.bf16.mxu0 0
    %1490 = vmatpush2.bf16.msra.mxu0 0
    %1491 = vmatprep.subr.bf16.mxu0 0
    %1492 = vmatpush2.bf16.msra.mxu0 0
    %1493 = vmatprep.subr.bf16.mxu0 0
    %1494 = vmatpush2.bf16.msra.mxu0 0
    %1495 = vmatprep.subr.bf16.mxu0 0
    %1496 = vmatpush2.bf16.msra.mxu0 0
    %1497 = vmatprep.subr.bf16.mxu0 0
    %1498 = vmatpush2.bf16.msra.mxu0 0
    %1499 = vmatprep.subr.bf16.mxu0 0
    %1500 = vmatpush2.bf16.msra.mxu0 0
    %1501 = vmatprep.mubr.bf16.mxu0 0
    %1502 = vmatmul.mubr.bf16.gmra.mxu0 %v1467
    %v1503 = vpop.f32.mrf.mxu0
    %v1504 = vadd.f32 0.0, %v1503
    %v1505 = vpop.f32.mrf.mxu0
    %v1506 = vpop.f32.mrf.mxu0
    %v1507 = vpop.f32.mrf.mxu0
    %1508 = vdwg.mxu0
    %v1509 = vadd.f32 %v1465, %v1504
    %v1510 = vld [vmem:[%s223 + $0xa] sm:$0x3]
    %1511 = vmatprep.subr.bf16.mxu0 0
    %1512 = vmatpush1.bf16.msra.mxu0 0
    %1513 = vmatprep.subr.bf16.mxu0 0
    %1514 = vmatpush1.bf16.msra.mxu0 0
    %1515 = vmatprep.subr.bf16.mxu0 0
    %1516 = vmatpush1.bf16.msra.mxu0 0
    %1517 = vmatprep.subr.bf16.mxu0 0
    %1518 = vmatpush1.bf16.msra.mxu0 0
    %1519 = vmatprep.subr.bf16.mxu0 0
    %1520 = vmatpush1.bf16.msra.mxu0 0
    %1521 = vmatprep.subr.bf16.mxu0 0
    %1522 = vmatpush1.bf16.msra.mxu0 0
    %1523 = vmatprep.subr.bf16.mxu0 0
    %1524 = vmatpush1.bf16.msra.mxu0 %v455
    %1525 = vmatprep.subr.bf16.mxu0 0
    %1526 = vmatpush1.bf16.msra.mxu0 %v454
    %1527 = vmatprep.subr.bf16.mxu0 0
    %1528 = vmatpush2.bf16.msra.mxu0 0
    %1529 = vmatprep.subr.bf16.mxu0 0
    %1530 = vmatpush2.bf16.msra.mxu0 0
    %1531 = vmatprep.subr.bf16.mxu0 0
    %1532 = vmatpush2.bf16.msra.mxu0 0
    %1533 = vmatprep.subr.bf16.mxu0 0
    %1534 = vmatpush2.bf16.msra.mxu0 0
    %1535 = vmatprep.subr.bf16.mxu0 0
    %1536 = vmatpush2.bf16.msra.mxu0 0
    %1537 = vmatprep.subr.bf16.mxu0 0
    %1538 = vmatpush2.bf16.msra.mxu0 0
    %1539 = vmatprep.subr.bf16.mxu0 0
    %1540 = vmatpush2.bf16.msra.mxu0 0
    %1541 = vmatprep.subr.bf16.mxu0 0
    %1542 = vmatpush2.bf16.msra.mxu0 0
    %1543 = vmatprep.mubr.bf16.mxu0 0
    %1544 = vmatmul.mubr.bf16.gmra.mxu0 %v1467
    %v1545 = vpop.f32.mrf.mxu0
    %v1546 = vadd.f32 0.0, %v1545
    %v1547 = vpop.f32.mrf.mxu0
    %v1548 = vpop.f32.mrf.mxu0
    %v1549 = vpop.f32.mrf.mxu0
    %1550 = vdwg.mxu0
    %v1551 = vadd.f32 %v1510, %v1546
    %v1552 = vld [vmem:[%s292 + $0xa] sm:$0x3]
    %1553 = vmatprep.subr.bf16.mxu0 0
    %1554 = vmatpush1.bf16.msra.mxu0 0
    %1555 = vmatprep.subr.bf16.mxu0 0
    %1556 = vmatpush1.bf16.msra.mxu0 0
    %1557 = vmatprep.subr.bf16.mxu0 0
    %1558 = vmatpush1.bf16.msra.mxu0 0
    %1559 = vmatprep.subr.bf16.mxu0 0
    %1560 = vmatpush1.bf16.msra.mxu0 0
    %1561 = vmatprep.subr.bf16.mxu0 0
    %1562 = vmatpush1.bf16.msra.mxu0 0
    %1563 = vmatprep.subr.bf16.mxu0 0
    %1564 = vmatpush1.bf16.msra.mxu0 0
    %1565 = vmatprep.subr.bf16.mxu0 0
    %1566 = vmatpush1.bf16.msra.mxu0 %v509
    %1567 = vmatprep.subr.bf16.mxu0 0
    %1568 = vmatpush1.bf16.msra.mxu0 %v508
    %1569 = vmatprep.subr.bf16.mxu0 0
    %1570 = vmatpush2.bf16.msra.mxu0 0
    %1571 = vmatprep.subr.bf16.mxu0 0
    %1572 = vmatpush2.bf16.msra.mxu0 0
    %1573 = vmatprep.subr.bf16.mxu0 0
    %1574 = vmatpush2.bf16.msra.mxu0 0
    %1575 = vmatprep.subr.bf16.mxu0 0
    %1576 = vmatpush2.bf16.msra.mxu0 0
    %1577 = vmatprep.subr.bf16.mxu0 0
    %1578 = vmatpush2.bf16.msra.mxu0 0
    %1579 = vmatprep.subr.bf16.mxu0 0
    %1580 = vmatpush2.bf16.msra.mxu0 0
    %1581 = vmatprep.subr.bf16.mxu0 0
    %1582 = vmatpush2.bf16.msra.mxu0 0
    %1583 = vmatprep.subr.bf16.mxu0 0
    %1584 = vmatpush2.bf16.msra.mxu0 0
    %1585 = vmatprep.mubr.bf16.mxu0 0
    %1586 = vmatmul.mubr.bf16.gmra.mxu0 %v1467
    %v1587 = vpop.f32.mrf.mxu0
    %v1588 = vadd.f32 0.0, %v1587
    %v1589 = vpop.f32.mrf.mxu0
    %v1590 = vpop.f32.mrf.mxu0
    %v1591 = vpop.f32.mrf.mxu0
    %1592 = vdwg.mxu0
    %v1593 = vadd.f32 %v1552, %v1588
    %v1594 = vld [vmem:[%s361 + $0xa] sm:$0x3]
    %1595 = vmatprep.subr.bf16.mxu0 0
    %1596 = vmatpush1.bf16.msra.mxu0 0
    %1597 = vmatprep.subr.bf16.mxu0 0
    %1598 = vmatpush1.bf16.msra.mxu0 0
    %1599 = vmatprep.subr.bf16.mxu0 0
    %1600 = vmatpush1.bf16.msra.mxu0 0
    %1601 = vmatprep.subr.bf16.mxu0 0
    %1602 = vmatpush1.bf16.msra.mxu0 0
    %1603 = vmatprep.subr.bf16.mxu0 0
    %1604 = vmatpush1.bf16.msra.mxu0 0
    %1605 = vmatprep.subr.bf16.mxu0 0
    %1606 = vmatpush1.bf16.msra.mxu0 0
    %1607 = vmatprep.subr.bf16.mxu0 0
    %1608 = vmatpush1.bf16.msra.mxu0 %v563
    %1609 = vmatprep.subr.bf16.mxu0 0
    %1610 = vmatpush1.bf16.msra.mxu0 %v562
    %1611 = vmatprep.subr.bf16.mxu0 0
    %1612 = vmatpush2.bf16.msra.mxu0 0
    %1613 = vmatprep.subr.bf16.mxu0 0
    %1614 = vmatpush2.bf16.msra.mxu0 0
    %1615 = vmatprep.subr.bf16.mxu0 0
    %1616 = vmatpush2.bf16.msra.mxu0 0
    %1617 = vmatprep.subr.bf16.mxu0 0
    %1618 = vmatpush2.bf16.msra.mxu0 0
    %1619 = vmatprep.subr.bf16.mxu0 0
    %1620 = vmatpush2.bf16.msra.mxu0 0
    %1621 = vmatprep.subr.bf16.mxu0 0
    %1622 = vmatpush2.bf16.msra.mxu0 0
    %1623 = vmatprep.subr.bf16.mxu0 0
    %1624 = vmatpush2.bf16.msra.mxu0 0
    %1625 = vmatprep.subr.bf16.mxu0 0
    %1626 = vmatpush2.bf16.msra.mxu0 0
    %1627 = vmatprep.mubr.bf16.mxu0 0
    %1628 = vmatmul.mubr.bf16.gmra.mxu0 %v1467
    %v1629 = vpop.f32.mrf.mxu0
    %v1630 = vadd.f32 0.0, %v1629
    %v1631 = vpop.f32.mrf.mxu0
    %v1632 = vpop.f32.mrf.mxu0
    %v1633 = vpop.f32.mrf.mxu0
    %1634 = vdwg.mxu0
    %v1635 = vadd.f32 %v1594, %v1630
    %v1636 = vxor.u32 %v1509, 2147483648
    %v1637 = vmul.f32 %v1636, 1.442695
    %v1638 = vpow.pop %v1637
    %v1639 = vadd.f32 %v1638, 1.0
    %v1640 = vrcp.pop %v1639
    %v1641 = vmul.f32 1.0, %v1640
    %v1642 = vxor.u32 %v1551, 2147483648
    %v1643 = vmul.f32 %v1642, 1.442695
    %v1644 = vpow.pop %v1643
    %v1645 = vadd.f32 %v1644, 1.0
    %v1646 = vrcp.pop %v1645
    %v1647 = vmul.f32 1.0, %v1646
    %v1648 = vtanh.pop %v1593
    %v1649 = vxor.u32 %v1635, 2147483648
    %v1650 = vmul.f32 %v1649, 1.442695
    %v1651 = vpow.pop %v1650
    %v1652 = vadd.f32 %v1651, 1.0
    %v1653 = vrcp.pop %v1652
    %v1654 = vmul.f32 1.0, %v1653
    %v1655 = vld [vmem:[#allocation5] sm:$0x3]
    %v1656 = vmul.f32 %v1647, %v1655
    %v1657 = vmul.f32 %v1641, %v1648
    %v1658 = vadd.f32 %v1656, %v1657
    %v1659 = vtanh.pop %v1658
    %v1660 = vmul.f32 %v1654, %v1659
    %1661 = vst.msk [vmem:[#allocation5] sm:$0x3] %vm364, %v1658
    %1662 = vst.msk [vmem:[#allocation4] sm:$0x3] %vm364, %v1660
    %v1663 = vpack.c.bf16 %v1660, %v1660
    %v1665 = vunpack.c.l.b16 %v1663
    %v1666 = vpack.c.b16 %v1665, %v1665
    %v1667 = vrot.slane %v1666, 7
    %1669 = vst.msk [vmem:[#allocation3 + $0x4] sm:$0x2] %vm843, %v1667
    %v1670 = vld [vmem:[#allocation4] sm:$0x3]
    %v1671 = vpack.c.bf16 %v1670, %v1670
    %v1672 = vld [vmem:[#allocation2 + $0xc] sm:$0x3]
    %v1674 = vsel %vm110, %v1671, 0
    %1676 = vmatprep.subr.bf16.mxu0 0
    %1677 = vmatpush1.bf16.msra.mxu0 0
    %1678 = vmatprep.subr.bf16.mxu0 0
    %1679 = vmatpush1.bf16.msra.mxu0 0
    %1680 = vmatprep.subr.bf16.mxu0 0
    %1681 = vmatpush1.bf16.msra.mxu0 0
    %1682 = vmatprep.subr.bf16.mxu0 0
    %1683 = vmatpush1.bf16.msra.mxu0 0
    %1684 = vmatprep.subr.bf16.mxu0 0
    %1685 = vmatpush1.bf16.msra.mxu0 0
    %1686 = vmatprep.subr.bf16.mxu0 0
    %1687 = vmatpush1.bf16.msra.mxu0 0
    %1688 = vmatprep.subr.bf16.mxu0 0
    %1689 = vmatpush1.bf16.msra.mxu0 %v398
    %1690 = vmatprep.subr.bf16.mxu0 0
    %1691 = vmatpush1.bf16.msra.mxu0 %v397
    %1692 = vmatprep.subr.bf16.mxu0 0
    %1693 = vmatpush2.bf16.msra.mxu0 0
    %1694 = vmatprep.subr.bf16.mxu0 0
    %1695 = vmatpush2.bf16.msra.mxu0 0
    %1696 = vmatprep.subr.bf16.mxu0 0
    %1697 = vmatpush2.bf16.msra.mxu0 0
    %1698 = vmatprep.subr.bf16.mxu0 0
    %1699 = vmatpush2.bf16.msra.mxu0 0
    %1700 = vmatprep.subr.bf16.mxu0 0
    %1701 = vmatpush2.bf16.msra.mxu0 0
    %1702 = vmatprep.subr.bf16.mxu0 0
    %1703 = vmatpush2.bf16.msra.mxu0 0
    %1704 = vmatprep.subr.bf16.mxu0 0
    %1705 = vmatpush2.bf16.msra.mxu0 0
    %1706 = vmatprep.subr.bf16.mxu0 0
    %1707 = vmatpush2.bf16.msra.mxu0 0
    %1708 = vmatprep.mubr.bf16.mxu0 0
    %1709 = vmatmul.mubr.bf16.gmra.mxu0 %v1674
    %v1710 = vpop.f32.mrf.mxu0
    %v1711 = vadd.f32 0.0, %v1710
    %v1712 = vpop.f32.mrf.mxu0
    %v1713 = vpop.f32.mrf.mxu0
    %v1714 = vpop.f32.mrf.mxu0
    %1715 = vdwg.mxu0
    %v1716 = vadd.f32 %v1672, %v1711
    %v1717 = vld [vmem:[%s223 + $0xc] sm:$0x3]
    %1718 = vmatprep.subr.bf16.mxu0 0
    %1719 = vmatpush1.bf16.msra.mxu0 0
    %1720 = vmatprep.subr.bf16.mxu0 0
    %1721 = vmatpush1.bf16.msra.mxu0 0
    %1722 = vmatprep.subr.bf16.mxu0 0
    %1723 = vmatpush1.bf16.msra.mxu0 0
    %1724 = vmatprep.subr.bf16.mxu0 0
    %1725 = vmatpush1.bf16.msra.mxu0 0
    %1726 = vmatprep.subr.bf16.mxu0 0
    %1727 = vmatpush1.bf16.msra.mxu0 0
    %1728 = vmatprep.subr.bf16.mxu0 0
    %1729 = vmatpush1.bf16.msra.mxu0 0
    %1730 = vmatprep.subr.bf16.mxu0 0
    %1731 = vmatpush1.bf16.msra.mxu0 %v455
    %1732 = vmatprep.subr.bf16.mxu0 0
    %1733 = vmatpush1.bf16.msra.mxu0 %v454
    %1734 = vmatprep.subr.bf16.mxu0 0
    %1735 = vmatpush2.bf16.msra.mxu0 0
    %1736 = vmatprep.subr.bf16.mxu0 0
    %1737 = vmatpush2.bf16.msra.mxu0 0
    %1738 = vmatprep.subr.bf16.mxu0 0
    %1739 = vmatpush2.bf16.msra.mxu0 0
    %1740 = vmatprep.subr.bf16.mxu0 0
    %1741 = vmatpush2.bf16.msra.mxu0 0
    %1742 = vmatprep.subr.bf16.mxu0 0
    %1743 = vmatpush2.bf16.msra.mxu0 0
    %1744 = vmatprep.subr.bf16.mxu0 0
    %1745 = vmatpush2.bf16.msra.mxu0 0
    %1746 = vmatprep.subr.bf16.mxu0 0
    %1747 = vmatpush2.bf16.msra.mxu0 0
    %1748 = vmatprep.subr.bf16.mxu0 0
    %1749 = vmatpush2.bf16.msra.mxu0 0
    %1750 = vmatprep.mubr.bf16.mxu0 0
    %1751 = vmatmul.mubr.bf16.gmra.mxu0 %v1674
    %v1752 = vpop.f32.mrf.mxu0
    %v1753 = vadd.f32 0.0, %v1752
    %v1754 = vpop.f32.mrf.mxu0
    %v1755 = vpop.f32.mrf.mxu0
    %v1756 = vpop.f32.mrf.mxu0
    %1757 = vdwg.mxu0
    %v1758 = vadd.f32 %v1717, %v1753
    %v1759 = vld [vmem:[%s292 + $0xc] sm:$0x3]
    %1760 = vmatprep.subr.bf16.mxu0 0
    %1761 = vmatpush1.bf16.msra.mxu0 0
    %1762 = vmatprep.subr.bf16.mxu0 0
    %1763 = vmatpush1.bf16.msra.mxu0 0
    %1764 = vmatprep.subr.bf16.mxu0 0
    %1765 = vmatpush1.bf16.msra.mxu0 0
    %1766 = vmatprep.subr.bf16.mxu0 0
    %1767 = vmatpush1.bf16.msra.mxu0 0
    %1768 = vmatprep.subr.bf16.mxu0 0
    %1769 = vmatpush1.bf16.msra.mxu0 0
    %1770 = vmatprep.subr.bf16.mxu0 0
    %1771 = vmatpush1.bf16.msra.mxu0 0
    %1772 = vmatprep.subr.bf16.mxu0 0
    %1773 = vmatpush1.bf16.msra.mxu0 %v509
    %1774 = vmatprep.subr.bf16.mxu0 0
    %1775 = vmatpush1.bf16.msra.mxu0 %v508
    %1776 = vmatprep.subr.bf16.mxu0 0
    %1777 = vmatpush2.bf16.msra.mxu0 0
    %1778 = vmatprep.subr.bf16.mxu0 0
    %1779 = vmatpush2.bf16.msra.mxu0 0
    %1780 = vmatprep.subr.bf16.mxu0 0
    %1781 = vmatpush2.bf16.msra.mxu0 0
    %1782 = vmatprep.subr.bf16.mxu0 0
    %1783 = vmatpush2.bf16.msra.mxu0 0
    %1784 = vmatprep.subr.bf16.mxu0 0
    %1785 = vmatpush2.bf16.msra.mxu0 0
    %1786 = vmatprep.subr.bf16.mxu0 0
    %1787 = vmatpush2.bf16.msra.mxu0 0
    %1788 = vmatprep.subr.bf16.mxu0 0
    %1789 = vmatpush2.bf16.msra.mxu0 0
    %1790 = vmatprep.subr.bf16.mxu0 0
    %1791 = vmatpush2.bf16.msra.mxu0 0
    %1792 = vmatprep.mubr.bf16.mxu0 0
    %1793 = vmatmul.mubr.bf16.gmra.mxu0 %v1674
    %v1794 = vpop.f32.mrf.mxu0
    %v1795 = vadd.f32 0.0, %v1794
    %v1796 = vpop.f32.mrf.mxu0
    %v1797 = vpop.f32.mrf.mxu0
    %v1798 = vpop.f32.mrf.mxu0
    %1799 = vdwg.mxu0
    %v1800 = vadd.f32 %v1759, %v1795
    %v1801 = vld [vmem:[%s361 + $0xc] sm:$0x3]
    %1802 = vmatprep.subr.bf16.mxu0 0
    %1803 = vmatpush1.bf16.msra.mxu0 0
    %1804 = vmatprep.subr.bf16.mxu0 0
    %1805 = vmatpush1.bf16.msra.mxu0 0
    %1806 = vmatprep.subr.bf16.mxu0 0
    %1807 = vmatpush1.bf16.msra.mxu0 0
    %1808 = vmatprep.subr.bf16.mxu0 0
    %1809 = vmatpush1.bf16.msra.mxu0 0
    %1810 = vmatprep.subr.bf16.mxu0 0
    %1811 = vmatpush1.bf16.msra.mxu0 0
    %1812 = vmatprep.subr.bf16.mxu0 0
    %1813 = vmatpush1.bf16.msra.mxu0 0
    %1814 = vmatprep.subr.bf16.mxu0 0
    %1815 = vmatpush1.bf16.msra.mxu0 %v563
    %1816 = vmatprep.subr.bf16.mxu0 0
    %1817 = vmatpush1.bf16.msra.mxu0 %v562
    %1818 = vmatprep.subr.bf16.mxu0 0
    %1819 = vmatpush2.bf16.msra.mxu0 0
    %1820 = vmatprep.subr.bf16.mxu0 0
    %1821 = vmatpush2.bf16.msra.mxu0 0
    %1822 = vmatprep.subr.bf16.mxu0 0
    %1823 = vmatpush2.bf16.msra.mxu0 0
    %1824 = vmatprep.subr.bf16.mxu0 0
    %1825 = vmatpush2.bf16.msra.mxu0 0
    %1826 = vmatprep.subr.bf16.mxu0 0
    %1827 = vmatpush2.bf16.msra.mxu0 0
    %1828 = vmatprep.subr.bf16.mxu0 0
    %1829 = vmatpush2.bf16.msra.mxu0 0
    %1830 = vmatprep.subr.bf16.mxu0 0
    %1831 = vmatpush2.bf16.msra.mxu0 0
    %1832 = vmatprep.subr.bf16.mxu0 0
    %1833 = vmatpush2.bf16.msra.mxu0 0
    %1834 = vmatprep.mubr.bf16.mxu0 0
    %1835 = vmatmul.mubr.bf16.gmra.mxu0 %v1674
    %v1836 = vpop.f32.mrf.mxu0
    %v1837 = vadd.f32 0.0, %v1836
    %v1838 = vpop.f32.mrf.mxu0
    %v1839 = vpop.f32.mrf.mxu0
    %v1840 = vpop.f32.mrf.mxu0
    %1841 = vdwg.mxu0
    %v1842 = vadd.f32 %v1801, %v1837
    %v1843 = vxor.u32 %v1716, 2147483648
    %v1844 = vmul.f32 %v1843, 1.442695
    %v1845 = vpow.pop %v1844
    %v1846 = vadd.f32 %v1845, 1.0
    %v1847 = vrcp.pop %v1846
    %v1848 = vmul.f32 1.0, %v1847
    %v1849 = vxor.u32 %v1758, 2147483648
    %v1850 = vmul.f32 %v1849, 1.442695
    %v1851 = vpow.pop %v1850
    %v1852 = vadd.f32 %v1851, 1.0
    %v1853 = vrcp.pop %v1852
    %v1854 = vmul.f32 1.0, %v1853
    %v1855 = vtanh.pop %v1800
    %v1856 = vxor.u32 %v1842, 2147483648
    %v1857 = vmul.f32 %v1856, 1.442695
    %v1858 = vpow.pop %v1857
    %v1859 = vadd.f32 %v1858, 1.0
    %v1860 = vrcp.pop %v1859
    %v1861 = vmul.f32 1.0, %v1860
    %v1862 = vld [vmem:[#allocation5] sm:$0x3]
    %v1863 = vmul.f32 %v1854, %v1862
    %v1864 = vmul.f32 %v1848, %v1855
    %v1865 = vadd.f32 %v1863, %v1864
    %v1866 = vtanh.pop %v1865
    %v1867 = vmul.f32 %v1861, %v1866
    %1868 = vst.msk [vmem:[#allocation5] sm:$0x3] %vm364, %v1865
    %1869 = vst.msk [vmem:[#allocation4] sm:$0x3] %vm364, %v1867
    %v1870 = vpack.c.bf16 %v1867, %v1867
    %v1872 = vunpack.c.l.b16 %v1870
    %v1873 = vpack.c.b16 %v1872, %v1872
    %v1874 = vrot.slane %v1873, 6
    %1876 = vst.msk [vmem:[#allocation3 + $0x4] sm:$0x4] %vm1051, %v1874
    %v1877 = vld [vmem:[#allocation4] sm:$0x3]
    %v1878 = vpack.c.bf16 %v1877, %v1877
    %v1879 = vld [vmem:[#allocation2 + $0xe] sm:$0x3]
    %v1881 = vsel %vm110, %v1878, 0
    %1883 = vmatprep.subr.bf16.mxu0 0
    %1884 = vmatpush1.bf16.msra.mxu0 0
    %1885 = vmatprep.subr.bf16.mxu0 0
    %1886 = vmatpush1.bf16.msra.mxu0 0
    %1887 = vmatprep.subr.bf16.mxu0 0
    %1888 = vmatpush1.bf16.msra.mxu0 0
    %1889 = vmatprep.subr.bf16.mxu0 0
    %1890 = vmatpush1.bf16.msra.mxu0 0
    %1891 = vmatprep.subr.bf16.mxu0 0
    %1892 = vmatpush1.bf16.msra.mxu0 0
    %1893 = vmatprep.subr.bf16.mxu0 0
    %1894 = vmatpush1.bf16.msra.mxu0 0
    %1895 = vmatprep.subr.bf16.mxu0 0
    %1896 = vmatpush1.bf16.msra.mxu0 %v398
    %1897 = vmatprep.subr.bf16.mxu0 0
    %1898 = vmatpush1.bf16.msra.mxu0 %v397
    %1899 = vmatprep.subr.bf16.mxu0 0
    %1900 = vmatpush2.bf16.msra.mxu0 0
    %1901 = vmatprep.subr.bf16.mxu0 0
    %1902 = vmatpush2.bf16.msra.mxu0 0
    %1903 = vmatprep.subr.bf16.mxu0 0
    %1904 = vmatpush2.bf16.msra.mxu0 0
    %1905 = vmatprep.subr.bf16.mxu0 0
    %1906 = vmatpush2.bf16.msra.mxu0 0
    %1907 = vmatprep.subr.bf16.mxu0 0
    %1908 = vmatpush2.bf16.msra.mxu0 0
    %1909 = vmatprep.subr.bf16.mxu0 0
    %1910 = vmatpush2.bf16.msra.mxu0 0
    %1911 = vmatprep.subr.bf16.mxu0 0
    %1912 = vmatpush2.bf16.msra.mxu0 0
    %1913 = vmatprep.subr.bf16.mxu0 0
    %1914 = vmatpush2.bf16.msra.mxu0 0
    %1915 = vmatprep.mubr.bf16.mxu0 0
    %1916 = vmatmul.mubr.bf16.gmra.mxu0 %v1881
    %v1917 = vpop.f32.mrf.mxu0
    %v1918 = vadd.f32 0.0, %v1917
    %v1919 = vpop.f32.mrf.mxu0
    %v1920 = vpop.f32.mrf.mxu0
    %v1921 = vpop.f32.mrf.mxu0
    %1922 = vdwg.mxu0
    %v1923 = vadd.f32 %v1879, %v1918
    %v1924 = vld [vmem:[%s223 + $0xe] sm:$0x3]
    %1925 = vmatprep.subr.bf16.mxu0 0
    %1926 = vmatpush1.bf16.msra.mxu0 0
    %1927 = vmatprep.subr.bf16.mxu0 0
    %1928 = vmatpush1.bf16.msra.mxu0 0
    %1929 = vmatprep.subr.bf16.mxu0 0
    %1930 = vmatpush1.bf16.msra.mxu0 0
    %1931 = vmatprep.subr.bf16.mxu0 0
    %1932 = vmatpush1.bf16.msra.mxu0 0
    %1933 = vmatprep.subr.bf16.mxu0 0
    %1934 = vmatpush1.bf16.msra.mxu0 0
    %1935 = vmatprep.subr.bf16.mxu0 0
    %1936 = vmatpush1.bf16.msra.mxu0 0
    %1937 = vmatprep.subr.bf16.mxu0 0
    %1938 = vmatpush1.bf16.msra.mxu0 %v455
    %1939 = vmatprep.subr.bf16.mxu0 0
    %1940 = vmatpush1.bf16.msra.mxu0 %v454
    %1941 = vmatprep.subr.bf16.mxu0 0
    %1942 = vmatpush2.bf16.msra.mxu0 0
    %1943 = vmatprep.subr.bf16.mxu0 0
    %1944 = vmatpush2.bf16.msra.mxu0 0
    %1945 = vmatprep.subr.bf16.mxu0 0
    %1946 = vmatpush2.bf16.msra.mxu0 0
    %1947 = vmatprep.subr.bf16.mxu0 0
    %1948 = vmatpush2.bf16.msra.mxu0 0
    %1949 = vmatprep.subr.bf16.mxu0 0
    %1950 = vmatpush2.bf16.msra.mxu0 0
    %1951 = vmatprep.subr.bf16.mxu0 0
    %1952 = vmatpush2.bf16.msra.mxu0 0
    %1953 = vmatprep.subr.bf16.mxu0 0
    %1954 = vmatpush2.bf16.msra.mxu0 0
    %1955 = vmatprep.subr.bf16.mxu0 0
    %1956 = vmatpush2.bf16.msra.mxu0 0
    %1957 = vmatprep.mubr.bf16.mxu0 0
    %1958 = vmatmul.mubr.bf16.gmra.mxu0 %v1881
    %v1959 = vpop.f32.mrf.mxu0
    %v1960 = vadd.f32 0.0, %v1959
    %v1961 = vpop.f32.mrf.mxu0
    %v1962 = vpop.f32.mrf.mxu0
    %v1963 = vpop.f32.mrf.mxu0
    %1964 = vdwg.mxu0
    %v1965 = vadd.f32 %v1924, %v1960
    %v1966 = vld [vmem:[%s292 + $0xe] sm:$0x3]
    %1967 = vmatprep.subr.bf16.mxu0 0
    %1968 = vmatpush1.bf16.msra.mxu0 0
    %1969 = vmatprep.subr.bf16.mxu0 0
    %1970 = vmatpush1.bf16.msra.mxu0 0
    %1971 = vmatprep.subr.bf16.mxu0 0
    %1972 = vmatpush1.bf16.msra.mxu0 0
    %1973 = vmatprep.subr.bf16.mxu0 0
    %1974 = vmatpush1.bf16.msra.mxu0 0
    %1975 = vmatprep.subr.bf16.mxu0 0
    %1976 = vmatpush1.bf16.msra.mxu0 0
    %1977 = vmatprep.subr.bf16.mxu0 0
    %1978 = vmatpush1.bf16.msra.mxu0 0
    %1979 = vmatprep.subr.bf16.mxu0 0
    %1980 = vmatpush1.bf16.msra.mxu0 %v509
    %1981 = vmatprep.subr.bf16.mxu0 0
    %1982 = vmatpush1.bf16.msra.mxu0 %v508
    %1983 = vmatprep.subr.bf16.mxu0 0
    %1984 = vmatpush2.bf16.msra.mxu0 0
    %1985 = vmatprep.subr.bf16.mxu0 0
    %1986 = vmatpush2.bf16.msra.mxu0 0
    %1987 = vmatprep.subr.bf16.mxu0 0
    %1988 = vmatpush2.bf16.msra.mxu0 0
    %1989 = vmatprep.subr.bf16.mxu0 0
    %1990 = vmatpush2.bf16.msra.mxu0 0
    %1991 = vmatprep.subr.bf16.mxu0 0
    %1992 = vmatpush2.bf16.msra.mxu0 0
    %1993 = vmatprep.subr.bf16.mxu0 0
    %1994 = vmatpush2.bf16.msra.mxu0 0
    %1995 = vmatprep.subr.bf16.mxu0 0
    %1996 = vmatpush2.bf16.msra.mxu0 0
    %1997 = vmatprep.subr.bf16.mxu0 0
    %1998 = vmatpush2.bf16.msra.mxu0 0
    %1999 = vmatprep.mubr.bf16.mxu0 0
    %2000 = vmatmul.mubr.bf16.gmra.mxu0 %v1881
    %v2001 = vpop.f32.mrf.mxu0
    %v2002 = vadd.f32 0.0, %v2001
    %v2003 = vpop.f32.mrf.mxu0
    %v2004 = vpop.f32.mrf.mxu0
    %v2005 = vpop.f32.mrf.mxu0
    %2006 = vdwg.mxu0
    %v2007 = vadd.f32 %v1966, %v2002
    %v2008 = vld [vmem:[%s361 + $0xe] sm:$0x3]
    %2009 = vmatprep.subr.bf16.mxu0 0
    %2010 = vmatpush1.bf16.msra.mxu0 0
    %2011 = vmatprep.subr.bf16.mxu0 0
    %2012 = vmatpush1.bf16.msra.mxu0 0
    %2013 = vmatprep.subr.bf16.mxu0 0
    %2014 = vmatpush1.bf16.msra.mxu0 0
    %2015 = vmatprep.subr.bf16.mxu0 0
    %2016 = vmatpush1.bf16.msra.mxu0 0
    %2017 = vmatprep.subr.bf16.mxu0 0
    %2018 = vmatpush1.bf16.msra.mxu0 0
    %2019 = vmatprep.subr.bf16.mxu0 0
    %2020 = vmatpush1.bf16.msra.mxu0 0
    %2021 = vmatprep.subr.bf16.mxu0 0
    %2022 = vmatpush1.bf16.msra.mxu0 %v563
    %2023 = vmatprep.subr.bf16.mxu0 0
    %2024 = vmatpush1.bf16.msra.mxu0 %v562
    %2025 = vmatprep.subr.bf16.mxu0 0
    %2026 = vmatpush2.bf16.msra.mxu0 0
    %2027 = vmatprep.subr.bf16.mxu0 0
    %2028 = vmatpush2.bf16.msra.mxu0 0
    %2029 = vmatprep.subr.bf16.mxu0 0
    %2030 = vmatpush2.bf16.msra.mxu0 0
    %2031 = vmatprep.subr.bf16.mxu0 0
    %2032 = vmatpush2.bf16.msra.mxu0 0
    %2033 = vmatprep.subr.bf16.mxu0 0
    %2034 = vmatpush2.bf16.msra.mxu0 0
    %2035 = vmatprep.subr.bf16.mxu0 0
    %2036 = vmatpush2.bf16.msra.mxu0 0
    %2037 = vmatprep.subr.bf16.mxu0 0
    %2038 = vmatpush2.bf16.msra.mxu0 0
    %2039 = vmatprep.subr.bf16.mxu0 0
    %2040 = vmatpush2.bf16.msra.mxu0 0
    %2041 = vmatprep.mubr.bf16.mxu0 0
    %2042 = vmatmul.mubr.bf16.gmra.mxu0 %v1881
    %v2043 = vpop.f32.mrf.mxu0
    %v2044 = vadd.f32 0.0, %v2043
    %v2045 = vpop.f32.mrf.mxu0
    %v2046 = vpop.f32.mrf.mxu0
    %v2047 = vpop.f32.mrf.mxu0
    %2048 = vdwg.mxu0
    %v2049 = vadd.f32 %v2008, %v2044
    %v2050 = vxor.u32 %v1923, 2147483648
    %v2051 = vmul.f32 %v2050, 1.442695
    %v2052 = vpow.pop %v2051
    %v2053 = vadd.f32 %v2052, 1.0
    %v2054 = vrcp.pop %v2053
    %v2055 = vmul.f32 1.0, %v2054
    %v2056 = vxor.u32 %v1965, 2147483648
    %v2057 = vmul.f32 %v2056, 1.442695
    %v2058 = vpow.pop %v2057
    %v2059 = vadd.f32 %v2058, 1.0
    %v2060 = vrcp.pop %v2059
    %v2061 = vmul.f32 1.0, %v2060
    %v2062 = vtanh.pop %v2007
    %v2063 = vxor.u32 %v2049, 2147483648
    %v2064 = vmul.f32 %v2063, 1.442695
    %v2065 = vpow.pop %v2064
    %v2066 = vadd.f32 %v2065, 1.0
    %v2067 = vrcp.pop %v2066
    %v2068 = vmul.f32 1.0, %v2067
    %v2069 = vld [vmem:[#allocation5] sm:$0x3]
    %v2070 = vmul.f32 %v2061, %v2069
    %v2071 = vmul.f32 %v2055, %v2062
    %v2072 = vadd.f32 %v2070, %v2071
    %v2073 = vtanh.pop %v2072
    %v2074 = vmul.f32 %v2068, %v2073
    %2075 = vst.msk [vmem:[#allocation5] sm:$0x3] %vm364, %v2072
    %2076 = vst.msk [vmem:[#allocation4] sm:$0x3] %vm364, %v2074
    %v2077 = vpack.c.bf16 %v2074, %v2074
    %v2079 = vunpack.c.l.b16 %v2077
    %v2080 = vpack.c.b16 %v2079, %v2079
    %v2081 = vrot.slane %v2080, 5
    %2083 = vst.msk [vmem:[#allocation3 + $0x4] sm:$0x8] %vm1259, %v2081
    %v2084 = vld [vmem:[#allocation3] sm:$0xf]
    %v2085 = vld [vmem:[#allocation3 + $0x4] sm:$0xf]
    %v2086 = vld [vmem:[#allocation12] sm:$0xf]
    %v2087 = vld [vmem:[#allocation12 + $0x4] sm:$0xf]
    %v2088 = vld [vmem:[#allocation12 + $0x8] sm:$0xf]
    %v2089 = vld [vmem:[#allocation12 + $0xc] sm:$0xf]
    %v2090 = vld [vmem:[%s5] sm:$0x1]
    %v2092 = vlaneseq
    %v2093 = vshrl.u32 %v2092, 7
    %v2094 = vsub.s32 0, %v2093
    %v2095 = vrot.slane %v2090, %v2094
    %v2099 = vunpack.c.l.b16 %v2084
    %v2100 = vunpack.c.l.b16 %v2085
    %v2101 = vpack.c.b16 %v2100, %v2099
    %v2106 = vunpack.c.l.b16 %v2086
    %v2107 = vunpack.c.l.b16 %v2087
    %v2108 = vunpack.c.l.b16 %v2088
    %v2109 = vunpack.c.l.b16 %v2089
    %v2110 = vpack.c.b16 %v2107, %v2106
    %v2111 = vpack.c.b16 %v2109, %v2108
    %v2115 = vsel %vm110, %v2101, 0
    %2117 = vmatprep.subr.bf16.mxu0 0
    %2118 = vmatpush1.bf16.msra.mxu0 0
    %2119 = vmatprep.subr.bf16.mxu0 0
    %2120 = vmatpush1.bf16.msra.mxu0 0
    %2121 = vmatprep.subr.bf16.mxu0 0
    %2122 = vmatpush1.bf16.msra.mxu0 0
    %2123 = vmatprep.subr.bf16.mxu0 0
    %2124 = vmatpush1.bf16.msra.mxu0 0
    %2125 = vmatprep.subr.bf16.mxu0 0
    %2126 = vmatpush1.bf16.msra.mxu0 0
    %2127 = vmatprep.subr.bf16.mxu0 0
    %2128 = vmatpush1.bf16.msra.mxu0 0
    %2129 = vmatprep.subr.bf16.mxu0 0
    %2130 = vmatpush1.bf16.msra.mxu0 %v2111
    %2131 = vmatprep.subr.bf16.mxu0 0
    %2132 = vmatpush1.bf16.msra.mxu0 %v2110
    %2133 = vmatprep.subr.bf16.mxu0 0
    %2134 = vmatpush2.bf16.msra.mxu0 0
    %2135 = vmatprep.subr.bf16.mxu0 0
    %2136 = vmatpush2.bf16.msra.mxu0 0
    %2137 = vmatprep.subr.bf16.mxu0 0
    %2138 = vmatpush2.bf16.msra.mxu0 0
    %2139 = vmatprep.subr.bf16.mxu0 0
    %2140 = vmatpush2.bf16.msra.mxu0 0
    %2141 = vmatprep.subr.bf16.mxu0 0
    %2142 = vmatpush2.bf16.msra.mxu0 0
    %2143 = vmatprep.subr.bf16.mxu0 0
    %2144 = vmatpush2.bf16.msra.mxu0 0
    %2145 = vmatprep.subr.bf16.mxu0 0
    %2146 = vmatpush2.bf16.msra.mxu0 0
    %2147 = vmatprep.subr.bf16.mxu0 0
    %2148 = vmatpush2.bf16.msra.mxu0 0
    %2149 = vmatprep.mubr.bf16.mxu0 0
    %2150 = vmatmul.mubr.bf16.gmra.mxu0 %v2115
    %v2151 = vpop.f32.mrf.mxu0
    %v2152 = vadd.f32 %v2095, %v2151
    %v2153 = vpop.f32.mrf.mxu0
    %v2154 = vpop.f32.mrf.mxu0
    %v2155 = vadd.f32 %v2095, %v2154
    %v2156 = vpop.f32.mrf.mxu0
    %2157 = vdwg.mxu0
    %2158 = vmax.xlane.f32.xlu0 %v2152
    %v2159 = vpop.xlane.xlu0 %2158
    %2160 = vmax.xlane.f32.xlu0 %v2155
    %v2161 = vpop.xlane.xlu0 %2160
    %v2162 = vsub.f32 %v2152, %v2159
    %v2163 = vsub.f32 %v2155, %v2161
    %v2164 = vmul.f32 %v2162, 1.442695
    %v2165 = vpow.pop %v2164
    %v2166 = vmul.f32 %v2163, 1.442695
    %v2167 = vpow.pop %v2166
    %2168 = vadd.xlane.f32.xlu0 %v2165
    %v2169 = vpop.xlane.xlu0 %2168
    %2170 = vadd.xlane.f32.xlu0 %v2167
    %v2171 = vpop.xlane.xlu0 %2170
    %v2172 = vrcp.pop %v2169
    %v2173 = vrcp.pop %v2171
    %v2174 = vmul.f32 %v2165, %v2172
    %v2175 = vmul.f32 %v2167, %v2173
    %2176 = vst [vmem:[#allocation14] sm:$0xff] %v2174
    %2177 = vst [vmem:[#allocation14 + $0x8] sm:$0xff] %v2175
    // Predicated region
    $region42: #{tpu_custom_call.1} parent=1 // pred_check
      _
    $region43: #{tpu_custom_call.1} parent=1 // pred_check_branch
      %2179 = sbr.rel (0) target = $region45
    $region44: #{tpu_custom_call.1} parent=1 // pred_region
      %s2181 = ssub.s32 256, 256
      %2182 = vsyncadd [#allocation8], %s2181
      %s2183 = sshll.u32 [#allocation14], 4
      %s2184 = int_to_ptr.vmem [resolvable:$true] %s2183
      %2189 = dma.vmem_to_hbm [thread:$0]  %s2184, 256, %s6, [#allocation8], 128, 128, 8
    $region45: #{tpu_custom_call.1} parent=1 // pred_fallthru
      _
    // Predicated region
    $region46: #{tpu_custom_call.1} parent=1 // pred_check
      _
    $region47: #{tpu_custom_call.1} parent=1 // pred_check_branch
      %2191 = sbr.rel (0) target = $region49
    $region48: #{tpu_custom_call.1} parent=1 // pred_region
      %2192 = dma.done [#allocation8], 256
    $region49: #{tpu_custom_call.1} parent=1 // pred_fallthru
      _
    %2193 = vsyncpa [#allocation7], 1
    %2194 = vsyncpa [#allocation10], 1
    %2195 = vsyncpa [#allocation13], 1
    %2196 = vsyncpa [#allocation8], 1

</llo_original>
